<compile_context>
chip_gen: v7x
topology: tpu7x:2x2x1
jax: 0.10.0
libtpu: 0.0.40
codegen_flags: <defaults>
</compile_context>

<pallas_src>
import functools

import jax
import jax.numpy as jnp
from jax.experimental import pallas as pl
from jax.experimental.pallas import tpu as pltpu

_LANE = 128
_SUBLANE = 8
_HIGH = jax.lax.Precision.HIGHEST


def _vmem_capacity_bytes():
    try:
        info = pltpu.get_tpu_info()
        cap = int(getattr(info, "vmem_capacity_bytes", 0))
        if cap > 0:
            return cap
    except Exception:
        pass
    return 64 << 20  # conservative fallback (v7x per-core VMEM)


def _vmem_limit(capacity):
    # Generous scoped-VMEM limit: capacity minus headroom (112 MiB on 128-MiB
    # parts, 48 MiB on v7x), never below 32 MiB.
    return int(min(max(capacity - (16 << 20), 32 << 20), 128 << 20))


def _largest_divisor_leq(n, cap):
    cap = max(1, min(int(cap), n))
    for d in range(cap, 0, -1):
        if n % d == 0:
            return d
    return 1


def _choose_hw_tile(hw, c, itemsize, target_bytes, vmem_block_cap, cap=None):
    """Lane tile for the two-pass kernels: multiple of 128, >=512 where it fits,
    bounded by the per-block VMEM cap; or the full (possibly ragged) HW when
    that is smaller (full array dims are exempt from the 128 rule)."""
    per_lane = max(c * itemsize, 1)
    by_target = (target_bytes // per_lane) // _LANE * _LANE
    by_vmem = (vmem_block_cap // per_lane) // _LANE * _LANE
    t = min(max(by_target, 512), max(by_vmem, _LANE))
    t = max(t, _LANE)
    if cap is not None:
        t = min(t, max((int(cap) // _LANE) * _LANE, _LANE))
    if t >= hw:
        return hw
    return t


def _choose_c_tile(c, hw_tile, itemsize, target_bytes, cap=None):
    per_row = max(hw_tile * itemsize, 1)
    t = (target_bytes // per_row) // _SUBLANE * _SUBLANE
    t = max(t, _SUBLANE)
    if cap is not None:
        t = min(t, max((int(cap) // _SUBLANE) * _SUBLANE, _SUBLANE))
    if t >= c:
        return c
    return t


# ----------------------------------------------------------------------------
# Fused single-pass kernel: pool + MLP + gate-apply on (Bt, C, HW) slabs.
# ----------------------------------------------------------------------------
def _fused_kernel(x_ref, w1_ref, w2_ref, o_ref, *, hw, bt):
    w1 = w1_ref[...].astype(jnp.float32)                 # (Cr, C)
    w2 = w2_ref[...].astype(jnp.float32)                 # (C, Cr)
    inv_hw = 1.0 / hw
    for b in range(bt):                                  # static unroll, bt small
        x = x_ref[b]                                     # (C, HW), native dtype
        ones_col = jnp.ones((hw, 1), dtype=x.dtype)
        # Row-sum on the MXU (frees the XLU for the max). Ragged HW is masked by
        # the compiler (logical shapes respected).
        s = jnp.dot(x, ones_col, preferred_element_type=jnp.float32,
                    precision=_HIGH)                     # (C, 1) f32
        avg = s * inv_hw
        mx = jnp.max(x, axis=-1, keepdims=True).astype(jnp.float32)  # (C, 1)

        h_a = jnp.maximum(jnp.dot(w1, avg, preferred_element_type=jnp.float32,
                                  precision=_HIGH), 0.0)
        h_m = jnp.maximum(jnp.dot(w1, mx, preferred_element_type=jnp.float32,
                                  precision=_HIGH), 0.0)
        y = (jnp.dot(w2, h_a, preferred_element_type=jnp.float32, precision=_HIGH)
             + jnp.dot(w2, h_m, preferred_element_type=jnp.float32, precision=_HIGH))
        gate = jax.nn.sigmoid(y).astype(x.dtype)         # (C, 1)
        o_ref[b] = x * gate


def _fused_call(x_flat, w1, w2, bt, vmem_cap):
    B, C, HW = x_flat.shape
    Cr = w1.shape[0]
    itemsize = jnp.dtype(x_flat.dtype).itemsize
    kern = functools.partial(_fused_kernel, hw=HW, bt=bt)
    cost = pl.CostEstimate(
        flops=int(B * (3 * C * HW + 4 * C * Cr)),
        transcendentals=int(B * C),
        bytes_accessed=int(2 * B * C * HW * itemsize + (w1.size + w2.size) * 4),
    )
    return pl.pallas_call(
        kern,
        out_shape=jax.ShapeDtypeStruct((B, C, HW), x_flat.dtype),
        grid_spec=pltpu.PrefetchScalarGridSpec(
            num_scalar_prefetch=0,
            grid=(B // bt,),
            in_specs=[
                pl.BlockSpec((bt, C, HW), lambda i: (i, 0, 0)),
                pl.BlockSpec((Cr, C), lambda i: (0, 0)),
                pl.BlockSpec((C, Cr), lambda i: (0, 0)),
            ],
            out_specs=pl.BlockSpec((bt, C, HW), lambda i: (i, 0, 0)),
        ),
        compiler_params=pltpu.CompilerParams(
            dimension_semantics=("parallel",),
            vmem_limit_bytes=_vmem_limit(vmem_cap),
        ),
        cost_estimate=cost,
    )(x_flat, w1, w2)


# ----------------------------------------------------------------------------
# Two-pass path: pool+MLP kernel (tiled over HW), then gate-apply kernel.
# ----------------------------------------------------------------------------
def _pool_mlp_kernel(x_ref, w1_ref, w2_ref, g_ref, sum_acc, max_acc,
                     *, hw_true, hw_tile):
    hwi = pl.program_id(1)
    n_hw = pl.num_programs(1)

    @pl.when(hwi == 0)
    def _():
        sum_acc[...] = jnp.zeros_like(sum_acc)
        max_acc[...] = jnp.full_like(max_acc, -jnp.inf)

    x = x_ref[0]                                          # (C, hw_tile), native dtype
    ones_col = jnp.ones((hw_tile, 1), dtype=x.dtype)

    def accumulate(x_sum, x_max):
        sum_acc[...] += jnp.dot(x_sum, ones_col, preferred_element_type=jnp.float32,
                                precision=_HIGH)
        mx = jnp.max(x_max, axis=-1, keepdims=True).astype(jnp.float32)
        max_acc[...] = jnp.maximum(max_acc[...], mx)

    ragged = (hw_true % hw_tile) != 0                     # static Python bool
    if not ragged:
        accumulate(x, x)
    else:
        # Only the final tile pays for iota + compare + select.
        @pl.when(hwi < n_hw - 1)
        def _():
            accumulate(x, x)

        @pl.when(hwi == n_hw - 1)
        def _():
            col = jax.lax.broadcasted_iota(jnp.int32, x.shape, 1) + hwi * hw_tile
            valid = col < hw_true
            x_sum = jnp.where(valid, x, jnp.zeros_like(x))
            x_max = jnp.where(valid, x, jnp.full_like(x, -jnp.inf))
            accumulate(x_sum, x_max)

    @pl.when(hwi == n_hw - 1)
    def _():
        avg = sum_acc[...] * (1.0 / hw_true)
        mxv = max_acc[...]
        w1 = w1_ref[...].astype(jnp.float32)              # (Cr, C)
        w2 = w2_ref[...].astype(jnp.float32)              # (C, Cr)
        h_a = jnp.maximum(jnp.dot(w1, avg, preferred_element_type=jnp.float32,
                                  precision=_HIGH), 0.0)
        h_m = jnp.maximum(jnp.dot(w1, mxv, preferred_element_type=jnp.float32,
                                  precision=_HIGH), 0.0)
        y = (jnp.dot(w2, h_a, preferred_element_type=jnp.float32, precision=_HIGH)
             + jnp.dot(w2, h_m, preferred_element_type=jnp.float32, precision=_HIGH))
        g_ref[0] = jax.nn.sigmoid(y)                      # (C, 1) f32


def _pool_call(x_flat, w1, w2, hw_tile, vmem_cap):
    B, C, HW = x_flat.shape
    Cr = w1.shape[0]
    itemsize = jnp.dtype(x_flat.dtype).itemsize
    n_hw = pl.cdiv(HW, hw_tile)
    kern = functools.partial(_pool_mlp_kernel, hw_true=HW, hw_tile=hw_tile)
    cost = pl.CostEstimate(
        flops=int(B * (2 * C * HW + 4 * C * Cr)),
        transcendentals=int(B * C),
        bytes_accessed=int(B * C * HW * itemsize + B * C * 4),
    )
    return pl.pallas_call(
        kern,
        out_shape=jax.ShapeDtypeStruct((B, C, 1), jnp.float32),
        grid_spec=pltpu.PrefetchScalarGridSpec(
            num_scalar_prefetch=0,
            grid=(B, n_hw),
            in_specs=[
                pl.BlockSpec((1, C, hw_tile), lambda b, h: (b, 0, h)),
                pl.BlockSpec((Cr, C), lambda b, h: (0, 0)),
                pl.BlockSpec((C, Cr), lambda b, h: (0, 0)),
            ],
            out_specs=pl.BlockSpec((1, C, 1), lambda b, h: (b, 0, 0)),
            scratch_shapes=[pltpu.VMEM((C, 1), jnp.float32),
                            pltpu.VMEM((C, 1), jnp.float32)],
        ),
        compiler_params=pltpu.CompilerParams(
            dimension_semantics=("parallel", "arbitrary"),
            vmem_limit_bytes=_vmem_limit(vmem_cap),
        ),
        cost_estimate=cost,
    )(x_flat, w1, w2)


def _apply_gate_kernel(x_ref, g_ref, o_ref):
    x = x_ref[0]                                          # (c_t, hw_t), native dtype
    g = g_ref[0].astype(x.dtype)                          # (c_t, 1)
    o_ref[0] = x * g


def _apply_call(x_flat, gate, hw_tile, c_tile, vmem_cap):
    B, C, HW = x_flat.shape
    itemsize = jnp.dtype(x_flat.dtype).itemsize
    n_c = pl.cdiv(C, c_tile)
    n_hw = pl.cdiv(HW, hw_tile)
    cost = pl.CostEstimate(
        flops=int(B * C * HW),
        transcendentals=0,
        bytes_accessed=int(2 * B * C * HW * itemsize + B * C * 4),
    )
    return pl.pallas_call(
        _apply_gate_kernel,
        out_shape=jax.ShapeDtypeStruct((B, C, HW), x_flat.dtype),
        grid_spec=pltpu.PrefetchScalarGridSpec(
            num_scalar_prefetch=0,
            grid=(B, n_c, n_hw),
            in_specs=[
                pl.BlockSpec((1, c_tile, hw_tile), lambda b, ci, hi: (b, ci, hi)),
                pl.BlockSpec((1, c_tile, 1), lambda b, ci, hi: (b, ci, 0)),
            ],
            out_specs=pl.BlockSpec((1, c_tile, hw_tile), lambda b, ci, hi: (b, ci, hi)),
        ),
        compiler_params=pltpu.CompilerParams(
            dimension_semantics=("parallel", "parallel", "parallel"),
            vmem_limit_bytes=_vmem_limit(vmem_cap),
        ),
        cost_estimate=cost,
    )(x_flat, gate)


# ----------------------------------------------------------------------------
# Public wrapper (NCHW in / NCHW out, matching the PyTorch module).
# ----------------------------------------------------------------------------
def channel_attention(x_nchw, w1, w2, *, force_two_pass=False,
                      hw_tile_cap=None, c_tile_cap=None):
    """x: (B, C, H, W); w1: (C//r, C) fc1 weight; w2: (C, C//r) fc2 weight."""
    B, C, H, W = x_nchw.shape
    Cr = w1.shape[0]
    assert w1.shape == (Cr, C) and w2.shape == (C, Cr)
    assert jnp.issubdtype(x_nchw.dtype, jnp.floating), \
        "channel_attention requires a floating dtype (max-pool uses -inf masking)"

    HW = H * W
    itemsize = jnp.dtype(x_nchw.dtype).itemsize
    # Metadata-only reshape; no HBM pad / slice copies (ragged HW handled in-kernel).
    x_flat = x_nchw.reshape(B, C, HW)

    cap = _vmem_capacity_bytes()
    # Generation-aware fused budget: ~104 MiB on 128-MiB parts, ~40 MiB on v7x.
    fused_budget = max(cap - (24 << 20), 24 << 20)
    w_bytes = (w1.size + w2.size) * 4 * 2                 # weights, double-buffered
    per_batch = C * HW * itemsize
    fused_live_b1 = 4 * per_batch + w_bytes + (2 << 20)   # in+out double-buffered

    if (not force_two_pass) and fused_live_b1 <= fused_budget:
        # Block several batches per grid step when per-batch slabs are tiny so
        # each step moves ~2 MiB and per-step overhead is amortised.
        bt_cap = max((2 << 20) // max(per_batch, 1), 1)
        bt_cap = min(bt_cap, 8,
                     max((fused_budget - w_bytes) // max(4 * per_batch, 1), 1))
        bt = _largest_divisor_leq(B, bt_cap)
        out_flat = _fused_call(x_flat, w1, w2, bt, cap)
    else:
        # Two-pass: pool+MLP reads x once; gate-apply re-reads x and writes out.
        block_target = (8 << 20) if cap >= (96 << 20) else (4 << 20)
        hw_tile = _choose_hw_tile(HW, C, itemsize, block_target,
                                  max(fused_budget // 4, 1 << 20), hw_tile_cap)
        gate = _pool_call(x_flat, w1, w2, hw_tile, cap)
        c_tile = _choose_c_tile(C, hw_tile, itemsize, block_target, c_tile_cap)
        out_flat = _apply_call(x_flat, gate, hw_tile, c_tile, cap)

    return out_flat.reshape(B, C, H, W)


def channel_attention_ref(x, w1, w2):
    # Pure-JAX reference mirroring the PyTorch forward (NCHW).
    avg = jnp.mean(x, axis=(2, 3), keepdims=True)          # (B, C, 1, 1)
    mx = jnp.max(x, axis=(2, 3), keepdims=True)            # (B, C, 1, 1)

    def mlp(p):
        h = jnp.einsum('rc,bcij->brij', w1, p)
        h = jnp.maximum(h, 0.0)
        return jnp.einsum('cr,brij->bcij', w2, h)

    act = jax.nn.sigmoid(mlp(avg) + mlp(mx))
    return x * act


if __name__ == "__main__":
    key = jax.random.PRNGKey(0)

    def make_case(k, B, C, H, W, ratio=16):
        Cr = max(C // ratio, 1)
        kx, k1, k2 = jax.random.split(k, 3)
        x = jax.random.normal(kx, (B, C, H, W), dtype=jnp.float32)
        w1 = jax.random.normal(k1, (Cr, C), dtype=jnp.float32) * 0.1
        w2 = jax.random.normal(k2, (C, Cr), dtype=jnp.float32) * 0.1
        return x, w1, w2

    cases = [
        (dict(B=2, C=32, H=16, W=16), dict(), "fused_aligned"),
        (dict(B=2, C=32, H=9, W=9), dict(), "fused_ragged_hw"),
        (dict(B=2, C=64, H=16, W=16),
         dict(force_two_pass=True, hw_tile_cap=128, c_tile_cap=32), "two_pass_tiled"),
        (dict(B=1, C=32, H=13, W=13),
         dict(force_two_pass=True, hw_tile_cap=128), "two_pass_ragged_hw"),
    ]

    keys = jax.random.split(key, len(cases))
    for k, (shape, kw, name) in zip(keys, cases):
        x, w1, w2 = make_case(k, **shape)
        out = jax.block_until_ready(channel_attention(x, w1, w2, **kw))
        ref = channel_attention_ref(x, w1, w2)
        assert out.shape == x.shape, f"shape mismatch: {name}"
        assert jnp.allclose(out, ref, atol=1e-4, rtol=1e-4), f"mismatch vs reference: {name}"

    print("KERNEL_OK")
</pallas_src>

<mosaic_0001>
module attributes {stable_mosaic.version = 11 : i64} {
  func.func @_fused_kernel(%arg0: i32, %arg1: memref<2x32x256xf32, #tpu.memory_space<vmem>>, %arg2: memref<2x32xf32, #tpu.memory_space<vmem>>, %arg3: memref<32x2xf32, #tpu.memory_space<vmem>>, %arg4: memref<2x32x256xf32, #tpu.memory_space<vmem>>) attributes {dimension_semantics = [#tpu.dimension_semantics<parallel>], iteration_bounds = array<i64: 1>, scalar_prefetch = 0 : i64, scratch_operands = 0 : i64, tpu.core_type = #tpu.core_type<tc>, window_params = [{transform_indices = @transform_0, window_bounds = array<i64: 2, 32, 256>}, {pipeline_mode = #tpu.pipeline_mode<synchronous>, transform_indices = @transform_1, window_bounds = array<i64: 2, 32>}, {pipeline_mode = #tpu.pipeline_mode<synchronous>, transform_indices = @transform_2, window_bounds = array<i64: 32, 2>}, {transform_indices = @transform_3, window_bounds = array<i64: 2, 32, 256>}]} {
    %c0 = arith.constant 0 : index
    %c0_0 = arith.constant 0 : index
    %0 = vector.load %arg2[%c0, %c0_0] : memref<2x32xf32, #tpu.memory_space<vmem>>, vector<2x32xf32>
    %c0_1 = arith.constant 0 : index
    %c0_2 = arith.constant 0 : index
    %1 = vector.load %arg3[%c0_1, %c0_2] : memref<32x2xf32, #tpu.memory_space<vmem>>, vector<32x2xf32>
    %c0_3 = arith.constant 0 : index
    %c0_4 = arith.constant 0 : index
    %c0_5 = arith.constant 0 : index
    %2 = vector.load %arg1[%c0_3, %c0_4, %c0_5] : memref<2x32x256xf32, #tpu.memory_space<vmem>>, vector<1x32x256xf32>
    %3 = vector.shape_cast %2 : vector<1x32x256xf32> to vector<32x256xf32>
    %cst = arith.constant 1.000000e+00 : f32
    %4 = vector.broadcast %cst : f32 to vector<256x1xf32>
    %cst_6 = arith.constant dense<0.000000e+00> : vector<32x1xf32>
    %5 = tpu.matmul %3, %4, %cst_6 {dimension_numbers = #tpu.dot_dimension_numbers<[1], [0], [0], [1], [0, 0, 1, 1], [], []>, precision = #tpu.contract_precision<fp32>} : vector<32x256xf32>, vector<256x1xf32>, vector<32x1xf32> -> vector<32x1xf32>
    %cst_7 = arith.constant 3.906250e-03 : f32
    %6 = vector.broadcast %cst_7 : f32 to vector<32x1xf32>
    %7 = arith.mulf %5, %6 : vector<32x1xf32>
    %cst_8 = arith.constant dense<0xFF800000> : vector<32xf32>
    %8 = vector.multi_reduction <maximumf>, %3, %cst_8 [1] : vector<32x256xf32> to vector<32xf32>
    %9 = vector.shape_cast %8 : vector<32xf32> to vector<32x1xf32>
    %cst_9 = arith.constant dense<0.000000e+00> : vector<2x1xf32>
    %10 = tpu.matmul %0, %7, %cst_9 {dimension_numbers = #tpu.dot_dimension_numbers<[1], [0], [0], [1], [0, 0, 1, 1], [], []>, precision = #tpu.contract_precision<fp32>} : vector<2x32xf32>, vector<32x1xf32>, vector<2x1xf32> -> vector<2x1xf32>
    %cst_10 = arith.constant 0.000000e+00 : f32
    %11 = vector.broadcast %cst_10 : f32 to vector<2x1xf32>
    %12 = arith.maximumf %10, %11 : vector<2x1xf32>
    %cst_11 = arith.constant dense<0.000000e+00> : vector<2x1xf32>
    %13 = tpu.matmul %0, %9, %cst_11 {dimension_numbers = #tpu.dot_dimension_numbers<[1], [0], [0], [1], [0, 0, 1, 1], [], []>, precision = #tpu.contract_precision<fp32>} : vector<2x32xf32>, vector<32x1xf32>, vector<2x1xf32> -> vector<2x1xf32>
    %cst_12 = arith.constant 0.000000e+00 : f32
    %14 = vector.broadcast %cst_12 : f32 to vector<2x1xf32>
    %15 = arith.maximumf %13, %14 : vector<2x1xf32>
    %cst_13 = arith.constant dense<0.000000e+00> : vector<32x1xf32>
    %16 = tpu.matmul %1, %12, %cst_13 {dimension_numbers = #tpu.dot_dimension_numbers<[1], [0], [0], [1], [0, 0, 1, 1], [], []>, precision = #tpu.contract_precision<fp32>} : vector<32x2xf32>, vector<2x1xf32>, vector<32x1xf32> -> vector<32x1xf32>
    %cst_14 = arith.constant dense<0.000000e+00> : vector<32x1xf32>
    %17 = tpu.matmul %1, %15, %cst_14 {dimension_numbers = #tpu.dot_dimension_numbers<[1], [0], [0], [1], [0, 0, 1, 1], [], []>, precision = #tpu.contract_precision<fp32>} : vector<32x2xf32>, vector<2x1xf32>, vector<32x1xf32> -> vector<32x1xf32>
    %18 = arith.addf %16, %17 : vector<32x1xf32>
    %19 = arith.negf %18 : vector<32x1xf32>
    %20 = math.exp %19 : vector<32x1xf32>
    %cst_15 = arith.constant 1.000000e+00 : f32
    %21 = vector.broadcast %cst_15 : f32 to vector<32x1xf32>
    %22 = arith.addf %21, %20 : vector<32x1xf32>
    %23 = arith.divf %21, %22 : vector<32x1xf32>
    %24 = vector.broadcast %23 : vector<32x1xf32> to vector<32x256xf32>
    %25 = arith.mulf %3, %24 : vector<32x256xf32>
    %c0_16 = arith.constant 0 : index
    %c0_17 = arith.constant 0 : index
    %c0_18 = arith.constant 0 : index
    %26 = vector.load %arg4[%c0_16, %c0_17, %c0_18] : memref<2x32x256xf32, #tpu.memory_space<vmem>>, vector<1x32x256xf32>
    %27 = vector.shape_cast %26 : vector<1x32x256xf32> to vector<32x256xf32>
    %28 = vector.shape_cast %25 : vector<32x256xf32> to vector<1x32x256xf32>
    tpu.vector_store %arg4[%c0_16, %c0_17, %c0_18], %28 {strides = array<i32>} : memref<2x32x256xf32, #tpu.memory_space<vmem>>, vector<1x32x256xf32>,
    %c1 = arith.constant 1 : index
    %c0_19 = arith.constant 0 : index
    %c0_20 = arith.constant 0 : index
    %29 = vector.load %arg1[%c1, %c0_19, %c0_20] : memref<2x32x256xf32, #tpu.memory_space<vmem>>, vector<1x32x256xf32>
    %30 = vector.shape_cast %29 : vector<1x32x256xf32> to vector<32x256xf32>
    %cst_21 = arith.constant 1.000000e+00 : f32
    %31 = vector.broadcast %cst_21 : f32 to vector<256x1xf32>
    %cst_22 = arith.constant dense<0.000000e+00> : vector<32x1xf32>
    %32 = tpu.matmul %30, %31, %cst_22 {dimension_numbers = #tpu.dot_dimension_numbers<[1], [0], [0], [1], [0, 0, 1, 1], [], []>, precision = #tpu.contract_precision<fp32>} : vector<32x256xf32>, vector<256x1xf32>, vector<32x1xf32> -> vector<32x1xf32>
    %cst_23 = arith.constant 3.906250e-03 : f32
    %33 = vector.broadcast %cst_23 : f32 to vector<32x1xf32>
    %34 = arith.mulf %32, %33 : vector<32x1xf32>
    %cst_24 = arith.constant dense<0xFF800000> : vector<32xf32>
    %35 = vector.multi_reduction <maximumf>, %30, %cst_24 [1] : vector<32x256xf32> to vector<32xf32>
    %36 = vector.shape_cast %35 : vector<32xf32> to vector<32x1xf32>
    %cst_25 = arith.constant dense<0.000000e+00> : vector<2x1xf32>
    %37 = tpu.matmul %0, %34, %cst_25 {dimension_numbers = #tpu.dot_dimension_numbers<[1], [0], [0], [1], [0, 0, 1, 1], [], []>, precision = #tpu.contract_precision<fp32>} : vector<2x32xf32>, vector<32x1xf32>, vector<2x1xf32> -> vector<2x1xf32>
    %cst_26 = arith.constant 0.000000e+00 : f32
    %38 = vector.broadcast %cst_26 : f32 to vector<2x1xf32>
    %39 = arith.maximumf %37, %38 : vector<2x1xf32>
    %cst_27 = arith.constant dense<0.000000e+00> : vector<2x1xf32>
    %40 = tpu.matmul %0, %36, %cst_27 {dimension_numbers = #tpu.dot_dimension_numbers<[1], [0], [0], [1], [0, 0, 1, 1], [], []>, precision = #tpu.contract_precision<fp32>} : vector<2x32xf32>, vector<32x1xf32>, vector<2x1xf32> -> vector<2x1xf32>
    %cst_28 = arith.constant 0.000000e+00 : f32
    %41 = vector.broadcast %cst_28 : f32 to vector<2x1xf32>
    %42 = arith.maximumf %40, %41 : vector<2x1xf32>
    %cst_29 = arith.constant dense<0.000000e+00> : vector<32x1xf32>
    %43 = tpu.matmul %1, %39, %cst_29 {dimension_numbers = #tpu.dot_dimension_numbers<[1], [0], [0], [1], [0, 0, 1, 1], [], []>, precision = #tpu.contract_precision<fp32>} : vector<32x2xf32>, vector<2x1xf32>, vector<32x1xf32> -> vector<32x1xf32>
    %cst_30 = arith.constant dense<0.000000e+00> : vector<32x1xf32>
    %44 = tpu.matmul %1, %42, %cst_30 {dimension_numbers = #tpu.dot_dimension_numbers<[1], [0], [0], [1], [0, 0, 1, 1], [], []>, precision = #tpu.contract_precision<fp32>} : vector<32x2xf32>, vector<2x1xf32>, vector<32x1xf32> -> vector<32x1xf32>
    %45 = arith.addf %43, %44 : vector<32x1xf32>
    %46 = arith.negf %45 : vector<32x1xf32>
    %47 = math.exp %46 : vector<32x1xf32>
    %cst_31 = arith.constant 1.000000e+00 : f32
    %48 = vector.broadcast %cst_31 : f32 to vector<32x1xf32>
    %49 = arith.addf %48, %47 : vector<32x1xf32>
    %50 = arith.divf %48, %49 : vector<32x1xf32>
    %51 = vector.broadcast %50 : vector<32x1xf32> to vector<32x256xf32>
    %52 = arith.mulf %30, %51 : vector<32x256xf32>
    %c1_32 = arith.constant 1 : index
    %c0_33 = arith.constant 0 : index
    %c0_34 = arith.constant 0 : index
    %53 = vector.load %arg4[%c1_32, %c0_33, %c0_34] : memref<2x32x256xf32, #tpu.memory_space<vmem>>, vector<1x32x256xf32>
    %54 = vector.shape_cast %53 : vector<1x32x256xf32> to vector<32x256xf32>
    %55 = vector.shape_cast %52 : vector<32x256xf32> to vector<1x32x256xf32>
    tpu.vector_store %arg4[%c1_32, %c0_33, %c0_34], %55 {strides = array<i32>} : memref<2x32x256xf32, #tpu.memory_space<vmem>>, vector<1x32x256xf32>,
    return
  }
  func.func @transform_0(%arg0: i32) -> (i32, i32, i32) {
    %c0_i32 = arith.constant 0 : i32
    %c0_i32_0 = arith.constant 0 : i32
    %c0_i32_1 = arith.constant 0 : i32
    return %arg0, %c0_i32, %c0_i32_0 : i32, i32, i32
  }
  func.func @transform_1(%arg0: i32) -> (i32, i32) {
    %c0_i32 = arith.constant 0 : i32
    %c0_i32_0 = arith.constant 0 : i32
    %c0_i32_1 = arith.constant 0 : i32
    return %c0_i32, %c0_i32_0 : i32, i32
  }
  func.func @transform_2(%arg0: i32) -> (i32, i32) {
    %c0_i32 = arith.constant 0 : i32
    %c0_i32_0 = arith.constant 0 : i32
    %c0_i32_1 = arith.constant 0 : i32
    return %c0_i32, %c0_i32_0 : i32, i32
  }
  func.func @transform_3(%arg0: i32) -> (i32, i32, i32) {
    %c0_i32 = arith.constant 0 : i32
    %c0_i32_0 = arith.constant 0 : i32
    %c0_i32_1 = arith.constant 0 : i32
    return %arg0, %c0_i32, %c0_i32_0 : i32, i32, i32
  }
}

</mosaic_0001>

<llo_original>
// kernel: tpu_custom_call.1
$region0: #{tpu_custom_call.1}
  #allocation0 [shape = 'u32[]', space=smem, size = 0x4, offset = 0x4, fixed_abs, tag = 'smem constant byte address 0x4 - core index']
  #allocation1 [shape = 'u32[144,128]{1,0:T(1,128)}', space=vmem, size = 0x12000, scoped, tag = 'internal scratch']
  %s0 = inlined_call_operand.hbm [shape: f32[2,32,256], index: 0, kind: input, shape index: {}]
  %s1 = inlined_call_operand.vmem [shape: f32[2,32], index: 1, kind: input, shape index: {}]
  %s2 = inlined_call_operand.vmem [shape: f32[32,2], index: 2, kind: input, shape index: {}]
  %s3 = inlined_call_operand.hbm [shape: f32[2,32,256], index: 3, kind: output, shape index: {}]
  %s4 = sld [smem:[#allocation0]]
  $region26: #{tpu_custom_call.1} parent=0
    _
  %s6 = ssub.s32 1, %s4
  %s7 = scalar_select 0, %s6, %s4
  $region1: #{tpu_custom_call.1} parent=0
    #allocation2 [shape = 'u8[65536]{0}', space=vmem, size = 0x10000, scoped, tag = 'input window, operand 0, single buffered']
    #allocation3 [shape = 's32[1]{0}', space=sflag, size = 0x4, scoped, tag = 'scoped memory for tpu_custom_call.1']
    #allocation4 [shape = 's32[1]{0}', space=sflag, size = 0x4, scoped, tag = 'scoped memory for tpu_custom_call.1']
    #allocation5 [shape = 'u8[65536]{0}', space=vmem, size = 0x10000, scoped, tag = 'output window, operand 0, single buffered']
    %8 = vsyncpa [#allocation3], 0
    %9 = vsyncpa [#allocation4], 0
    // Predicated region
    $region2: #{tpu_custom_call.1} parent=1 // pred_check
      _
    $region3: #{tpu_custom_call.1} parent=1 // pred_check_branch
      %11 = sbr.rel (0) target = $region5
    $region4: #{tpu_custom_call.1} parent=1 // pred_region
      %s13 = ssub.s32 2048, 2048
      %14 = vsyncadd [#allocation3], %s13
      %s15 = sshll.u32 [#allocation2], 4
      %s16 = int_to_ptr.vmem [resolvable:$true] %s15
      %21 = dma.hbm_to_vmem [thread:$0]  %s0, 2048, %s16, [#allocation3], 256, 256, 16
    $region5: #{tpu_custom_call.1} parent=1 // pred_fallthru
      _
    // Predicated region
    $region6: #{tpu_custom_call.1} parent=1 // pred_check
      _
    $region7: #{tpu_custom_call.1} parent=1 // pred_check_branch
      %23 = sbr.rel (0) target = $region9
    $region8: #{tpu_custom_call.1} parent=1 // pred_region
      _
    $region9: #{tpu_custom_call.1} parent=1 // pred_fallthru
      _
    // Predicated region
    $region10: #{tpu_custom_call.1} parent=1 // pred_check
      _
    $region11: #{tpu_custom_call.1} parent=1 // pred_check_branch
      %25 = sbr.rel (0) target = $region13
    $region12: #{tpu_custom_call.1} parent=1 // pred_region
      _
    $region13: #{tpu_custom_call.1} parent=1 // pred_fallthru
      _
    // Predicated region
    $region14: #{tpu_custom_call.1} parent=1 // pred_check
      _
    $region15: #{tpu_custom_call.1} parent=1 // pred_check_branch
      %27 = sbr.rel (0) target = $region17
    $region16: #{tpu_custom_call.1} parent=1 // pred_region
      %28 = dma.done [#allocation3], 2048
    $region17: #{tpu_custom_call.1} parent=1 // pred_fallthru
      _
    %v29 = vld [vmem:[%s1] sm:$0x3]
    %v30 = vld [vmem:[%s2] sm:$0xff]
    %v31 = vld [vmem:[%s2 + $0x8] sm:$0xff]
    %v32 = vld [vmem:[%s2 + $0x10] sm:$0xff]
    %v33 = vld [vmem:[%s2 + $0x18] sm:$0xff]
    %v34 = vld [vmem:[#allocation2] sm:$0xff]
    %v35 = vld [vmem:[#allocation2 + $0x8] sm:$0xff]
    %v36 = vld [vmem:[#allocation2 + $0x10] sm:$0xff]
    %v37 = vld [vmem:[#allocation2 + $0x18] sm:$0xff]
    %v38 = vld [vmem:[#allocation2 + $0x20] sm:$0xff]
    %v39 = vld [vmem:[#allocation2 + $0x28] sm:$0xff]
    %v40 = vld [vmem:[#allocation2 + $0x30] sm:$0xff]
    %v41 = vld [vmem:[#allocation2 + $0x38] sm:$0xff]
    %42 = vmatprep.subr.mxu0 0.0
    %43 = vmatpush1.msra.mxu0 1.0
    %44 = vmatprep.subr.mxu0 0.0
    %45 = vmatpush1.msra.mxu0 1.0
    %46 = vmatprep.subr.mxu0 0.0
    %47 = vmatpush1.msra.mxu0 1.0
    %48 = vmatprep.subr.mxu0 0.0
    %49 = vmatpush1.msra.mxu0 1.0
    %50 = vmatprep.subr.mxu0 0.0
    %51 = vmatpush1.msra.mxu0 1.0
    %52 = vmatprep.subr.mxu0 0.0
    %53 = vmatpush1.msra.mxu0 1.0
    %54 = vmatprep.subr.mxu0 0.0
    %55 = vmatpush1.msra.mxu0 1.0
    %56 = vmatprep.subr.mxu0 0.0
    %57 = vmatpush1.msra.mxu0 1.0
    %58 = vmatprep.subr.mxu0 0.0
    %59 = vmatpush1.msra.mxu0 1.0
    %60 = vmatprep.subr.mxu0 0.0
    %61 = vmatpush1.msra.mxu0 1.0
    %62 = vmatprep.subr.mxu0 0.0
    %63 = vmatpush1.msra.mxu0 1.0
    %64 = vmatprep.subr.mxu0 0.0
    %65 = vmatpush1.msra.mxu0 1.0
    %66 = vmatprep.subr.mxu0 0.0
    %67 = vmatpush1.msra.mxu0 1.0
    %68 = vmatprep.subr.mxu0 0.0
    %69 = vmatpush1.msra.mxu0 1.0
    %70 = vmatprep.subr.mxu0 0.0
    %71 = vmatpush1.msra.mxu0 1.0
    %72 = vmatprep.subr.mxu0 0.0
    %73 = vmatpush1.msra.mxu0 1.0
    %74 = vmatprep.subr.mxu0 0.0
    %75 = vmatpush1.msra.mxu0 1.0
    %76 = vmatprep.subr.mxu0 0.0
    %77 = vmatpush1.msra.mxu0 1.0
    %78 = vmatprep.subr.mxu0 0.0
    %79 = vmatpush1.msra.mxu0 1.0
    %80 = vmatprep.subr.mxu0 0.0
    %81 = vmatpush1.msra.mxu0 1.0
    %82 = vmatprep.subr.mxu0 0.0
    %83 = vmatpush1.msra.mxu0 1.0
    %84 = vmatprep.subr.mxu0 0.0
    %85 = vmatpush1.msra.mxu0 1.0
    %86 = vmatprep.subr.mxu0 0.0
    %87 = vmatpush1.msra.mxu0 1.0
    %88 = vmatprep.subr.mxu0 0.0
    %89 = vmatpush1.msra.mxu0 1.0
    %90 = vmatprep.subr.mxu0 0.0
    %91 = vmatpush1.msra.mxu0 1.0
    %92 = vmatprep.subr.mxu0 0.0
    %93 = vmatpush1.msra.mxu0 1.0
    %94 = vmatprep.subr.mxu0 0.0
    %95 = vmatpush1.msra.mxu0 1.0
    %96 = vmatprep.subr.mxu0 0.0
    %97 = vmatpush1.msra.mxu0 1.0
    %98 = vmatprep.subr.mxu0 0.0
    %99 = vmatpush1.msra.mxu0 1.0
    %100 = vmatprep.subr.mxu0 0.0
    %101 = vmatpush1.msra.mxu0 1.0
    %102 = vmatprep.subr.mxu0 0.0
    %103 = vmatpush1.msra.mxu0 1.0
    %104 = vmatprep.subr.mxu0 0.0
    %105 = vmatpush1.msra.mxu0 1.0
    %v106 = vand.u32 %v35, 4294901760
    %v107 = vsub.f32 %v35, %v106
    %v108 = vand.u32 %v107, 4294901760
    %v109 = vsub.f32 %v107, %v108
    %v110 = vand.u32 %v109, 4294901760
    %111 = vmatprep.mubr.f32.mxu0 %v110
    %v112 = vand.u32 %v34, 4294901760
    %v113 = vsub.f32 %v34, %v112
    %v114 = vand.u32 %v113, 4294901760
    %v115 = vsub.f32 %v113, %v114
    %v116 = vand.u32 %v115, 4294901760
    %117 = vmatmul.mubr.f32.gmra.mrb[0].mxu0 %v116
    %v118 = vpop.f32.mrb[0].mxu0
    %v119 = vadd.f32 0.0, %v118
    %v120 = vpop.f32.mrb[0].mxu0
    %v121 = vand.u32 %v37, 4294901760
    %v122 = vsub.f32 %v37, %v121
    %v123 = vand.u32 %v122, 4294901760
    %v124 = vsub.f32 %v122, %v123
    %v125 = vand.u32 %v124, 4294901760
    %126 = vmatprep.mubr.f32.mxu0 %v125
    %v127 = vand.u32 %v36, 4294901760
    %v128 = vsub.f32 %v36, %v127
    %v129 = vand.u32 %v128, 4294901760
    %v130 = vsub.f32 %v128, %v129
    %v131 = vand.u32 %v130, 4294901760
    %132 = vmatmul.mubr.f32.gmra.mrb[0].mxu0 %v131
    %v133 = vpop.f32.mrb[0].mxu0
    %v134 = vadd.f32 0.0, %v133
    %v135 = vpop.f32.mrb[0].mxu0
    %v136 = vand.u32 %v39, 4294901760
    %v137 = vsub.f32 %v39, %v136
    %v138 = vand.u32 %v137, 4294901760
    %v139 = vsub.f32 %v137, %v138
    %v140 = vand.u32 %v139, 4294901760
    %141 = vmatprep.mubr.f32.mxu0 %v140
    %v142 = vand.u32 %v38, 4294901760
    %v143 = vsub.f32 %v38, %v142
    %v144 = vand.u32 %v143, 4294901760
    %v145 = vsub.f32 %v143, %v144
    %v146 = vand.u32 %v145, 4294901760
    %147 = vmatmul.mubr.f32.gmra.mrb[0].mxu0 %v146
    %v148 = vpop.f32.mrb[0].mxu0
    %v149 = vadd.f32 0.0, %v148
    %v150 = vpop.f32.mrb[0].mxu0
    %v151 = vand.u32 %v41, 4294901760
    %v152 = vsub.f32 %v41, %v151
    %v153 = vand.u32 %v152, 4294901760
    %v154 = vsub.f32 %v152, %v153
    %v155 = vand.u32 %v154, 4294901760
    %156 = vmatprep.mubr.f32.mxu0 %v155
    %v157 = vand.u32 %v40, 4294901760
    %v158 = vsub.f32 %v40, %v157
    %v159 = vand.u32 %v158, 4294901760
    %v160 = vsub.f32 %v158, %v159
    %v161 = vand.u32 %v160, 4294901760
    %162 = vmatmul.mubr.f32.gmra.mrb[0].mxu0 %v161
    %v163 = vpop.f32.mrb[0].mxu0
    %v164 = vadd.f32 0.0, %v163
    %v165 = vpop.f32.mrb[0].mxu0
    %166 = vdwg.mxu0
    %167 = vmatprep.subr.mxu0 0.0
    %168 = vmatpush1.msra.mxu0 0.0
    %169 = vmatprep.subr.mxu0 0.0
    %170 = vmatpush1.msra.mxu0 0.0
    %171 = vmatprep.subr.mxu0 0.0
    %172 = vmatpush1.msra.mxu0 0.0
    %173 = vmatprep.subr.mxu0 0.0
    %174 = vmatpush1.msra.mxu0 0.0
    %175 = vmatprep.subr.mxu0 0.0
    %176 = vmatpush1.msra.mxu0 0.0
    %177 = vmatprep.subr.mxu0 0.0
    %178 = vmatpush1.msra.mxu0 0.0
    %179 = vmatprep.subr.mxu0 0.0
    %180 = vmatpush1.msra.mxu0 0.0
    %181 = vmatprep.subr.mxu0 0.0
    %182 = vmatpush1.msra.mxu0 0.0
    %183 = vmatprep.subr.mxu0 0.0
    %184 = vmatpush1.msra.mxu0 0.0
    %185 = vmatprep.subr.mxu0 0.0
    %186 = vmatpush1.msra.mxu0 0.0
    %187 = vmatprep.subr.mxu0 0.0
    %188 = vmatpush1.msra.mxu0 0.0
    %189 = vmatprep.subr.mxu0 0.0
    %190 = vmatpush1.msra.mxu0 0.0
    %191 = vmatprep.subr.mxu0 0.0
    %192 = vmatpush1.msra.mxu0 0.0
    %193 = vmatprep.subr.mxu0 0.0
    %194 = vmatpush1.msra.mxu0 0.0
    %195 = vmatprep.subr.mxu0 0.0
    %196 = vmatpush1.msra.mxu0 0.0
    %197 = vmatprep.subr.mxu0 0.0
    %198 = vmatpush1.msra.mxu0 0.0
    %199 = vmatprep.subr.mxu0 0.0
    %200 = vmatpush1.msra.mxu0 0.0
    %201 = vmatprep.subr.mxu0 0.0
    %202 = vmatpush1.msra.mxu0 0.0
    %203 = vmatprep.subr.mxu0 0.0
    %204 = vmatpush1.msra.mxu0 0.0
    %205 = vmatprep.subr.mxu0 0.0
    %206 = vmatpush1.msra.mxu0 0.0
    %207 = vmatprep.subr.mxu0 0.0
    %208 = vmatpush1.msra.mxu0 0.0
    %209 = vmatprep.subr.mxu0 0.0
    %210 = vmatpush1.msra.mxu0 0.0
    %211 = vmatprep.subr.mxu0 0.0
    %212 = vmatpush1.msra.mxu0 0.0
    %213 = vmatprep.subr.mxu0 0.0
    %214 = vmatpush1.msra.mxu0 0.0
    %215 = vmatprep.subr.mxu0 0.0
    %216 = vmatpush1.msra.mxu0 0.0
    %217 = vmatprep.subr.mxu0 0.0
    %218 = vmatpush1.msra.mxu0 0.0
    %219 = vmatprep.subr.mxu0 0.0
    %220 = vmatpush1.msra.mxu0 0.0
    %221 = vmatprep.subr.mxu0 0.0
    %222 = vmatpush1.msra.mxu0 0.0
    %223 = vmatprep.subr.mxu0 0.0
    %224 = vmatpush1.msra.mxu0 0.0
    %225 = vmatprep.subr.mxu0 0.0
    %226 = vmatpush1.msra.mxu0 0.0
    %227 = vmatprep.subr.mxu0 0.0
    %228 = vmatpush1.msra.mxu0 0.0
    %229 = vmatprep.subr.mxu0 0.0
    %230 = vmatpush1.msra.mxu0 0.0
    %v231 = vand.u32 %v35, 4294901760
    %232 = vmatprep.mubr.f32.mxu0 %v231
    %v233 = vand.u32 %v34, 4294901760
    %234 = vmatmul.mubr.f32.gmra.mrb[0].mxu0 %v233
    %v235 = vpop.f32.mrb[0].mxu0
    %v236 = vadd.f32 %v119, %v235
    %v237 = vpop.f32.mrb[0].mxu0
    %v238 = vand.u32 %v37, 4294901760
    %239 = vmatprep.mubr.f32.mxu0 %v238
    %v240 = vand.u32 %v36, 4294901760
    %241 = vmatmul.mubr.f32.gmra.mrb[0].mxu0 %v240
    %v242 = vpop.f32.mrb[0].mxu0
    %v243 = vadd.f32 %v134, %v242
    %v244 = vpop.f32.mrb[0].mxu0
    %v245 = vand.u32 %v39, 4294901760
    %246 = vmatprep.mubr.f32.mxu0 %v245
    %v247 = vand.u32 %v38, 4294901760
    %248 = vmatmul.mubr.f32.gmra.mrb[0].mxu0 %v247
    %v249 = vpop.f32.mrb[0].mxu0
    %v250 = vadd.f32 %v149, %v249
    %v251 = vpop.f32.mrb[0].mxu0
    %v252 = vand.u32 %v41, 4294901760
    %253 = vmatprep.mubr.f32.mxu0 %v252
    %v254 = vand.u32 %v40, 4294901760
    %255 = vmatmul.mubr.f32.gmra.mrb[0].mxu0 %v254
    %v256 = vpop.f32.mrb[0].mxu0
    %v257 = vadd.f32 %v164, %v256
    %v258 = vpop.f32.mrb[0].mxu0
    %259 = vdwg.mxu0
    %260 = vmatprep.subr.mxu0 0.0
    %261 = vmatpush1.msra.mxu0 0.0
    %262 = vmatprep.subr.mxu0 0.0
    %263 = vmatpush1.msra.mxu0 0.0
    %264 = vmatprep.subr.mxu0 0.0
    %265 = vmatpush1.msra.mxu0 0.0
    %266 = vmatprep.subr.mxu0 0.0
    %267 = vmatpush1.msra.mxu0 0.0
    %268 = vmatprep.subr.mxu0 0.0
    %269 = vmatpush1.msra.mxu0 0.0
    %270 = vmatprep.subr.mxu0 0.0
    %271 = vmatpush1.msra.mxu0 0.0
    %272 = vmatprep.subr.mxu0 0.0
    %273 = vmatpush1.msra.mxu0 0.0
    %274 = vmatprep.subr.mxu0 0.0
    %275 = vmatpush1.msra.mxu0 0.0
    %276 = vmatprep.subr.mxu0 0.0
    %277 = vmatpush1.msra.mxu0 0.0
    %278 = vmatprep.subr.mxu0 0.0
    %279 = vmatpush1.msra.mxu0 0.0
    %280 = vmatprep.subr.mxu0 0.0
    %281 = vmatpush1.msra.mxu0 0.0
    %282 = vmatprep.subr.mxu0 0.0
    %283 = vmatpush1.msra.mxu0 0.0
    %284 = vmatprep.subr.mxu0 0.0
    %285 = vmatpush1.msra.mxu0 0.0
    %286 = vmatprep.subr.mxu0 0.0
    %287 = vmatpush1.msra.mxu0 0.0
    %288 = vmatprep.subr.mxu0 0.0
    %289 = vmatpush1.msra.mxu0 0.0
    %290 = vmatprep.subr.mxu0 0.0
    %291 = vmatpush1.msra.mxu0 0.0
    %292 = vmatprep.subr.mxu0 0.0
    %293 = vmatpush1.msra.mxu0 0.0
    %294 = vmatprep.subr.mxu0 0.0
    %295 = vmatpush1.msra.mxu0 0.0
    %296 = vmatprep.subr.mxu0 0.0
    %297 = vmatpush1.msra.mxu0 0.0
    %298 = vmatprep.subr.mxu0 0.0
    %299 = vmatpush1.msra.mxu0 0.0
    %300 = vmatprep.subr.mxu0 0.0
    %301 = vmatpush1.msra.mxu0 0.0
    %302 = vmatprep.subr.mxu0 0.0
    %303 = vmatpush1.msra.mxu0 0.0
    %304 = vmatprep.subr.mxu0 0.0
    %305 = vmatpush1.msra.mxu0 0.0
    %306 = vmatprep.subr.mxu0 0.0
    %307 = vmatpush1.msra.mxu0 0.0
    %308 = vmatprep.subr.mxu0 0.0
    %309 = vmatpush1.msra.mxu0 0.0
    %310 = vmatprep.subr.mxu0 0.0
    %311 = vmatpush1.msra.mxu0 0.0
    %312 = vmatprep.subr.mxu0 0.0
    %313 = vmatpush1.msra.mxu0 0.0
    %314 = vmatprep.subr.mxu0 0.0
    %315 = vmatpush1.msra.mxu0 0.0
    %316 = vmatprep.subr.mxu0 0.0
    %317 = vmatpush1.msra.mxu0 0.0
    %318 = vmatprep.subr.mxu0 0.0
    %319 = vmatpush1.msra.mxu0 0.0
    %320 = vmatprep.subr.mxu0 0.0
    %321 = vmatpush1.msra.mxu0 0.0
    %322 = vmatprep.subr.mxu0 0.0
    %323 = vmatpush1.msra.mxu0 0.0
    %v324 = vand.u32 %v35, 4294901760
    %v325 = vsub.f32 %v35, %v324
    %326 = vmatprep.mubr.f32.mxu0 %v325
    %v327 = vand.u32 %v34, 4294901760
    %v328 = vsub.f32 %v34, %v327
    %329 = vmatmul.mubr.f32.gmra.mrb[0].mxu0 %v328
    %v330 = vpop.f32.mrb[0].mxu0
    %v331 = vadd.f32 %v236, %v330
    %v332 = vpop.f32.mrb[0].mxu0
    %v333 = vand.u32 %v37, 4294901760
    %v334 = vsub.f32 %v37, %v333
    %335 = vmatprep.mubr.f32.mxu0 %v334
    %v336 = vand.u32 %v36, 4294901760
    %v337 = vsub.f32 %v36, %v336
    %338 = vmatmul.mubr.f32.gmra.mrb[0].mxu0 %v337
    %v339 = vpop.f32.mrb[0].mxu0
    %v340 = vadd.f32 %v243, %v339
    %v341 = vpop.f32.mrb[0].mxu0
    %v342 = vand.u32 %v39, 4294901760
    %v343 = vsub.f32 %v39, %v342
    %344 = vmatprep.mubr.f32.mxu0 %v343
    %v345 = vand.u32 %v38, 4294901760
    %v346 = vsub.f32 %v38, %v345
    %347 = vmatmul.mubr.f32.gmra.mrb[0].mxu0 %v346
    %v348 = vpop.f32.mrb[0].mxu0
    %v349 = vadd.f32 %v250, %v348
    %v350 = vpop.f32.mrb[0].mxu0
    %v351 = vand.u32 %v41, 4294901760
    %v352 = vsub.f32 %v41, %v351
    %353 = vmatprep.mubr.f32.mxu0 %v352
    %v354 = vand.u32 %v40, 4294901760
    %v355 = vsub.f32 %v40, %v354
    %356 = vmatmul.mubr.f32.gmra.mrb[0].mxu0 %v355
    %v357 = vpop.f32.mrb[0].mxu0
    %v358 = vadd.f32 %v257, %v357
    %v359 = vpop.f32.mrb[0].mxu0
    %360 = vdwg.mxu0
    %361 = vmatprep.subr.mxu0 0.0
    %362 = vmatpush1.msra.mxu0 1.0
    %363 = vmatprep.subr.mxu0 0.0
    %364 = vmatpush1.msra.mxu0 1.0
    %365 = vmatprep.subr.mxu0 0.0
    %366 = vmatpush1.msra.mxu0 1.0
    %367 = vmatprep.subr.mxu0 0.0
    %368 = vmatpush1.msra.mxu0 1.0
    %369 = vmatprep.subr.mxu0 0.0
    %370 = vmatpush1.msra.mxu0 1.0
    %371 = vmatprep.subr.mxu0 0.0
    %372 = vmatpush1.msra.mxu0 1.0
    %373 = vmatprep.subr.mxu0 0.0
    %374 = vmatpush1.msra.mxu0 1.0
    %375 = vmatprep.subr.mxu0 0.0
    %376 = vmatpush1.msra.mxu0 1.0
    %377 = vmatprep.subr.mxu0 0.0
    %378 = vmatpush1.msra.mxu0 1.0
    %379 = vmatprep.subr.mxu0 0.0
    %380 = vmatpush1.msra.mxu0 1.0
    %381 = vmatprep.subr.mxu0 0.0
    %382 = vmatpush1.msra.mxu0 1.0
    %383 = vmatprep.subr.mxu0 0.0
    %384 = vmatpush1.msra.mxu0 1.0
    %385 = vmatprep.subr.mxu0 0.0
    %386 = vmatpush1.msra.mxu0 1.0
    %387 = vmatprep.subr.mxu0 0.0
    %388 = vmatpush1.msra.mxu0 1.0
    %389 = vmatprep.subr.mxu0 0.0
    %390 = vmatpush1.msra.mxu0 1.0
    %391 = vmatprep.subr.mxu0 0.0
    %392 = vmatpush1.msra.mxu0 1.0
    %393 = vmatprep.subr.mxu0 0.0
    %394 = vmatpush1.msra.mxu0 1.0
    %395 = vmatprep.subr.mxu0 0.0
    %396 = vmatpush1.msra.mxu0 1.0
    %397 = vmatprep.subr.mxu0 0.0
    %398 = vmatpush1.msra.mxu0 1.0
    %399 = vmatprep.subr.mxu0 0.0
    %400 = vmatpush1.msra.mxu0 1.0
    %401 = vmatprep.subr.mxu0 0.0
    %402 = vmatpush1.msra.mxu0 1.0
    %403 = vmatprep.subr.mxu0 0.0
    %404 = vmatpush1.msra.mxu0 1.0
    %405 = vmatprep.subr.mxu0 0.0
    %406 = vmatpush1.msra.mxu0 1.0
    %407 = vmatprep.subr.mxu0 0.0
    %408 = vmatpush1.msra.mxu0 1.0
    %409 = vmatprep.subr.mxu0 0.0
    %410 = vmatpush1.msra.mxu0 1.0
    %411 = vmatprep.subr.mxu0 0.0
    %412 = vmatpush1.msra.mxu0 1.0
    %413 = vmatprep.subr.mxu0 0.0
    %414 = vmatpush1.msra.mxu0 1.0
    %415 = vmatprep.subr.mxu0 0.0
    %416 = vmatpush1.msra.mxu0 1.0
    %417 = vmatprep.subr.mxu0 0.0
    %418 = vmatpush1.msra.mxu0 1.0
    %419 = vmatprep.subr.mxu0 0.0
    %420 = vmatpush1.msra.mxu0 1.0
    %421 = vmatprep.subr.mxu0 0.0
    %422 = vmatpush1.msra.mxu0 1.0
    %423 = vmatprep.subr.mxu0 0.0
    %424 = vmatpush1.msra.mxu0 1.0
    %v425 = vand.u32 %v35, 4294901760
    %v426 = vsub.f32 %v35, %v425
    %v427 = vand.u32 %v426, 4294901760
    %428 = vmatprep.mubr.f32.mxu0 %v427
    %v429 = vand.u32 %v34, 4294901760
    %v430 = vsub.f32 %v34, %v429
    %v431 = vand.u32 %v430, 4294901760
    %432 = vmatmul.mubr.f32.gmra.mrb[0].mxu0 %v431
    %v433 = vpop.f32.mrb[0].mxu0
    %v434 = vadd.f32 %v331, %v433
    %v435 = vpop.f32.mrb[0].mxu0
    %v436 = vand.u32 %v37, 4294901760
    %v437 = vsub.f32 %v37, %v436
    %v438 = vand.u32 %v437, 4294901760
    %439 = vmatprep.mubr.f32.mxu0 %v438
    %v440 = vand.u32 %v36, 4294901760
    %v441 = vsub.f32 %v36, %v440
    %v442 = vand.u32 %v441, 4294901760
    %443 = vmatmul.mubr.f32.gmra.mrb[0].mxu0 %v442
    %v444 = vpop.f32.mrb[0].mxu0
    %v445 = vadd.f32 %v340, %v444
    %v446 = vpop.f32.mrb[0].mxu0
    %v447 = vand.u32 %v39, 4294901760
    %v448 = vsub.f32 %v39, %v447
    %v449 = vand.u32 %v448, 4294901760
    %450 = vmatprep.mubr.f32.mxu0 %v449
    %v451 = vand.u32 %v38, 4294901760
    %v452 = vsub.f32 %v38, %v451
    %v453 = vand.u32 %v452, 4294901760
    %454 = vmatmul.mubr.f32.gmra.mrb[0].mxu0 %v453
    %v455 = vpop.f32.mrb[0].mxu0
    %v456 = vadd.f32 %v349, %v455
    %v457 = vpop.f32.mrb[0].mxu0
    %v458 = vand.u32 %v41, 4294901760
    %v459 = vsub.f32 %v41, %v458
    %v460 = vand.u32 %v459, 4294901760
    %461 = vmatprep.mubr.f32.mxu0 %v460
    %v462 = vand.u32 %v40, 4294901760
    %v463 = vsub.f32 %v40, %v462
    %v464 = vand.u32 %v463, 4294901760
    %465 = vmatmul.mubr.f32.gmra.mrb[0].mxu0 %v464
    %v466 = vpop.f32.mrb[0].mxu0
    %v467 = vadd.f32 %v358, %v466
    %v468 = vpop.f32.mrb[0].mxu0
    %469 = vdwg.mxu0
    %470 = vmatprep.subr.mxu0 0.0
    %471 = vmatpush1.msra.mxu0 0.0
    %472 = vmatprep.subr.mxu0 0.0
    %473 = vmatpush1.msra.mxu0 0.0
    %474 = vmatprep.subr.mxu0 0.0
    %475 = vmatpush1.msra.mxu0 0.0
    %476 = vmatprep.subr.mxu0 0.0
    %477 = vmatpush1.msra.mxu0 0.0
    %478 = vmatprep.subr.mxu0 0.0
    %479 = vmatpush1.msra.mxu0 0.0
    %480 = vmatprep.subr.mxu0 0.0
    %481 = vmatpush1.msra.mxu0 0.0
    %482 = vmatprep.subr.mxu0 0.0
    %483 = vmatpush1.msra.mxu0 0.0
    %484 = vmatprep.subr.mxu0 0.0
    %485 = vmatpush1.msra.mxu0 0.0
    %486 = vmatprep.subr.mxu0 0.0
    %487 = vmatpush1.msra.mxu0 0.0
    %488 = vmatprep.subr.mxu0 0.0
    %489 = vmatpush1.msra.mxu0 0.0
    %490 = vmatprep.subr.mxu0 0.0
    %491 = vmatpush1.msra.mxu0 0.0
    %492 = vmatprep.subr.mxu0 0.0
    %493 = vmatpush1.msra.mxu0 0.0
    %494 = vmatprep.subr.mxu0 0.0
    %495 = vmatpush1.msra.mxu0 0.0
    %496 = vmatprep.subr.mxu0 0.0
    %497 = vmatpush1.msra.mxu0 0.0
    %498 = vmatprep.subr.mxu0 0.0
    %499 = vmatpush1.msra.mxu0 0.0
    %500 = vmatprep.subr.mxu0 0.0
    %501 = vmatpush1.msra.mxu0 0.0
    %502 = vmatprep.subr.mxu0 0.0
    %503 = vmatpush1.msra.mxu0 0.0
    %504 = vmatprep.subr.mxu0 0.0
    %505 = vmatpush1.msra.mxu0 0.0
    %506 = vmatprep.subr.mxu0 0.0
    %507 = vmatpush1.msra.mxu0 0.0
    %508 = vmatprep.subr.mxu0 0.0
    %509 = vmatpush1.msra.mxu0 0.0
    %510 = vmatprep.subr.mxu0 0.0
    %511 = vmatpush1.msra.mxu0 0.0
    %512 = vmatprep.subr.mxu0 0.0
    %513 = vmatpush1.msra.mxu0 0.0
    %514 = vmatprep.subr.mxu0 0.0
    %515 = vmatpush1.msra.mxu0 0.0
    %516 = vmatprep.subr.mxu0 0.0
    %517 = vmatpush1.msra.mxu0 0.0
    %518 = vmatprep.subr.mxu0 0.0
    %519 = vmatpush1.msra.mxu0 0.0
    %520 = vmatprep.subr.mxu0 0.0
    %521 = vmatpush1.msra.mxu0 0.0
    %522 = vmatprep.subr.mxu0 0.0
    %523 = vmatpush1.msra.mxu0 0.0
    %524 = vmatprep.subr.mxu0 0.0
    %525 = vmatpush1.msra.mxu0 0.0
    %526 = vmatprep.subr.mxu0 0.0
    %527 = vmatpush1.msra.mxu0 0.0
    %528 = vmatprep.subr.mxu0 0.0
    %529 = vmatpush1.msra.mxu0 0.0
    %530 = vmatprep.subr.mxu0 0.0
    %531 = vmatpush1.msra.mxu0 0.0
    %532 = vmatprep.subr.mxu0 0.0
    %533 = vmatpush1.msra.mxu0 0.0
    %v534 = vand.u32 %v35, 4294901760
    %535 = vmatprep.mubr.f32.mxu0 %v534
    %v536 = vand.u32 %v34, 4294901760
    %537 = vmatmul.mubr.f32.gmra.mrb[0].mxu0 %v536
    %v538 = vpop.f32.mrb[0].mxu0
    %v539 = vadd.f32 %v434, %v538
    %v540 = vpop.f32.mrb[0].mxu0
    %v541 = vand.u32 %v37, 4294901760
    %542 = vmatprep.mubr.f32.mxu0 %v541
    %v543 = vand.u32 %v36, 4294901760
    %544 = vmatmul.mubr.f32.gmra.mrb[0].mxu0 %v543
    %v545 = vpop.f32.mrb[0].mxu0
    %v546 = vadd.f32 %v445, %v545
    %v547 = vpop.f32.mrb[0].mxu0
    %v548 = vand.u32 %v39, 4294901760
    %549 = vmatprep.mubr.f32.mxu0 %v548
    %v550 = vand.u32 %v38, 4294901760
    %551 = vmatmul.mubr.f32.gmra.mrb[0].mxu0 %v550
    %v552 = vpop.f32.mrb[0].mxu0
    %v553 = vadd.f32 %v456, %v552
    %v554 = vpop.f32.mrb[0].mxu0
    %v555 = vand.u32 %v41, 4294901760
    %556 = vmatprep.mubr.f32.mxu0 %v555
    %v557 = vand.u32 %v40, 4294901760
    %558 = vmatmul.mubr.f32.gmra.mrb[0].mxu0 %v557
    %v559 = vpop.f32.mrb[0].mxu0
    %v560 = vadd.f32 %v467, %v559
    %v561 = vpop.f32.mrb[0].mxu0
    %562 = vdwg.mxu0
    %563 = vmatprep.subr.mxu0 0.0
    %564 = vmatpush1.msra.mxu0 1.0
    %565 = vmatprep.subr.mxu0 0.0
    %566 = vmatpush1.msra.mxu0 1.0
    %567 = vmatprep.subr.mxu0 0.0
    %568 = vmatpush1.msra.mxu0 1.0
    %569 = vmatprep.subr.mxu0 0.0
    %570 = vmatpush1.msra.mxu0 1.0
    %571 = vmatprep.subr.mxu0 0.0
    %572 = vmatpush1.msra.mxu0 1.0
    %573 = vmatprep.subr.mxu0 0.0
    %574 = vmatpush1.msra.mxu0 1.0
    %575 = vmatprep.subr.mxu0 0.0
    %576 = vmatpush1.msra.mxu0 1.0
    %577 = vmatprep.subr.mxu0 0.0
    %578 = vmatpush1.msra.mxu0 1.0
    %579 = vmatprep.subr.mxu0 0.0
    %580 = vmatpush1.msra.mxu0 1.0
    %581 = vmatprep.subr.mxu0 0.0
    %582 = vmatpush1.msra.mxu0 1.0
    %583 = vmatprep.subr.mxu0 0.0
    %584 = vmatpush1.msra.mxu0 1.0
    %585 = vmatprep.subr.mxu0 0.0
    %586 = vmatpush1.msra.mxu0 1.0
    %587 = vmatprep.subr.mxu0 0.0
    %588 = vmatpush1.msra.mxu0 1.0
    %589 = vmatprep.subr.mxu0 0.0
    %590 = vmatpush1.msra.mxu0 1.0
    %591 = vmatprep.subr.mxu0 0.0
    %592 = vmatpush1.msra.mxu0 1.0
    %593 = vmatprep.subr.mxu0 0.0
    %594 = vmatpush1.msra.mxu0 1.0
    %595 = vmatprep.subr.mxu0 0.0
    %596 = vmatpush1.msra.mxu0 1.0
    %597 = vmatprep.subr.mxu0 0.0
    %598 = vmatpush1.msra.mxu0 1.0
    %599 = vmatprep.subr.mxu0 0.0
    %600 = vmatpush1.msra.mxu0 1.0
    %601 = vmatprep.subr.mxu0 0.0
    %602 = vmatpush1.msra.mxu0 1.0
    %603 = vmatprep.subr.mxu0 0.0
    %604 = vmatpush1.msra.mxu0 1.0
    %605 = vmatprep.subr.mxu0 0.0
    %606 = vmatpush1.msra.mxu0 1.0
    %607 = vmatprep.subr.mxu0 0.0
    %608 = vmatpush1.msra.mxu0 1.0
    %609 = vmatprep.subr.mxu0 0.0
    %610 = vmatpush1.msra.mxu0 1.0
    %611 = vmatprep.subr.mxu0 0.0
    %612 = vmatpush1.msra.mxu0 1.0
    %613 = vmatprep.subr.mxu0 0.0
    %614 = vmatpush1.msra.mxu0 1.0
    %615 = vmatprep.subr.mxu0 0.0
    %616 = vmatpush1.msra.mxu0 1.0
    %617 = vmatprep.subr.mxu0 0.0
    %618 = vmatpush1.msra.mxu0 1.0
    %619 = vmatprep.subr.mxu0 0.0
    %620 = vmatpush1.msra.mxu0 1.0
    %621 = vmatprep.subr.mxu0 0.0
    %622 = vmatpush1.msra.mxu0 1.0
    %623 = vmatprep.subr.mxu0 0.0
    %624 = vmatpush1.msra.mxu0 1.0
    %625 = vmatprep.subr.mxu0 0.0
    %626 = vmatpush1.msra.mxu0 1.0
    %v627 = vand.u32 %v35, 4294901760
    %628 = vmatprep.mubr.f32.mxu0 %v627
    %v629 = vand.u32 %v34, 4294901760
    %630 = vmatmul.mubr.f32.gmra.mrb[0].mxu0 %v629
    %v631 = vpop.f32.mrb[0].mxu0
    %v632 = vadd.f32 %v539, %v631
    %v633 = vpop.f32.mrb[0].mxu0
    %v634 = vand.u32 %v37, 4294901760
    %635 = vmatprep.mubr.f32.mxu0 %v634
    %v636 = vand.u32 %v36, 4294901760
    %637 = vmatmul.mubr.f32.gmra.mrb[0].mxu0 %v636
    %v638 = vpop.f32.mrb[0].mxu0
    %v639 = vadd.f32 %v546, %v638
    %v640 = vpop.f32.mrb[0].mxu0
    %v641 = vand.u32 %v39, 4294901760
    %642 = vmatprep.mubr.f32.mxu0 %v641
    %v643 = vand.u32 %v38, 4294901760
    %644 = vmatmul.mubr.f32.gmra.mrb[0].mxu0 %v643
    %v645 = vpop.f32.mrb[0].mxu0
    %v646 = vadd.f32 %v553, %v645
    %v647 = vpop.f32.mrb[0].mxu0
    %v648 = vand.u32 %v41, 4294901760
    %649 = vmatprep.mubr.f32.mxu0 %v648
    %v650 = vand.u32 %v40, 4294901760
    %651 = vmatmul.mubr.f32.gmra.mrb[0].mxu0 %v650
    %v652 = vpop.f32.mrb[0].mxu0
    %v653 = vadd.f32 %v560, %v652
    %v654 = vpop.f32.mrb[0].mxu0
    %655 = vdwg.mxu0
    %v656 = vmul.f32 %v632, 0.00390625
    %v657 = vmul.f32 %v639, 0.00390625
    %v658 = vmul.f32 %v646, 0.00390625
    %v659 = vmul.f32 %v653, 0.00390625
    %v660 = vmax.f32 %v34, %v35
    %661 = vmax.xlane.f32.xlu0 %v660
    %v662 = vpop.xlane.xlu0 %661
    %v663 = vmax.f32 %v36, %v37
    %664 = vmax.xlane.f32.xlu0 %v663
    %v665 = vpop.xlane.xlu0 %664
    %v666 = vmax.f32 %v38, %v39
    %667 = vmax.xlane.f32.xlu0 %v666
    %v668 = vpop.xlane.xlu0 %667
    %v669 = vmax.f32 %v40, %v41
    %670 = vmax.xlane.f32.xlu0 %v669
    %v671 = vpop.xlane.xlu0 %670
    %vm672 = vcmask 261120
    %v674 = vsel %vm672, %v29, 0
    %676 = vmatprep.subr.mxu0 0.0
    %v677 = vand.u32 %v656, 4294901760
    %678 = vmatpush1.msra.mxu0 %v677
    %679 = vmatprep.subr.mxu0 0.0
    %v680 = vand.u32 %v657, 4294901760
    %681 = vmatpush1.msra.mxu0 %v680
    %682 = vmatprep.subr.mxu0 0.0
    %v683 = vand.u32 %v658, 4294901760
    %684 = vmatpush1.msra.mxu0 %v683
    %685 = vmatprep.subr.mxu0 0.0
    %v686 = vand.u32 %v659, 4294901760
    %687 = vmatpush1.msra.mxu0 %v686
    %688 = vmatprep.subr.mxu0 0.0
    %689 = vmatpush1.msra.mxu0 0.0
    %690 = vmatprep.subr.mxu0 0.0
    %691 = vmatpush1.msra.mxu0 0.0
    %692 = vmatprep.subr.mxu0 0.0
    %693 = vmatpush1.msra.mxu0 0.0
    %694 = vmatprep.subr.mxu0 0.0
    %695 = vmatpush1.msra.mxu0 0.0
    %696 = vmatprep.subr.mxu0 0.0
    %697 = vmatpush1.msra.mxu0 0.0
    %698 = vmatprep.subr.mxu0 0.0
    %699 = vmatpush1.msra.mxu0 0.0
    %700 = vmatprep.subr.mxu0 0.0
    %701 = vmatpush1.msra.mxu0 0.0
    %702 = vmatprep.subr.mxu0 0.0
    %703 = vmatpush1.msra.mxu0 0.0
    %704 = vmatprep.subr.mxu0 0.0
    %705 = vmatpush1.msra.mxu0 0.0
    %706 = vmatprep.subr.mxu0 0.0
    %707 = vmatpush1.msra.mxu0 0.0
    %708 = vmatprep.subr.mxu0 0.0
    %709 = vmatpush1.msra.mxu0 0.0
    %710 = vmatprep.subr.mxu0 0.0
    %711 = vmatpush1.msra.mxu0 0.0
    %712 = vmatprep.subr.mxu0 0.0
    %713 = vmatpush1.msra.mxu0 0.0
    %714 = vmatprep.subr.mxu0 0.0
    %715 = vmatpush1.msra.mxu0 0.0
    %716 = vmatprep.subr.mxu0 0.0
    %717 = vmatpush1.msra.mxu0 0.0
    %718 = vmatprep.subr.mxu0 0.0
    %719 = vmatpush1.msra.mxu0 0.0
    %720 = vmatprep.subr.mxu0 0.0
    %721 = vmatpush1.msra.mxu0 0.0
    %722 = vmatprep.subr.mxu0 0.0
    %723 = vmatpush1.msra.mxu0 0.0
    %724 = vmatprep.subr.mxu0 0.0
    %725 = vmatpush1.msra.mxu0 0.0
    %726 = vmatprep.subr.mxu0 0.0
    %727 = vmatpush1.msra.mxu0 0.0
    %728 = vmatprep.subr.mxu0 0.0
    %729 = vmatpush1.msra.mxu0 0.0
    %730 = vmatprep.subr.mxu0 0.0
    %731 = vmatpush1.msra.mxu0 0.0
    %732 = vmatprep.subr.mxu0 0.0
    %733 = vmatpush1.msra.mxu0 0.0
    %734 = vmatprep.subr.mxu0 0.0
    %735 = vmatpush1.msra.mxu0 0.0
    %736 = vmatprep.subr.mxu0 0.0
    %737 = vmatpush1.msra.mxu0 0.0
    %738 = vmatprep.subr.mxu0 0.0
    %739 = vmatpush1.msra.mxu0 0.0
    %740 = vmatprep.subr.mxu0 0.0
    %741 = vmatpush1.msra.mxu0 0.0
    %742 = vmatprep.subr.mxu0 0.0
    %743 = vmatpush1.msra.mxu0 0.0
    %744 = vmatprep.mubr.f32.mxu0 0.0
    %v745 = vand.u32 %v674, 4294901760
    %v746 = vsub.f32 %v674, %v745
    %v747 = vand.u32 %v746, 4294901760
    %v748 = vsub.f32 %v746, %v747
    %v749 = vand.u32 %v748, 4294901760
    %750 = vmatmul.mubr.f32.gmra.mrb[0].mxu0 %v749
    %v751 = vpop.f32.mrb[0].mxu0
    %v752 = vadd.f32 0.0, %v751
    %v753 = vpop.f32.mrb[0].mxu0
    %754 = vdwg.mxu0
    %755 = vmatprep.subr.mxu0 0.0
    %v756 = vand.u32 %v656, 4294901760
    %v757 = vsub.f32 %v656, %v756
    %v758 = vand.u32 %v757, 4294901760
    %v759 = vsub.f32 %v757, %v758
    %v760 = vand.u32 %v759, 4294901760
    %761 = vmatpush1.msra.mxu0 %v760
    %762 = vmatprep.subr.mxu0 0.0
    %v763 = vand.u32 %v657, 4294901760
    %v764 = vsub.f32 %v657, %v763
    %v765 = vand.u32 %v764, 4294901760
    %v766 = vsub.f32 %v764, %v765
    %v767 = vand.u32 %v766, 4294901760
    %768 = vmatpush1.msra.mxu0 %v767
    %769 = vmatprep.subr.mxu0 0.0
    %v770 = vand.u32 %v658, 4294901760
    %v771 = vsub.f32 %v658, %v770
    %v772 = vand.u32 %v771, 4294901760
    %v773 = vsub.f32 %v771, %v772
    %v774 = vand.u32 %v773, 4294901760
    %775 = vmatpush1.msra.mxu0 %v774
    %776 = vmatprep.subr.mxu0 0.0
    %v777 = vand.u32 %v659, 4294901760
    %v778 = vsub.f32 %v659, %v777
    %v779 = vand.u32 %v778, 4294901760
    %v780 = vsub.f32 %v778, %v779
    %v781 = vand.u32 %v780, 4294901760
    %782 = vmatpush1.msra.mxu0 %v781
    %783 = vmatprep.subr.mxu0 0.0
    %784 = vmatpush1.msra.mxu0 0.0
    %785 = vmatprep.subr.mxu0 0.0
    %786 = vmatpush1.msra.mxu0 0.0
    %787 = vmatprep.subr.mxu0 0.0
    %788 = vmatpush1.msra.mxu0 0.0
    %789 = vmatprep.subr.mxu0 0.0
    %790 = vmatpush1.msra.mxu0 0.0
    %791 = vmatprep.subr.mxu0 0.0
    %792 = vmatpush1.msra.mxu0 0.0
    %793 = vmatprep.subr.mxu0 0.0
    %794 = vmatpush1.msra.mxu0 0.0
    %795 = vmatprep.subr.mxu0 0.0
    %796 = vmatpush1.msra.mxu0 0.0
    %797 = vmatprep.subr.mxu0 0.0
    %798 = vmatpush1.msra.mxu0 0.0
    %799 = vmatprep.subr.mxu0 0.0
    %800 = vmatpush1.msra.mxu0 0.0
    %801 = vmatprep.subr.mxu0 0.0
    %802 = vmatpush1.msra.mxu0 0.0
    %803 = vmatprep.subr.mxu0 0.0
    %804 = vmatpush1.msra.mxu0 0.0
    %805 = vmatprep.subr.mxu0 0.0
    %806 = vmatpush1.msra.mxu0 0.0
    %807 = vmatprep.subr.mxu0 0.0
    %808 = vmatpush1.msra.mxu0 0.0
    %809 = vmatprep.subr.mxu0 0.0
    %810 = vmatpush1.msra.mxu0 0.0
    %811 = vmatprep.subr.mxu0 0.0
    %812 = vmatpush1.msra.mxu0 0.0
    %813 = vmatprep.subr.mxu0 0.0
    %814 = vmatpush1.msra.mxu0 0.0
    %815 = vmatprep.subr.mxu0 0.0
    %816 = vmatpush1.msra.mxu0 0.0
    %817 = vmatprep.subr.mxu0 0.0
    %818 = vmatpush1.msra.mxu0 0.0
    %819 = vmatprep.subr.mxu0 0.0
    %820 = vmatpush1.msra.mxu0 0.0
    %821 = vmatprep.subr.mxu0 0.0
    %822 = vmatpush1.msra.mxu0 0.0
    %823 = vmatprep.subr.mxu0 0.0
    %824 = vmatpush1.msra.mxu0 0.0
    %825 = vmatprep.subr.mxu0 0.0
    %826 = vmatpush1.msra.mxu0 0.0
    %827 = vmatprep.subr.mxu0 0.0
    %828 = vmatpush1.msra.mxu0 0.0
    %829 = vmatprep.subr.mxu0 0.0
    %830 = vmatpush1.msra.mxu0 0.0
    %831 = vmatprep.subr.mxu0 0.0
    %832 = vmatpush1.msra.mxu0 0.0
    %833 = vmatprep.subr.mxu0 0.0
    %834 = vmatpush1.msra.mxu0 0.0
    %835 = vmatprep.subr.mxu0 0.0
    %836 = vmatpush1.msra.mxu0 0.0
    %837 = vmatprep.subr.mxu0 0.0
    %838 = vmatpush1.msra.mxu0 0.0
    %839 = vmatprep.mubr.f32.mxu0 0.0
    %v840 = vand.u32 %v674, 4294901760
    %841 = vmatmul.mubr.f32.gmra.mrb[0].mxu0 %v840
    %v842 = vpop.f32.mrb[0].mxu0
    %v843 = vadd.f32 %v752, %v842
    %v844 = vpop.f32.mrb[0].mxu0
    %845 = vdwg.mxu0
    %846 = vmatprep.subr.mxu0 0.0
    %v847 = vand.u32 %v656, 4294901760
    %v848 = vsub.f32 %v656, %v847
    %849 = vmatpush1.msra.mxu0 %v848
    %850 = vmatprep.subr.mxu0 0.0
    %v851 = vand.u32 %v657, 4294901760
    %v852 = vsub.f32 %v657, %v851
    %853 = vmatpush1.msra.mxu0 %v852
    %854 = vmatprep.subr.mxu0 0.0
    %v855 = vand.u32 %v658, 4294901760
    %v856 = vsub.f32 %v658, %v855
    %857 = vmatpush1.msra.mxu0 %v856
    %858 = vmatprep.subr.mxu0 0.0
    %v859 = vand.u32 %v659, 4294901760
    %v860 = vsub.f32 %v659, %v859
    %861 = vmatpush1.msra.mxu0 %v860
    %862 = vmatprep.subr.mxu0 0.0
    %863 = vmatpush1.msra.mxu0 0.0
    %864 = vmatprep.subr.mxu0 0.0
    %865 = vmatpush1.msra.mxu0 0.0
    %866 = vmatprep.subr.mxu0 0.0
    %867 = vmatpush1.msra.mxu0 0.0
    %868 = vmatprep.subr.mxu0 0.0
    %869 = vmatpush1.msra.mxu0 0.0
    %870 = vmatprep.subr.mxu0 0.0
    %871 = vmatpush1.msra.mxu0 0.0
    %872 = vmatprep.subr.mxu0 0.0
    %873 = vmatpush1.msra.mxu0 0.0
    %874 = vmatprep.subr.mxu0 0.0
    %875 = vmatpush1.msra.mxu0 0.0
    %876 = vmatprep.subr.mxu0 0.0
    %877 = vmatpush1.msra.mxu0 0.0
    %878 = vmatprep.subr.mxu0 0.0
    %879 = vmatpush1.msra.mxu0 0.0
    %880 = vmatprep.subr.mxu0 0.0
    %881 = vmatpush1.msra.mxu0 0.0
    %882 = vmatprep.subr.mxu0 0.0
    %883 = vmatpush1.msra.mxu0 0.0
    %884 = vmatprep.subr.mxu0 0.0
    %885 = vmatpush1.msra.mxu0 0.0
    %886 = vmatprep.subr.mxu0 0.0
    %887 = vmatpush1.msra.mxu0 0.0
    %888 = vmatprep.subr.mxu0 0.0
    %889 = vmatpush1.msra.mxu0 0.0
    %890 = vmatprep.subr.mxu0 0.0
    %891 = vmatpush1.msra.mxu0 0.0
    %892 = vmatprep.subr.mxu0 0.0
    %893 = vmatpush1.msra.mxu0 0.0
    %894 = vmatprep.subr.mxu0 0.0
    %895 = vmatpush1.msra.mxu0 0.0
    %896 = vmatprep.subr.mxu0 0.0
    %897 = vmatpush1.msra.mxu0 0.0
    %898 = vmatprep.subr.mxu0 0.0
    %899 = vmatpush1.msra.mxu0 0.0
    %900 = vmatprep.subr.mxu0 0.0
    %901 = vmatpush1.msra.mxu0 0.0
    %902 = vmatprep.subr.mxu0 0.0
    %903 = vmatpush1.msra.mxu0 0.0
    %904 = vmatprep.subr.mxu0 0.0
    %905 = vmatpush1.msra.mxu0 0.0
    %906 = vmatprep.subr.mxu0 0.0
    %907 = vmatpush1.msra.mxu0 0.0
    %908 = vmatprep.subr.mxu0 0.0
    %909 = vmatpush1.msra.mxu0 0.0
    %910 = vmatprep.subr.mxu0 0.0
    %911 = vmatpush1.msra.mxu0 0.0
    %912 = vmatprep.subr.mxu0 0.0
    %913 = vmatpush1.msra.mxu0 0.0
    %914 = vmatprep.subr.mxu0 0.0
    %915 = vmatpush1.msra.mxu0 0.0
    %916 = vmatprep.subr.mxu0 0.0
    %917 = vmatpush1.msra.mxu0 0.0
    %918 = vmatprep.mubr.f32.mxu0 0.0
    %v919 = vand.u32 %v674, 4294901760
    %v920 = vsub.f32 %v674, %v919
    %921 = vmatmul.mubr.f32.gmra.mrb[0].mxu0 %v920
    %v922 = vpop.f32.mrb[0].mxu0
    %v923 = vadd.f32 %v843, %v922
    %v924 = vpop.f32.mrb[0].mxu0
    %925 = vdwg.mxu0
    %926 = vmatprep.subr.mxu0 0.0
    %v927 = vand.u32 %v656, 4294901760
    %928 = vmatpush1.msra.mxu0 %v927
    %929 = vmatprep.subr.mxu0 0.0
    %v930 = vand.u32 %v657, 4294901760
    %931 = vmatpush1.msra.mxu0 %v930
    %932 = vmatprep.subr.mxu0 0.0
    %v933 = vand.u32 %v658, 4294901760
    %934 = vmatpush1.msra.mxu0 %v933
    %935 = vmatprep.subr.mxu0 0.0
    %v936 = vand.u32 %v659, 4294901760
    %937 = vmatpush1.msra.mxu0 %v936
    %938 = vmatprep.subr.mxu0 0.0
    %939 = vmatpush1.msra.mxu0 0.0
    %940 = vmatprep.subr.mxu0 0.0
    %941 = vmatpush1.msra.mxu0 0.0
    %942 = vmatprep.subr.mxu0 0.0
    %943 = vmatpush1.msra.mxu0 0.0
    %944 = vmatprep.subr.mxu0 0.0
    %945 = vmatpush1.msra.mxu0 0.0
    %946 = vmatprep.subr.mxu0 0.0
    %947 = vmatpush1.msra.mxu0 0.0
    %948 = vmatprep.subr.mxu0 0.0
    %949 = vmatpush1.msra.mxu0 0.0
    %950 = vmatprep.subr.mxu0 0.0
    %951 = vmatpush1.msra.mxu0 0.0
    %952 = vmatprep.subr.mxu0 0.0
    %953 = vmatpush1.msra.mxu0 0.0
    %954 = vmatprep.subr.mxu0 0.0
    %955 = vmatpush1.msra.mxu0 0.0
    %956 = vmatprep.subr.mxu0 0.0
    %957 = vmatpush1.msra.mxu0 0.0
    %958 = vmatprep.subr.mxu0 0.0
    %959 = vmatpush1.msra.mxu0 0.0
    %960 = vmatprep.subr.mxu0 0.0
    %961 = vmatpush1.msra.mxu0 0.0
    %962 = vmatprep.subr.mxu0 0.0
    %963 = vmatpush1.msra.mxu0 0.0
    %964 = vmatprep.subr.mxu0 0.0
    %965 = vmatpush1.msra.mxu0 0.0
    %966 = vmatprep.subr.mxu0 0.0
    %967 = vmatpush1.msra.mxu0 0.0
    %968 = vmatprep.subr.mxu0 0.0
    %969 = vmatpush1.msra.mxu0 0.0
    %970 = vmatprep.subr.mxu0 0.0
    %971 = vmatpush1.msra.mxu0 0.0
    %972 = vmatprep.subr.mxu0 0.0
    %973 = vmatpush1.msra.mxu0 0.0
    %974 = vmatprep.subr.mxu0 0.0
    %975 = vmatpush1.msra.mxu0 0.0
    %976 = vmatprep.subr.mxu0 0.0
    %977 = vmatpush1.msra.mxu0 0.0
    %978 = vmatprep.subr.mxu0 0.0
    %979 = vmatpush1.msra.mxu0 0.0
    %980 = vmatprep.subr.mxu0 0.0
    %981 = vmatpush1.msra.mxu0 0.0
    %982 = vmatprep.subr.mxu0 0.0
    %983 = vmatpush1.msra.mxu0 0.0
    %984 = vmatprep.subr.mxu0 0.0
    %985 = vmatpush1.msra.mxu0 0.0
    %986 = vmatprep.subr.mxu0 0.0
    %987 = vmatpush1.msra.mxu0 0.0
    %988 = vmatprep.subr.mxu0 0.0
    %989 = vmatpush1.msra.mxu0 0.0
    %990 = vmatprep.subr.mxu0 0.0
    %991 = vmatpush1.msra.mxu0 0.0
    %992 = vmatprep.subr.mxu0 0.0
    %993 = vmatpush1.msra.mxu0 0.0
    %994 = vmatprep.mubr.f32.mxu0 0.0
    %v995 = vand.u32 %v674, 4294901760
    %v996 = vsub.f32 %v674, %v995
    %v997 = vand.u32 %v996, 4294901760
    %998 = vmatmul.mubr.f32.gmra.mrb[0].mxu0 %v997
    %v999 = vpop.f32.mrb[0].mxu0
    %v1000 = vadd.f32 %v923, %v999
    %v1001 = vpop.f32.mrb[0].mxu0
    %1002 = vdwg.mxu0
    %1003 = vmatprep.subr.mxu0 0.0
    %v1004 = vand.u32 %v656, 4294901760
    %v1005 = vsub.f32 %v656, %v1004
    %v1006 = vand.u32 %v1005, 4294901760
    %1007 = vmatpush1.msra.mxu0 %v1006
    %1008 = vmatprep.subr.mxu0 0.0
    %v1009 = vand.u32 %v657, 4294901760
    %v1010 = vsub.f32 %v657, %v1009
    %v1011 = vand.u32 %v1010, 4294901760
    %1012 = vmatpush1.msra.mxu0 %v1011
    %1013 = vmatprep.subr.mxu0 0.0
    %v1014 = vand.u32 %v658, 4294901760
    %v1015 = vsub.f32 %v658, %v1014
    %v1016 = vand.u32 %v1015, 4294901760
    %1017 = vmatpush1.msra.mxu0 %v1016
    %1018 = vmatprep.subr.mxu0 0.0
    %v1019 = vand.u32 %v659, 4294901760
    %v1020 = vsub.f32 %v659, %v1019
    %v1021 = vand.u32 %v1020, 4294901760
    %1022 = vmatpush1.msra.mxu0 %v1021
    %1023 = vmatprep.subr.mxu0 0.0
    %1024 = vmatpush1.msra.mxu0 0.0
    %1025 = vmatprep.subr.mxu0 0.0
    %1026 = vmatpush1.msra.mxu0 0.0
    %1027 = vmatprep.subr.mxu0 0.0
    %1028 = vmatpush1.msra.mxu0 0.0
    %1029 = vmatprep.subr.mxu0 0.0
    %1030 = vmatpush1.msra.mxu0 0.0
    %1031 = vmatprep.subr.mxu0 0.0
    %1032 = vmatpush1.msra.mxu0 0.0
    %1033 = vmatprep.subr.mxu0 0.0
    %1034 = vmatpush1.msra.mxu0 0.0
    %1035 = vmatprep.subr.mxu0 0.0
    %1036 = vmatpush1.msra.mxu0 0.0
    %1037 = vmatprep.subr.mxu0 0.0
    %1038 = vmatpush1.msra.mxu0 0.0
    %1039 = vmatprep.subr.mxu0 0.0
    %1040 = vmatpush1.msra.mxu0 0.0
    %1041 = vmatprep.subr.mxu0 0.0
    %1042 = vmatpush1.msra.mxu0 0.0
    %1043 = vmatprep.subr.mxu0 0.0
    %1044 = vmatpush1.msra.mxu0 0.0
    %1045 = vmatprep.subr.mxu0 0.0
    %1046 = vmatpush1.msra.mxu0 0.0
    %1047 = vmatprep.subr.mxu0 0.0
    %1048 = vmatpush1.msra.mxu0 0.0
    %1049 = vmatprep.subr.mxu0 0.0
    %1050 = vmatpush1.msra.mxu0 0.0
    %1051 = vmatprep.subr.mxu0 0.0
    %1052 = vmatpush1.msra.mxu0 0.0
    %1053 = vmatprep.subr.mxu0 0.0
    %1054 = vmatpush1.msra.mxu0 0.0
    %1055 = vmatprep.subr.mxu0 0.0
    %1056 = vmatpush1.msra.mxu0 0.0
    %1057 = vmatprep.subr.mxu0 0.0
    %1058 = vmatpush1.msra.mxu0 0.0
    %1059 = vmatprep.subr.mxu0 0.0
    %1060 = vmatpush1.msra.mxu0 0.0
    %1061 = vmatprep.subr.mxu0 0.0
    %1062 = vmatpush1.msra.mxu0 0.0
    %1063 = vmatprep.subr.mxu0 0.0
    %1064 = vmatpush1.msra.mxu0 0.0
    %1065 = vmatprep.subr.mxu0 0.0
    %1066 = vmatpush1.msra.mxu0 0.0
    %1067 = vmatprep.subr.mxu0 0.0
    %1068 = vmatpush1.msra.mxu0 0.0
    %1069 = vmatprep.subr.mxu0 0.0
    %1070 = vmatpush1.msra.mxu0 0.0
    %1071 = vmatprep.subr.mxu0 0.0
    %1072 = vmatpush1.msra.mxu0 0.0
    %1073 = vmatprep.subr.mxu0 0.0
    %1074 = vmatpush1.msra.mxu0 0.0
    %1075 = vmatprep.subr.mxu0 0.0
    %1076 = vmatpush1.msra.mxu0 0.0
    %1077 = vmatprep.subr.mxu0 0.0
    %1078 = vmatpush1.msra.mxu0 0.0
    %1079 = vmatprep.mubr.f32.mxu0 0.0
    %v1080 = vand.u32 %v674, 4294901760
    %1081 = vmatmul.mubr.f32.gmra.mrb[0].mxu0 %v1080
    %v1082 = vpop.f32.mrb[0].mxu0
    %v1083 = vadd.f32 %v1000, %v1082
    %v1084 = vpop.f32.mrb[0].mxu0
    %1085 = vdwg.mxu0
    %1086 = vmatprep.subr.mxu0 0.0
    %v1087 = vand.u32 %v656, 4294901760
    %1088 = vmatpush1.msra.mxu0 %v1087
    %1089 = vmatprep.subr.mxu0 0.0
    %v1090 = vand.u32 %v657, 4294901760
    %1091 = vmatpush1.msra.mxu0 %v1090
    %1092 = vmatprep.subr.mxu0 0.0
    %v1093 = vand.u32 %v658, 4294901760
    %1094 = vmatpush1.msra.mxu0 %v1093
    %1095 = vmatprep.subr.mxu0 0.0
    %v1096 = vand.u32 %v659, 4294901760
    %1097 = vmatpush1.msra.mxu0 %v1096
    %1098 = vmatprep.subr.mxu0 0.0
    %1099 = vmatpush1.msra.mxu0 0.0
    %1100 = vmatprep.subr.mxu0 0.0
    %1101 = vmatpush1.msra.mxu0 0.0
    %1102 = vmatprep.subr.mxu0 0.0
    %1103 = vmatpush1.msra.mxu0 0.0
    %1104 = vmatprep.subr.mxu0 0.0
    %1105 = vmatpush1.msra.mxu0 0.0
    %1106 = vmatprep.subr.mxu0 0.0
    %1107 = vmatpush1.msra.mxu0 0.0
    %1108 = vmatprep.subr.mxu0 0.0
    %1109 = vmatpush1.msra.mxu0 0.0
    %1110 = vmatprep.subr.mxu0 0.0
    %1111 = vmatpush1.msra.mxu0 0.0
    %1112 = vmatprep.subr.mxu0 0.0
    %1113 = vmatpush1.msra.mxu0 0.0
    %1114 = vmatprep.subr.mxu0 0.0
    %1115 = vmatpush1.msra.mxu0 0.0
    %1116 = vmatprep.subr.mxu0 0.0
    %1117 = vmatpush1.msra.mxu0 0.0
    %1118 = vmatprep.subr.mxu0 0.0
    %1119 = vmatpush1.msra.mxu0 0.0
    %1120 = vmatprep.subr.mxu0 0.0
    %1121 = vmatpush1.msra.mxu0 0.0
    %1122 = vmatprep.subr.mxu0 0.0
    %1123 = vmatpush1.msra.mxu0 0.0
    %1124 = vmatprep.subr.mxu0 0.0
    %1125 = vmatpush1.msra.mxu0 0.0
    %1126 = vmatprep.subr.mxu0 0.0
    %1127 = vmatpush1.msra.mxu0 0.0
    %1128 = vmatprep.subr.mxu0 0.0
    %1129 = vmatpush1.msra.mxu0 0.0
    %1130 = vmatprep.subr.mxu0 0.0
    %1131 = vmatpush1.msra.mxu0 0.0
    %1132 = vmatprep.subr.mxu0 0.0
    %1133 = vmatpush1.msra.mxu0 0.0
    %1134 = vmatprep.subr.mxu0 0.0
    %1135 = vmatpush1.msra.mxu0 0.0
    %1136 = vmatprep.subr.mxu0 0.0
    %1137 = vmatpush1.msra.mxu0 0.0
    %1138 = vmatprep.subr.mxu0 0.0
    %1139 = vmatpush1.msra.mxu0 0.0
    %1140 = vmatprep.subr.mxu0 0.0
    %1141 = vmatpush1.msra.mxu0 0.0
    %1142 = vmatprep.subr.mxu0 0.0
    %1143 = vmatpush1.msra.mxu0 0.0
    %1144 = vmatprep.subr.mxu0 0.0
    %1145 = vmatpush1.msra.mxu0 0.0
    %1146 = vmatprep.subr.mxu0 0.0
    %1147 = vmatpush1.msra.mxu0 0.0
    %1148 = vmatprep.subr.mxu0 0.0
    %1149 = vmatpush1.msra.mxu0 0.0
    %1150 = vmatprep.subr.mxu0 0.0
    %1151 = vmatpush1.msra.mxu0 0.0
    %1152 = vmatprep.subr.mxu0 0.0
    %1153 = vmatpush1.msra.mxu0 0.0
    %1154 = vmatprep.mubr.f32.mxu0 0.0
    %v1155 = vand.u32 %v674, 4294901760
    %1156 = vmatmul.mubr.f32.gmra.mrb[0].mxu0 %v1155
    %v1157 = vpop.f32.mrb[0].mxu0
    %v1158 = vadd.f32 %v1083, %v1157
    %v1159 = vpop.f32.mrb[0].mxu0
    %1160 = vdwg.mxu0
    %v1161 = vmax.f32 %v1158, 0.0
    %1162 = vmatprep.subr.mxu0 0.0
    %v1163 = vand.u32 %v662, 4294901760
    %1164 = vmatpush1.msra.mxu0 %v1163
    %1165 = vmatprep.subr.mxu0 0.0
    %v1166 = vand.u32 %v665, 4294901760
    %1167 = vmatpush1.msra.mxu0 %v1166
    %1168 = vmatprep.subr.mxu0 0.0
    %v1169 = vand.u32 %v668, 4294901760
    %1170 = vmatpush1.msra.mxu0 %v1169
    %1171 = vmatprep.subr.mxu0 0.0
    %v1172 = vand.u32 %v671, 4294901760
    %1173 = vmatpush1.msra.mxu0 %v1172
    %1174 = vmatprep.subr.mxu0 0.0
    %1175 = vmatpush1.msra.mxu0 0.0
    %1176 = vmatprep.subr.mxu0 0.0
    %1177 = vmatpush1.msra.mxu0 0.0
    %1178 = vmatprep.subr.mxu0 0.0
    %1179 = vmatpush1.msra.mxu0 0.0
    %1180 = vmatprep.subr.mxu0 0.0
    %1181 = vmatpush1.msra.mxu0 0.0
    %1182 = vmatprep.subr.mxu0 0.0
    %1183 = vmatpush1.msra.mxu0 0.0
    %1184 = vmatprep.subr.mxu0 0.0
    %1185 = vmatpush1.msra.mxu0 0.0
    %1186 = vmatprep.subr.mxu0 0.0
    %1187 = vmatpush1.msra.mxu0 0.0
    %1188 = vmatprep.subr.mxu0 0.0
    %1189 = vmatpush1.msra.mxu0 0.0
    %1190 = vmatprep.subr.mxu0 0.0
    %1191 = vmatpush1.msra.mxu0 0.0
    %1192 = vmatprep.subr.mxu0 0.0
    %1193 = vmatpush1.msra.mxu0 0.0
    %1194 = vmatprep.subr.mxu0 0.0
    %1195 = vmatpush1.msra.mxu0 0.0
    %1196 = vmatprep.subr.mxu0 0.0
    %1197 = vmatpush1.msra.mxu0 0.0
    %1198 = vmatprep.subr.mxu0 0.0
    %1199 = vmatpush1.msra.mxu0 0.0
    %1200 = vmatprep.subr.mxu0 0.0
    %1201 = vmatpush1.msra.mxu0 0.0
    %1202 = vmatprep.subr.mxu0 0.0
    %1203 = vmatpush1.msra.mxu0 0.0
    %1204 = vmatprep.subr.mxu0 0.0
    %1205 = vmatpush1.msra.mxu0 0.0
    %1206 = vmatprep.subr.mxu0 0.0
    %1207 = vmatpush1.msra.mxu0 0.0
    %1208 = vmatprep.subr.mxu0 0.0
    %1209 = vmatpush1.msra.mxu0 0.0
    %1210 = vmatprep.subr.mxu0 0.0
    %1211 = vmatpush1.msra.mxu0 0.0
    %1212 = vmatprep.subr.mxu0 0.0
    %1213 = vmatpush1.msra.mxu0 0.0
    %1214 = vmatprep.subr.mxu0 0.0
    %1215 = vmatpush1.msra.mxu0 0.0
    %1216 = vmatprep.subr.mxu0 0.0
    %1217 = vmatpush1.msra.mxu0 0.0
    %1218 = vmatprep.subr.mxu0 0.0
    %1219 = vmatpush1.msra.mxu0 0.0
    %1220 = vmatprep.subr.mxu0 0.0
    %1221 = vmatpush1.msra.mxu0 0.0
    %1222 = vmatprep.subr.mxu0 0.0
    %1223 = vmatpush1.msra.mxu0 0.0
    %1224 = vmatprep.subr.mxu0 0.0
    %1225 = vmatpush1.msra.mxu0 0.0
    %1226 = vmatprep.subr.mxu0 0.0
    %1227 = vmatpush1.msra.mxu0 0.0
    %1228 = vmatprep.subr.mxu0 0.0
    %1229 = vmatpush1.msra.mxu0 0.0
    %1230 = vmatprep.mubr.f32.mxu0 0.0
    %v1231 = vand.u32 %v674, 4294901760
    %v1232 = vsub.f32 %v674, %v1231
    %v1233 = vand.u32 %v1232, 4294901760
    %v1234 = vsub.f32 %v1232, %v1233
    %v1235 = vand.u32 %v1234, 4294901760
    %1236 = vmatmul.mubr.f32.gmra.mrb[0].mxu0 %v1235
    %v1237 = vpop.f32.mrb[0].mxu0
    %v1238 = vadd.f32 0.0, %v1237
    %v1239 = vpop.f32.mrb[0].mxu0
    %1240 = vdwg.mxu0
    %1241 = vmatprep.subr.mxu0 0.0
    %v1242 = vand.u32 %v662, 4294901760
    %v1243 = vsub.f32 %v662, %v1242
    %v1244 = vand.u32 %v1243, 4294901760
    %v1245 = vsub.f32 %v1243, %v1244
    %v1246 = vand.u32 %v1245, 4294901760
    %1247 = vmatpush1.msra.mxu0 %v1246
    %1248 = vmatprep.subr.mxu0 0.0
    %v1249 = vand.u32 %v665, 4294901760
    %v1250 = vsub.f32 %v665, %v1249
    %v1251 = vand.u32 %v1250, 4294901760
    %v1252 = vsub.f32 %v1250, %v1251
    %v1253 = vand.u32 %v1252, 4294901760
    %1254 = vmatpush1.msra.mxu0 %v1253
    %1255 = vmatprep.subr.mxu0 0.0
    %v1256 = vand.u32 %v668, 4294901760
    %v1257 = vsub.f32 %v668, %v1256
    %v1258 = vand.u32 %v1257, 4294901760
    %v1259 = vsub.f32 %v1257, %v1258
    %v1260 = vand.u32 %v1259, 4294901760
    %1261 = vmatpush1.msra.mxu0 %v1260
    %1262 = vmatprep.subr.mxu0 0.0
    %v1263 = vand.u32 %v671, 4294901760
    %v1264 = vsub.f32 %v671, %v1263
    %v1265 = vand.u32 %v1264, 4294901760
    %v1266 = vsub.f32 %v1264, %v1265
    %v1267 = vand.u32 %v1266, 4294901760
    %1268 = vmatpush1.msra.mxu0 %v1267
    %1269 = vmatprep.subr.mxu0 0.0
    %1270 = vmatpush1.msra.mxu0 0.0
    %1271 = vmatprep.subr.mxu0 0.0
    %1272 = vmatpush1.msra.mxu0 0.0
    %1273 = vmatprep.subr.mxu0 0.0
    %1274 = vmatpush1.msra.mxu0 0.0
    %1275 = vmatprep.subr.mxu0 0.0
    %1276 = vmatpush1.msra.mxu0 0.0
    %1277 = vmatprep.subr.mxu0 0.0
    %1278 = vmatpush1.msra.mxu0 0.0
    %1279 = vmatprep.subr.mxu0 0.0
    %1280 = vmatpush1.msra.mxu0 0.0
    %1281 = vmatprep.subr.mxu0 0.0
    %1282 = vmatpush1.msra.mxu0 0.0
    %1283 = vmatprep.subr.mxu0 0.0
    %1284 = vmatpush1.msra.mxu0 0.0
    %1285 = vmatprep.subr.mxu0 0.0
    %1286 = vmatpush1.msra.mxu0 0.0
    %1287 = vmatprep.subr.mxu0 0.0
    %1288 = vmatpush1.msra.mxu0 0.0
    %1289 = vmatprep.subr.mxu0 0.0
    %1290 = vmatpush1.msra.mxu0 0.0
    %1291 = vmatprep.subr.mxu0 0.0
    %1292 = vmatpush1.msra.mxu0 0.0
    %1293 = vmatprep.subr.mxu0 0.0
    %1294 = vmatpush1.msra.mxu0 0.0
    %1295 = vmatprep.subr.mxu0 0.0
    %1296 = vmatpush1.msra.mxu0 0.0
    %1297 = vmatprep.subr.mxu0 0.0
    %1298 = vmatpush1.msra.mxu0 0.0
    %1299 = vmatprep.subr.mxu0 0.0
    %1300 = vmatpush1.msra.mxu0 0.0
    %1301 = vmatprep.subr.mxu0 0.0
    %1302 = vmatpush1.msra.mxu0 0.0
    %1303 = vmatprep.subr.mxu0 0.0
    %1304 = vmatpush1.msra.mxu0 0.0
    %1305 = vmatprep.subr.mxu0 0.0
    %1306 = vmatpush1.msra.mxu0 0.0
    %1307 = vmatprep.subr.mxu0 0.0
    %1308 = vmatpush1.msra.mxu0 0.0
    %1309 = vmatprep.subr.mxu0 0.0
    %1310 = vmatpush1.msra.mxu0 0.0
    %1311 = vmatprep.subr.mxu0 0.0
    %1312 = vmatpush1.msra.mxu0 0.0
    %1313 = vmatprep.subr.mxu0 0.0
    %1314 = vmatpush1.msra.mxu0 0.0
    %1315 = vmatprep.subr.mxu0 0.0
    %1316 = vmatpush1.msra.mxu0 0.0
    %1317 = vmatprep.subr.mxu0 0.0
    %1318 = vmatpush1.msra.mxu0 0.0
    %1319 = vmatprep.subr.mxu0 0.0
    %1320 = vmatpush1.msra.mxu0 0.0
    %1321 = vmatprep.subr.mxu0 0.0
    %1322 = vmatpush1.msra.mxu0 0.0
    %1323 = vmatprep.subr.mxu0 0.0
    %1324 = vmatpush1.msra.mxu0 0.0
    %1325 = vmatprep.mubr.f32.mxu0 0.0
    %v1326 = vand.u32 %v674, 4294901760
    %1327 = vmatmul.mubr.f32.gmra.mrb[0].mxu0 %v1326
    %v1328 = vpop.f32.mrb[0].mxu0
    %v1329 = vadd.f32 %v1238, %v1328
    %v1330 = vpop.f32.mrb[0].mxu0
    %1331 = vdwg.mxu0
    %1332 = vmatprep.subr.mxu0 0.0
    %v1333 = vand.u32 %v662, 4294901760
    %v1334 = vsub.f32 %v662, %v1333
    %1335 = vmatpush1.msra.mxu0 %v1334
    %1336 = vmatprep.subr.mxu0 0.0
    %v1337 = vand.u32 %v665, 4294901760
    %v1338 = vsub.f32 %v665, %v1337
    %1339 = vmatpush1.msra.mxu0 %v1338
    %1340 = vmatprep.subr.mxu0 0.0
    %v1341 = vand.u32 %v668, 4294901760
    %v1342 = vsub.f32 %v668, %v1341
    %1343 = vmatpush1.msra.mxu0 %v1342
    %1344 = vmatprep.subr.mxu0 0.0
    %v1345 = vand.u32 %v671, 4294901760
    %v1346 = vsub.f32 %v671, %v1345
    %1347 = vmatpush1.msra.mxu0 %v1346
    %1348 = vmatprep.subr.mxu0 0.0
    %1349 = vmatpush1.msra.mxu0 0.0
    %1350 = vmatprep.subr.mxu0 0.0
    %1351 = vmatpush1.msra.mxu0 0.0
    %1352 = vmatprep.subr.mxu0 0.0
    %1353 = vmatpush1.msra.mxu0 0.0
    %1354 = vmatprep.subr.mxu0 0.0
    %1355 = vmatpush1.msra.mxu0 0.0
    %1356 = vmatprep.subr.mxu0 0.0
    %1357 = vmatpush1.msra.mxu0 0.0
    %1358 = vmatprep.subr.mxu0 0.0
    %1359 = vmatpush1.msra.mxu0 0.0
    %1360 = vmatprep.subr.mxu0 0.0
    %1361 = vmatpush1.msra.mxu0 0.0
    %1362 = vmatprep.subr.mxu0 0.0
    %1363 = vmatpush1.msra.mxu0 0.0
    %1364 = vmatprep.subr.mxu0 0.0
    %1365 = vmatpush1.msra.mxu0 0.0
    %1366 = vmatprep.subr.mxu0 0.0
    %1367 = vmatpush1.msra.mxu0 0.0
    %1368 = vmatprep.subr.mxu0 0.0
    %1369 = vmatpush1.msra.mxu0 0.0
    %1370 = vmatprep.subr.mxu0 0.0
    %1371 = vmatpush1.msra.mxu0 0.0
    %1372 = vmatprep.subr.mxu0 0.0
    %1373 = vmatpush1.msra.mxu0 0.0
    %1374 = vmatprep.subr.mxu0 0.0
    %1375 = vmatpush1.msra.mxu0 0.0
    %1376 = vmatprep.subr.mxu0 0.0
    %1377 = vmatpush1.msra.mxu0 0.0
    %1378 = vmatprep.subr.mxu0 0.0
    %1379 = vmatpush1.msra.mxu0 0.0
    %1380 = vmatprep.subr.mxu0 0.0
    %1381 = vmatpush1.msra.mxu0 0.0
    %1382 = vmatprep.subr.mxu0 0.0
    %1383 = vmatpush1.msra.mxu0 0.0
    %1384 = vmatprep.subr.mxu0 0.0
    %1385 = vmatpush1.msra.mxu0 0.0
    %1386 = vmatprep.subr.mxu0 0.0
    %1387 = vmatpush1.msra.mxu0 0.0
    %1388 = vmatprep.subr.mxu0 0.0
    %1389 = vmatpush1.msra.mxu0 0.0
    %1390 = vmatprep.subr.mxu0 0.0
    %1391 = vmatpush1.msra.mxu0 0.0
    %1392 = vmatprep.subr.mxu0 0.0
    %1393 = vmatpush1.msra.mxu0 0.0
    %1394 = vmatprep.subr.mxu0 0.0
    %1395 = vmatpush1.msra.mxu0 0.0
    %1396 = vmatprep.subr.mxu0 0.0
    %1397 = vmatpush1.msra.mxu0 0.0
    %1398 = vmatprep.subr.mxu0 0.0
    %1399 = vmatpush1.msra.mxu0 0.0
    %1400 = vmatprep.subr.mxu0 0.0
    %1401 = vmatpush1.msra.mxu0 0.0
    %1402 = vmatprep.subr.mxu0 0.0
    %1403 = vmatpush1.msra.mxu0 0.0
    %1404 = vmatprep.mubr.f32.mxu0 0.0
    %v1405 = vand.u32 %v674, 4294901760
    %v1406 = vsub.f32 %v674, %v1405
    %1407 = vmatmul.mubr.f32.gmra.mrb[0].mxu0 %v1406
    %v1408 = vpop.f32.mrb[0].mxu0
    %v1409 = vadd.f32 %v1329, %v1408
    %v1410 = vpop.f32.mrb[0].mxu0
    %1411 = vdwg.mxu0
    %1412 = vmatprep.subr.mxu0 0.0
    %v1413 = vand.u32 %v662, 4294901760
    %1414 = vmatpush1.msra.mxu0 %v1413
    %1415 = vmatprep.subr.mxu0 0.0
    %v1416 = vand.u32 %v665, 4294901760
    %1417 = vmatpush1.msra.mxu0 %v1416
    %1418 = vmatprep.subr.mxu0 0.0
    %v1419 = vand.u32 %v668, 4294901760
    %1420 = vmatpush1.msra.mxu0 %v1419
    %1421 = vmatprep.subr.mxu0 0.0
    %v1422 = vand.u32 %v671, 4294901760
    %1423 = vmatpush1.msra.mxu0 %v1422
    %1424 = vmatprep.subr.mxu0 0.0
    %1425 = vmatpush1.msra.mxu0 0.0
    %1426 = vmatprep.subr.mxu0 0.0
    %1427 = vmatpush1.msra.mxu0 0.0
    %1428 = vmatprep.subr.mxu0 0.0
    %1429 = vmatpush1.msra.mxu0 0.0
    %1430 = vmatprep.subr.mxu0 0.0
    %1431 = vmatpush1.msra.mxu0 0.0
    %1432 = vmatprep.subr.mxu0 0.0
    %1433 = vmatpush1.msra.mxu0 0.0
    %1434 = vmatprep.subr.mxu0 0.0
    %1435 = vmatpush1.msra.mxu0 0.0
    %1436 = vmatprep.subr.mxu0 0.0
    %1437 = vmatpush1.msra.mxu0 0.0
    %1438 = vmatprep.subr.mxu0 0.0
    %1439 = vmatpush1.msra.mxu0 0.0
    %1440 = vmatprep.subr.mxu0 0.0
    %1441 = vmatpush1.msra.mxu0 0.0
    %1442 = vmatprep.subr.mxu0 0.0
    %1443 = vmatpush1.msra.mxu0 0.0
    %1444 = vmatprep.subr.mxu0 0.0
    %1445 = vmatpush1.msra.mxu0 0.0
    %1446 = vmatprep.subr.mxu0 0.0
    %1447 = vmatpush1.msra.mxu0 0.0
    %1448 = vmatprep.subr.mxu0 0.0
    %1449 = vmatpush1.msra.mxu0 0.0
    %1450 = vmatprep.subr.mxu0 0.0
    %1451 = vmatpush1.msra.mxu0 0.0
    %1452 = vmatprep.subr.mxu0 0.0
    %1453 = vmatpush1.msra.mxu0 0.0
    %1454 = vmatprep.subr.mxu0 0.0
    %1455 = vmatpush1.msra.mxu0 0.0
    %1456 = vmatprep.subr.mxu0 0.0
    %1457 = vmatpush1.msra.mxu0 0.0
    %1458 = vmatprep.subr.mxu0 0.0
    %1459 = vmatpush1.msra.mxu0 0.0
    %1460 = vmatprep.subr.mxu0 0.0
    %1461 = vmatpush1.msra.mxu0 0.0
    %1462 = vmatprep.subr.mxu0 0.0
    %1463 = vmatpush1.msra.mxu0 0.0
    %1464 = vmatprep.subr.mxu0 0.0
    %1465 = vmatpush1.msra.mxu0 0.0
    %1466 = vmatprep.subr.mxu0 0.0
    %1467 = vmatpush1.msra.mxu0 0.0
    %1468 = vmatprep.subr.mxu0 0.0
    %1469 = vmatpush1.msra.mxu0 0.0
    %1470 = vmatprep.subr.mxu0 0.0
    %1471 = vmatpush1.msra.mxu0 0.0
    %1472 = vmatprep.subr.mxu0 0.0
    %1473 = vmatpush1.msra.mxu0 0.0
    %1474 = vmatprep.subr.mxu0 0.0
    %1475 = vmatpush1.msra.mxu0 0.0
    %1476 = vmatprep.subr.mxu0 0.0
    %1477 = vmatpush1.msra.mxu0 0.0
    %1478 = vmatprep.subr.mxu0 0.0
    %1479 = vmatpush1.msra.mxu0 0.0
    %1480 = vmatprep.mubr.f32.mxu0 0.0
    %v1481 = vand.u32 %v674, 4294901760
    %v1482 = vsub.f32 %v674, %v1481
    %v1483 = vand.u32 %v1482, 4294901760
    %1484 = vmatmul.mubr.f32.gmra.mrb[0].mxu0 %v1483
    %v1485 = vpop.f32.mrb[0].mxu0
    %v1486 = vadd.f32 %v1409, %v1485
    %v1487 = vpop.f32.mrb[0].mxu0
    %1488 = vdwg.mxu0
    %1489 = vmatprep.subr.mxu0 0.0
    %v1490 = vand.u32 %v662, 4294901760
    %v1491 = vsub.f32 %v662, %v1490
    %v1492 = vand.u32 %v1491, 4294901760
    %1493 = vmatpush1.msra.mxu0 %v1492
    %1494 = vmatprep.subr.mxu0 0.0
    %v1495 = vand.u32 %v665, 4294901760
    %v1496 = vsub.f32 %v665, %v1495
    %v1497 = vand.u32 %v1496, 4294901760
    %1498 = vmatpush1.msra.mxu0 %v1497
    %1499 = vmatprep.subr.mxu0 0.0
    %v1500 = vand.u32 %v668, 4294901760
    %v1501 = vsub.f32 %v668, %v1500
    %v1502 = vand.u32 %v1501, 4294901760
    %1503 = vmatpush1.msra.mxu0 %v1502
    %1504 = vmatprep.subr.mxu0 0.0
    %v1505 = vand.u32 %v671, 4294901760
    %v1506 = vsub.f32 %v671, %v1505
    %v1507 = vand.u32 %v1506, 4294901760
    %1508 = vmatpush1.msra.mxu0 %v1507
    %1509 = vmatprep.subr.mxu0 0.0
    %1510 = vmatpush1.msra.mxu0 0.0
    %1511 = vmatprep.subr.mxu0 0.0
    %1512 = vmatpush1.msra.mxu0 0.0
    %1513 = vmatprep.subr.mxu0 0.0
    %1514 = vmatpush1.msra.mxu0 0.0
    %1515 = vmatprep.subr.mxu0 0.0
    %1516 = vmatpush1.msra.mxu0 0.0
    %1517 = vmatprep.subr.mxu0 0.0
    %1518 = vmatpush1.msra.mxu0 0.0
    %1519 = vmatprep.subr.mxu0 0.0
    %1520 = vmatpush1.msra.mxu0 0.0
    %1521 = vmatprep.subr.mxu0 0.0
    %1522 = vmatpush1.msra.mxu0 0.0
    %1523 = vmatprep.subr.mxu0 0.0
    %1524 = vmatpush1.msra.mxu0 0.0
    %1525 = vmatprep.subr.mxu0 0.0
    %1526 = vmatpush1.msra.mxu0 0.0
    %1527 = vmatprep.subr.mxu0 0.0
    %1528 = vmatpush1.msra.mxu0 0.0
    %1529 = vmatprep.subr.mxu0 0.0
    %1530 = vmatpush1.msra.mxu0 0.0
    %1531 = vmatprep.subr.mxu0 0.0
    %1532 = vmatpush1.msra.mxu0 0.0
    %1533 = vmatprep.subr.mxu0 0.0
    %1534 = vmatpush1.msra.mxu0 0.0
    %1535 = vmatprep.subr.mxu0 0.0
    %1536 = vmatpush1.msra.mxu0 0.0
    %1537 = vmatprep.subr.mxu0 0.0
    %1538 = vmatpush1.msra.mxu0 0.0
    %1539 = vmatprep.subr.mxu0 0.0
    %1540 = vmatpush1.msra.mxu0 0.0
    %1541 = vmatprep.subr.mxu0 0.0
    %1542 = vmatpush1.msra.mxu0 0.0
    %1543 = vmatprep.subr.mxu0 0.0
    %1544 = vmatpush1.msra.mxu0 0.0
    %1545 = vmatprep.subr.mxu0 0.0
    %1546 = vmatpush1.msra.mxu0 0.0
    %1547 = vmatprep.subr.mxu0 0.0
    %1548 = vmatpush1.msra.mxu0 0.0
    %1549 = vmatprep.subr.mxu0 0.0
    %1550 = vmatpush1.msra.mxu0 0.0
    %1551 = vmatprep.subr.mxu0 0.0
    %1552 = vmatpush1.msra.mxu0 0.0
    %1553 = vmatprep.subr.mxu0 0.0
    %1554 = vmatpush1.msra.mxu0 0.0
    %1555 = vmatprep.subr.mxu0 0.0
    %1556 = vmatpush1.msra.mxu0 0.0
    %1557 = vmatprep.subr.mxu0 0.0
    %1558 = vmatpush1.msra.mxu0 0.0
    %1559 = vmatprep.subr.mxu0 0.0
    %1560 = vmatpush1.msra.mxu0 0.0
    %1561 = vmatprep.subr.mxu0 0.0
    %1562 = vmatpush1.msra.mxu0 0.0
    %1563 = vmatprep.subr.mxu0 0.0
    %1564 = vmatpush1.msra.mxu0 0.0
    %1565 = vmatprep.mubr.f32.mxu0 0.0
    %v1566 = vand.u32 %v674, 4294901760
    %1567 = vmatmul.mubr.f32.gmra.mrb[0].mxu0 %v1566
    %v1568 = vpop.f32.mrb[0].mxu0
    %v1569 = vadd.f32 %v1486, %v1568
    %v1570 = vpop.f32.mrb[0].mxu0
    %1571 = vdwg.mxu0
    %1572 = vmatprep.subr.mxu0 0.0
    %v1573 = vand.u32 %v662, 4294901760
    %1574 = vmatpush1.msra.mxu0 %v1573
    %1575 = vmatprep.subr.mxu0 0.0
    %v1576 = vand.u32 %v665, 4294901760
    %1577 = vmatpush1.msra.mxu0 %v1576
    %1578 = vmatprep.subr.mxu0 0.0
    %v1579 = vand.u32 %v668, 4294901760
    %1580 = vmatpush1.msra.mxu0 %v1579
    %1581 = vmatprep.subr.mxu0 0.0
    %v1582 = vand.u32 %v671, 4294901760
    %1583 = vmatpush1.msra.mxu0 %v1582
    %1584 = vmatprep.subr.mxu0 0.0
    %1585 = vmatpush1.msra.mxu0 0.0
    %1586 = vmatprep.subr.mxu0 0.0
    %1587 = vmatpush1.msra.mxu0 0.0
    %1588 = vmatprep.subr.mxu0 0.0
    %1589 = vmatpush1.msra.mxu0 0.0
    %1590 = vmatprep.subr.mxu0 0.0
    %1591 = vmatpush1.msra.mxu0 0.0
    %1592 = vmatprep.subr.mxu0 0.0
    %1593 = vmatpush1.msra.mxu0 0.0
    %1594 = vmatprep.subr.mxu0 0.0
    %1595 = vmatpush1.msra.mxu0 0.0
    %1596 = vmatprep.subr.mxu0 0.0
    %1597 = vmatpush1.msra.mxu0 0.0
    %1598 = vmatprep.subr.mxu0 0.0
    %1599 = vmatpush1.msra.mxu0 0.0
    %1600 = vmatprep.subr.mxu0 0.0
    %1601 = vmatpush1.msra.mxu0 0.0
    %1602 = vmatprep.subr.mxu0 0.0
    %1603 = vmatpush1.msra.mxu0 0.0
    %1604 = vmatprep.subr.mxu0 0.0
    %1605 = vmatpush1.msra.mxu0 0.0
    %1606 = vmatprep.subr.mxu0 0.0
    %1607 = vmatpush1.msra.mxu0 0.0
    %1608 = vmatprep.subr.mxu0 0.0
    %1609 = vmatpush1.msra.mxu0 0.0
    %1610 = vmatprep.subr.mxu0 0.0
    %1611 = vmatpush1.msra.mxu0 0.0
    %1612 = vmatprep.subr.mxu0 0.0
    %1613 = vmatpush1.msra.mxu0 0.0
    %1614 = vmatprep.subr.mxu0 0.0
    %1615 = vmatpush1.msra.mxu0 0.0
    %1616 = vmatprep.subr.mxu0 0.0
    %1617 = vmatpush1.msra.mxu0 0.0
    %1618 = vmatprep.subr.mxu0 0.0
    %1619 = vmatpush1.msra.mxu0 0.0
    %1620 = vmatprep.subr.mxu0 0.0
    %1621 = vmatpush1.msra.mxu0 0.0
    %1622 = vmatprep.subr.mxu0 0.0
    %1623 = vmatpush1.msra.mxu0 0.0
    %1624 = vmatprep.subr.mxu0 0.0
    %1625 = vmatpush1.msra.mxu0 0.0
    %1626 = vmatprep.subr.mxu0 0.0
    %1627 = vmatpush1.msra.mxu0 0.0
    %1628 = vmatprep.subr.mxu0 0.0
    %1629 = vmatpush1.msra.mxu0 0.0
    %1630 = vmatprep.subr.mxu0 0.0
    %1631 = vmatpush1.msra.mxu0 0.0
    %1632 = vmatprep.subr.mxu0 0.0
    %1633 = vmatpush1.msra.mxu0 0.0
    %1634 = vmatprep.subr.mxu0 0.0
    %1635 = vmatpush1.msra.mxu0 0.0
    %1636 = vmatprep.subr.mxu0 0.0
    %1637 = vmatpush1.msra.mxu0 0.0
    %1638 = vmatprep.subr.mxu0 0.0
    %1639 = vmatpush1.msra.mxu0 0.0
    %1640 = vmatprep.mubr.f32.mxu0 0.0
    %v1641 = vand.u32 %v674, 4294901760
    %1642 = vmatmul.mubr.f32.gmra.mrb[0].mxu0 %v1641
    %v1643 = vpop.f32.mrb[0].mxu0
    %v1644 = vadd.f32 %v1569, %v1643
    %v1645 = vpop.f32.mrb[0].mxu0
    %1646 = vdwg.mxu0
    %v1647 = vmax.f32 %v1644, 0.0
    %vm1648 = vcmask 15360
    %v1650 = vsel %vm1648, %v30, 0
    %v1653 = vsel %vm1648, %v31, 0
    %v1656 = vsel %vm1648, %v32, 0
    %v1659 = vsel %vm1648, %v33, 0
    %vm1661 = vcmask 1041408
    %v1663 = vsel %vm1661, %v1647, 0
    %1665 = vmatprep.subr.mxu0 0.0
    %v1666 = vand.u32 %v1663, 4294901760
    %1667 = vmatpush1.msra.mxu0 %v1666
    %1668 = vmatprep.subr.mxu0 0.0
    %1669 = vmatpush1.msra.mxu0 0.0
    %1670 = vmatprep.subr.mxu0 0.0
    %1671 = vmatpush1.msra.mxu0 0.0
    %1672 = vmatprep.subr.mxu0 0.0
    %1673 = vmatpush1.msra.mxu0 0.0
    %1674 = vmatprep.subr.mxu0 0.0
    %1675 = vmatpush1.msra.mxu0 0.0
    %1676 = vmatprep.subr.mxu0 0.0
    %1677 = vmatpush1.msra.mxu0 0.0
    %1678 = vmatprep.subr.mxu0 0.0
    %1679 = vmatpush1.msra.mxu0 0.0
    %1680 = vmatprep.subr.mxu0 0.0
    %1681 = vmatpush1.msra.mxu0 0.0
    %1682 = vmatprep.subr.mxu0 0.0
    %1683 = vmatpush1.msra.mxu0 0.0
    %1684 = vmatprep.subr.mxu0 0.0
    %1685 = vmatpush1.msra.mxu0 0.0
    %1686 = vmatprep.subr.mxu0 0.0
    %1687 = vmatpush1.msra.mxu0 0.0
    %1688 = vmatprep.subr.mxu0 0.0
    %1689 = vmatpush1.msra.mxu0 0.0
    %1690 = vmatprep.subr.mxu0 0.0
    %1691 = vmatpush1.msra.mxu0 0.0
    %1692 = vmatprep.subr.mxu0 0.0
    %1693 = vmatpush1.msra.mxu0 0.0
    %1694 = vmatprep.subr.mxu0 0.0
    %1695 = vmatpush1.msra.mxu0 0.0
    %1696 = vmatprep.subr.mxu0 0.0
    %1697 = vmatpush1.msra.mxu0 0.0
    %1698 = vmatprep.subr.mxu0 0.0
    %1699 = vmatpush1.msra.mxu0 0.0
    %1700 = vmatprep.subr.mxu0 0.0
    %1701 = vmatpush1.msra.mxu0 0.0
    %1702 = vmatprep.subr.mxu0 0.0
    %1703 = vmatpush1.msra.mxu0 0.0
    %1704 = vmatprep.subr.mxu0 0.0
    %1705 = vmatpush1.msra.mxu0 0.0
    %1706 = vmatprep.subr.mxu0 0.0
    %1707 = vmatpush1.msra.mxu0 0.0
    %1708 = vmatprep.subr.mxu0 0.0
    %1709 = vmatpush1.msra.mxu0 0.0
    %1710 = vmatprep.subr.mxu0 0.0
    %1711 = vmatpush1.msra.mxu0 0.0
    %1712 = vmatprep.subr.mxu0 0.0
    %1713 = vmatpush1.msra.mxu0 0.0
    %1714 = vmatprep.subr.mxu0 0.0
    %1715 = vmatpush1.msra.mxu0 0.0
    %1716 = vmatprep.subr.mxu0 0.0
    %1717 = vmatpush1.msra.mxu0 0.0
    %1718 = vmatprep.subr.mxu0 0.0
    %1719 = vmatpush1.msra.mxu0 0.0
    %1720 = vmatprep.subr.mxu0 0.0
    %1721 = vmatpush1.msra.mxu0 0.0
    %1722 = vmatprep.subr.mxu0 0.0
    %1723 = vmatpush1.msra.mxu0 0.0
    %1724 = vmatprep.subr.mxu0 0.0
    %1725 = vmatpush1.msra.mxu0 0.0
    %1726 = vmatprep.subr.mxu0 0.0
    %1727 = vmatpush1.msra.mxu0 0.0
    %1728 = vmatprep.subr.mxu0 0.0
    %1729 = vmatpush1.msra.mxu0 0.0
    %1730 = vmatprep.mubr.f32.mxu0 0.0
    %v1731 = vand.u32 %v1650, 4294901760
    %v1732 = vsub.f32 %v1650, %v1731
    %v1733 = vand.u32 %v1732, 4294901760
    %v1734 = vsub.f32 %v1732, %v1733
    %v1735 = vand.u32 %v1734, 4294901760
    %1736 = vmatmul.mubr.f32.gmra.mrb[0].mxu0 %v1735
    %v1737 = vpop.f32.mrb[0].mxu0
    %v1738 = vadd.f32 0.0, %v1737
    %v1739 = vpop.f32.mrb[0].mxu0
    %1740 = vmatprep.mubr.f32.mxu0 0.0
    %v1741 = vand.u32 %v1653, 4294901760
    %v1742 = vsub.f32 %v1653, %v1741
    %v1743 = vand.u32 %v1742, 4294901760
    %v1744 = vsub.f32 %v1742, %v1743
    %v1745 = vand.u32 %v1744, 4294901760
    %1746 = vmatmul.mubr.f32.gmra.mrb[0].mxu0 %v1745
    %v1747 = vpop.f32.mrb[0].mxu0
    %v1748 = vadd.f32 0.0, %v1747
    %v1749 = vpop.f32.mrb[0].mxu0
    %1750 = vmatprep.mubr.f32.mxu0 0.0
    %v1751 = vand.u32 %v1656, 4294901760
    %v1752 = vsub.f32 %v1656, %v1751
    %v1753 = vand.u32 %v1752, 4294901760
    %v1754 = vsub.f32 %v1752, %v1753
    %v1755 = vand.u32 %v1754, 4294901760
    %1756 = vmatmul.mubr.f32.gmra.mrb[0].mxu0 %v1755
    %v1757 = vpop.f32.mrb[0].mxu0
    %v1758 = vadd.f32 0.0, %v1757
    %v1759 = vpop.f32.mrb[0].mxu0
    %1760 = vmatprep.mubr.f32.mxu0 0.0
    %v1761 = vand.u32 %v1659, 4294901760
    %v1762 = vsub.f32 %v1659, %v1761
    %v1763 = vand.u32 %v1762, 4294901760
    %v1764 = vsub.f32 %v1762, %v1763
    %v1765 = vand.u32 %v1764, 4294901760
    %1766 = vmatmul.mubr.f32.gmra.mrb[0].mxu0 %v1765
    %v1767 = vpop.f32.mrb[0].mxu0
    %v1768 = vadd.f32 0.0, %v1767
    %v1769 = vpop.f32.mrb[0].mxu0
    %1770 = vdwg.mxu0
    %1771 = vmatprep.subr.mxu0 0.0
    %v1772 = vand.u32 %v1663, 4294901760
    %v1773 = vsub.f32 %v1663, %v1772
    %v1774 = vand.u32 %v1773, 4294901760
    %v1775 = vsub.f32 %v1773, %v1774
    %v1776 = vand.u32 %v1775, 4294901760
    %1777 = vmatpush1.msra.mxu0 %v1776
    %1778 = vmatprep.subr.mxu0 0.0
    %1779 = vmatpush1.msra.mxu0 0.0
    %1780 = vmatprep.subr.mxu0 0.0
    %1781 = vmatpush1.msra.mxu0 0.0
    %1782 = vmatprep.subr.mxu0 0.0
    %1783 = vmatpush1.msra.mxu0 0.0
    %1784 = vmatprep.subr.mxu0 0.0
    %1785 = vmatpush1.msra.mxu0 0.0
    %1786 = vmatprep.subr.mxu0 0.0
    %1787 = vmatpush1.msra.mxu0 0.0
    %1788 = vmatprep.subr.mxu0 0.0
    %1789 = vmatpush1.msra.mxu0 0.0
    %1790 = vmatprep.subr.mxu0 0.0
    %1791 = vmatpush1.msra.mxu0 0.0
    %1792 = vmatprep.subr.mxu0 0.0
    %1793 = vmatpush1.msra.mxu0 0.0
    %1794 = vmatprep.subr.mxu0 0.0
    %1795 = vmatpush1.msra.mxu0 0.0
    %1796 = vmatprep.subr.mxu0 0.0
    %1797 = vmatpush1.msra.mxu0 0.0
    %1798 = vmatprep.subr.mxu0 0.0
    %1799 = vmatpush1.msra.mxu0 0.0
    %1800 = vmatprep.subr.mxu0 0.0
    %1801 = vmatpush1.msra.mxu0 0.0
    %1802 = vmatprep.subr.mxu0 0.0
    %1803 = vmatpush1.msra.mxu0 0.0
    %1804 = vmatprep.subr.mxu0 0.0
    %1805 = vmatpush1.msra.mxu0 0.0
    %1806 = vmatprep.subr.mxu0 0.0
    %1807 = vmatpush1.msra.mxu0 0.0
    %1808 = vmatprep.subr.mxu0 0.0
    %1809 = vmatpush1.msra.mxu0 0.0
    %1810 = vmatprep.subr.mxu0 0.0
    %1811 = vmatpush1.msra.mxu0 0.0
    %1812 = vmatprep.subr.mxu0 0.0
    %1813 = vmatpush1.msra.mxu0 0.0
    %1814 = vmatprep.subr.mxu0 0.0
    %1815 = vmatpush1.msra.mxu0 0.0
    %1816 = vmatprep.subr.mxu0 0.0
    %1817 = vmatpush1.msra.mxu0 0.0
    %1818 = vmatprep.subr.mxu0 0.0
    %1819 = vmatpush1.msra.mxu0 0.0
    %1820 = vmatprep.subr.mxu0 0.0
    %1821 = vmatpush1.msra.mxu0 0.0
    %1822 = vmatprep.subr.mxu0 0.0
    %1823 = vmatpush1.msra.mxu0 0.0
    %1824 = vmatprep.subr.mxu0 0.0
    %1825 = vmatpush1.msra.mxu0 0.0
    %1826 = vmatprep.subr.mxu0 0.0
    %1827 = vmatpush1.msra.mxu0 0.0
    %1828 = vmatprep.subr.mxu0 0.0
    %1829 = vmatpush1.msra.mxu0 0.0
    %1830 = vmatprep.subr.mxu0 0.0
    %1831 = vmatpush1.msra.mxu0 0.0
    %1832 = vmatprep.subr.mxu0 0.0
    %1833 = vmatpush1.msra.mxu0 0.0
    %1834 = vmatprep.subr.mxu0 0.0
    %1835 = vmatpush1.msra.mxu0 0.0
    %1836 = vmatprep.subr.mxu0 0.0
    %1837 = vmatpush1.msra.mxu0 0.0
    %1838 = vmatprep.subr.mxu0 0.0
    %1839 = vmatpush1.msra.mxu0 0.0
    %1840 = vmatprep.mubr.f32.mxu0 0.0
    %v1841 = vand.u32 %v1650, 4294901760
    %1842 = vmatmul.mubr.f32.gmra.mrb[0].mxu0 %v1841
    %v1843 = vpop.f32.mrb[0].mxu0
    %v1844 = vadd.f32 %v1738, %v1843
    %v1845 = vpop.f32.mrb[0].mxu0
    %1846 = vmatprep.mubr.f32.mxu0 0.0
    %v1847 = vand.u32 %v1653, 4294901760
    %1848 = vmatmul.mubr.f32.gmra.mrb[0].mxu0 %v1847
    %v1849 = vpop.f32.mrb[0].mxu0
    %v1850 = vadd.f32 %v1748, %v1849
    %v1851 = vpop.f32.mrb[0].mxu0
    %1852 = vmatprep.mubr.f32.mxu0 0.0
    %v1853 = vand.u32 %v1656, 4294901760
    %1854 = vmatmul.mubr.f32.gmra.mrb[0].mxu0 %v1853
    %v1855 = vpop.f32.mrb[0].mxu0
    %v1856 = vadd.f32 %v1758, %v1855
    %v1857 = vpop.f32.mrb[0].mxu0
    %1858 = vmatprep.mubr.f32.mxu0 0.0
    %v1859 = vand.u32 %v1659, 4294901760
    %1860 = vmatmul.mubr.f32.gmra.mrb[0].mxu0 %v1859
    %v1861 = vpop.f32.mrb[0].mxu0
    %v1862 = vadd.f32 %v1768, %v1861
    %v1863 = vpop.f32.mrb[0].mxu0
    %1864 = vdwg.mxu0
    %1865 = vmatprep.subr.mxu0 0.0
    %v1866 = vand.u32 %v1663, 4294901760
    %v1867 = vsub.f32 %v1663, %v1866
    %1868 = vmatpush1.msra.mxu0 %v1867
    %1869 = vmatprep.subr.mxu0 0.0
    %1870 = vmatpush1.msra.mxu0 0.0
    %1871 = vmatprep.subr.mxu0 0.0
    %1872 = vmatpush1.msra.mxu0 0.0
    %1873 = vmatprep.subr.mxu0 0.0
    %1874 = vmatpush1.msra.mxu0 0.0
    %1875 = vmatprep.subr.mxu0 0.0
    %1876 = vmatpush1.msra.mxu0 0.0
    %1877 = vmatprep.subr.mxu0 0.0
    %1878 = vmatpush1.msra.mxu0 0.0
    %1879 = vmatprep.subr.mxu0 0.0
    %1880 = vmatpush1.msra.mxu0 0.0
    %1881 = vmatprep.subr.mxu0 0.0
    %1882 = vmatpush1.msra.mxu0 0.0
    %1883 = vmatprep.subr.mxu0 0.0
    %1884 = vmatpush1.msra.mxu0 0.0
    %1885 = vmatprep.subr.mxu0 0.0
    %1886 = vmatpush1.msra.mxu0 0.0
    %1887 = vmatprep.subr.mxu0 0.0
    %1888 = vmatpush1.msra.mxu0 0.0
    %1889 = vmatprep.subr.mxu0 0.0
    %1890 = vmatpush1.msra.mxu0 0.0
    %1891 = vmatprep.subr.mxu0 0.0
    %1892 = vmatpush1.msra.mxu0 0.0
    %1893 = vmatprep.subr.mxu0 0.0
    %1894 = vmatpush1.msra.mxu0 0.0
    %1895 = vmatprep.subr.mxu0 0.0
    %1896 = vmatpush1.msra.mxu0 0.0
    %1897 = vmatprep.subr.mxu0 0.0
    %1898 = vmatpush1.msra.mxu0 0.0
    %1899 = vmatprep.subr.mxu0 0.0
    %1900 = vmatpush1.msra.mxu0 0.0
    %1901 = vmatprep.subr.mxu0 0.0
    %1902 = vmatpush1.msra.mxu0 0.0
    %1903 = vmatprep.subr.mxu0 0.0
    %1904 = vmatpush1.msra.mxu0 0.0
    %1905 = vmatprep.subr.mxu0 0.0
    %1906 = vmatpush1.msra.mxu0 0.0
    %1907 = vmatprep.subr.mxu0 0.0
    %1908 = vmatpush1.msra.mxu0 0.0
    %1909 = vmatprep.subr.mxu0 0.0
    %1910 = vmatpush1.msra.mxu0 0.0
    %1911 = vmatprep.subr.mxu0 0.0
    %1912 = vmatpush1.msra.mxu0 0.0
    %1913 = vmatprep.subr.mxu0 0.0
    %1914 = vmatpush1.msra.mxu0 0.0
    %1915 = vmatprep.subr.mxu0 0.0
    %1916 = vmatpush1.msra.mxu0 0.0
    %1917 = vmatprep.subr.mxu0 0.0
    %1918 = vmatpush1.msra.mxu0 0.0
    %1919 = vmatprep.subr.mxu0 0.0
    %1920 = vmatpush1.msra.mxu0 0.0
    %1921 = vmatprep.subr.mxu0 0.0
    %1922 = vmatpush1.msra.mxu0 0.0
    %1923 = vmatprep.subr.mxu0 0.0
    %1924 = vmatpush1.msra.mxu0 0.0
    %1925 = vmatprep.subr.mxu0 0.0
    %1926 = vmatpush1.msra.mxu0 0.0
    %1927 = vmatprep.subr.mxu0 0.0
    %1928 = vmatpush1.msra.mxu0 0.0
    %1929 = vmatprep.subr.mxu0 0.0
    %1930 = vmatpush1.msra.mxu0 0.0
    %1931 = vmatprep.mubr.f32.mxu0 0.0
    %v1932 = vand.u32 %v1650, 4294901760
    %v1933 = vsub.f32 %v1650, %v1932
    %1934 = vmatmul.mubr.f32.gmra.mrb[0].mxu0 %v1933
    %v1935 = vpop.f32.mrb[0].mxu0
    %v1936 = vadd.f32 %v1844, %v1935
    %v1937 = vpop.f32.mrb[0].mxu0
    %1938 = vmatprep.mubr.f32.mxu0 0.0
    %v1939 = vand.u32 %v1653, 4294901760
    %v1940 = vsub.f32 %v1653, %v1939
    %1941 = vmatmul.mubr.f32.gmra.mrb[0].mxu0 %v1940
    %v1942 = vpop.f32.mrb[0].mxu0
    %v1943 = vadd.f32 %v1850, %v1942
    %v1944 = vpop.f32.mrb[0].mxu0
    %1945 = vmatprep.mubr.f32.mxu0 0.0
    %v1946 = vand.u32 %v1656, 4294901760
    %v1947 = vsub.f32 %v1656, %v1946
    %1948 = vmatmul.mubr.f32.gmra.mrb[0].mxu0 %v1947
    %v1949 = vpop.f32.mrb[0].mxu0
    %v1950 = vadd.f32 %v1856, %v1949
    %v1951 = vpop.f32.mrb[0].mxu0
    %1952 = vmatprep.mubr.f32.mxu0 0.0
    %v1953 = vand.u32 %v1659, 4294901760
    %v1954 = vsub.f32 %v1659, %v1953
    %1955 = vmatmul.mubr.f32.gmra.mrb[0].mxu0 %v1954
    %v1956 = vpop.f32.mrb[0].mxu0
    %v1957 = vadd.f32 %v1862, %v1956
    %v1958 = vpop.f32.mrb[0].mxu0
    %1959 = vdwg.mxu0
    %1960 = vmatprep.subr.mxu0 0.0
    %v1961 = vand.u32 %v1663, 4294901760
    %1962 = vmatpush1.msra.mxu0 %v1961
    %1963 = vmatprep.subr.mxu0 0.0
    %1964 = vmatpush1.msra.mxu0 0.0
    %1965 = vmatprep.subr.mxu0 0.0
    %1966 = vmatpush1.msra.mxu0 0.0
    %1967 = vmatprep.subr.mxu0 0.0
    %1968 = vmatpush1.msra.mxu0 0.0
    %1969 = vmatprep.subr.mxu0 0.0
    %1970 = vmatpush1.msra.mxu0 0.0
    %1971 = vmatprep.subr.mxu0 0.0
    %1972 = vmatpush1.msra.mxu0 0.0
    %1973 = vmatprep.subr.mxu0 0.0
    %1974 = vmatpush1.msra.mxu0 0.0
    %1975 = vmatprep.subr.mxu0 0.0
    %1976 = vmatpush1.msra.mxu0 0.0
    %1977 = vmatprep.subr.mxu0 0.0
    %1978 = vmatpush1.msra.mxu0 0.0
    %1979 = vmatprep.subr.mxu0 0.0
    %1980 = vmatpush1.msra.mxu0 0.0
    %1981 = vmatprep.subr.mxu0 0.0
    %1982 = vmatpush1.msra.mxu0 0.0
    %1983 = vmatprep.subr.mxu0 0.0
    %1984 = vmatpush1.msra.mxu0 0.0
    %1985 = vmatprep.subr.mxu0 0.0
    %1986 = vmatpush1.msra.mxu0 0.0
    %1987 = vmatprep.subr.mxu0 0.0
    %1988 = vmatpush1.msra.mxu0 0.0
    %1989 = vmatprep.subr.mxu0 0.0
    %1990 = vmatpush1.msra.mxu0 0.0
    %1991 = vmatprep.subr.mxu0 0.0
    %1992 = vmatpush1.msra.mxu0 0.0
    %1993 = vmatprep.subr.mxu0 0.0
    %1994 = vmatpush1.msra.mxu0 0.0
    %1995 = vmatprep.subr.mxu0 0.0
    %1996 = vmatpush1.msra.mxu0 0.0
    %1997 = vmatprep.subr.mxu0 0.0
    %1998 = vmatpush1.msra.mxu0 0.0
    %1999 = vmatprep.subr.mxu0 0.0
    %2000 = vmatpush1.msra.mxu0 0.0
    %2001 = vmatprep.subr.mxu0 0.0
    %2002 = vmatpush1.msra.mxu0 0.0
    %2003 = vmatprep.subr.mxu0 0.0
    %2004 = vmatpush1.msra.mxu0 0.0
    %2005 = vmatprep.subr.mxu0 0.0
    %2006 = vmatpush1.msra.mxu0 0.0
    %2007 = vmatprep.subr.mxu0 0.0
    %2008 = vmatpush1.msra.mxu0 0.0
    %2009 = vmatprep.subr.mxu0 0.0
    %2010 = vmatpush1.msra.mxu0 0.0
    %2011 = vmatprep.subr.mxu0 0.0
    %2012 = vmatpush1.msra.mxu0 0.0
    %2013 = vmatprep.subr.mxu0 0.0
    %2014 = vmatpush1.msra.mxu0 0.0
    %2015 = vmatprep.subr.mxu0 0.0
    %2016 = vmatpush1.msra.mxu0 0.0
    %2017 = vmatprep.subr.mxu0 0.0
    %2018 = vmatpush1.msra.mxu0 0.0
    %2019 = vmatprep.subr.mxu0 0.0
    %2020 = vmatpush1.msra.mxu0 0.0
    %2021 = vmatprep.subr.mxu0 0.0
    %2022 = vmatpush1.msra.mxu0 0.0
    %2023 = vmatprep.subr.mxu0 0.0
    %2024 = vmatpush1.msra.mxu0 0.0
    %2025 = vmatprep.mubr.f32.mxu0 0.0
    %v2026 = vand.u32 %v1650, 4294901760
    %v2027 = vsub.f32 %v1650, %v2026
    %v2028 = vand.u32 %v2027, 4294901760
    %2029 = vmatmul.mubr.f32.gmra.mrb[0].mxu0 %v2028
    %v2030 = vpop.f32.mrb[0].mxu0
    %v2031 = vadd.f32 %v1936, %v2030
    %v2032 = vpop.f32.mrb[0].mxu0
    %2033 = vmatprep.mubr.f32.mxu0 0.0
    %v2034 = vand.u32 %v1653, 4294901760
    %v2035 = vsub.f32 %v1653, %v2034
    %v2036 = vand.u32 %v2035, 4294901760
    %2037 = vmatmul.mubr.f32.gmra.mrb[0].mxu0 %v2036
    %v2038 = vpop.f32.mrb[0].mxu0
    %v2039 = vadd.f32 %v1943, %v2038
    %v2040 = vpop.f32.mrb[0].mxu0
    %2041 = vmatprep.mubr.f32.mxu0 0.0
    %v2042 = vand.u32 %v1656, 4294901760
    %v2043 = vsub.f32 %v1656, %v2042
    %v2044 = vand.u32 %v2043, 4294901760
    %2045 = vmatmul.mubr.f32.gmra.mrb[0].mxu0 %v2044
    %v2046 = vpop.f32.mrb[0].mxu0
    %v2047 = vadd.f32 %v1950, %v2046
    %v2048 = vpop.f32.mrb[0].mxu0
    %2049 = vmatprep.mubr.f32.mxu0 0.0
    %v2050 = vand.u32 %v1659, 4294901760
    %v2051 = vsub.f32 %v1659, %v2050
    %v2052 = vand.u32 %v2051, 4294901760
    %2053 = vmatmul.mubr.f32.gmra.mrb[0].mxu0 %v2052
    %v2054 = vpop.f32.mrb[0].mxu0
    %v2055 = vadd.f32 %v1957, %v2054
    %v2056 = vpop.f32.mrb[0].mxu0
    %2057 = vdwg.mxu0
    %2058 = vmatprep.subr.mxu0 0.0
    %v2059 = vand.u32 %v1663, 4294901760
    %v2060 = vsub.f32 %v1663, %v2059
    %v2061 = vand.u32 %v2060, 4294901760
    %2062 = vmatpush1.msra.mxu0 %v2061
    %2063 = vmatprep.subr.mxu0 0.0
    %2064 = vmatpush1.msra.mxu0 0.0
    %2065 = vmatprep.subr.mxu0 0.0
    %2066 = vmatpush1.msra.mxu0 0.0
    %2067 = vmatprep.subr.mxu0 0.0
    %2068 = vmatpush1.msra.mxu0 0.0
    %2069 = vmatprep.subr.mxu0 0.0
    %2070 = vmatpush1.msra.mxu0 0.0
    %2071 = vmatprep.subr.mxu0 0.0
    %2072 = vmatpush1.msra.mxu0 0.0
    %2073 = vmatprep.subr.mxu0 0.0
    %2074 = vmatpush1.msra.mxu0 0.0
    %2075 = vmatprep.subr.mxu0 0.0
    %2076 = vmatpush1.msra.mxu0 0.0
    %2077 = vmatprep.subr.mxu0 0.0
    %2078 = vmatpush1.msra.mxu0 0.0
    %2079 = vmatprep.subr.mxu0 0.0
    %2080 = vmatpush1.msra.mxu0 0.0
    %2081 = vmatprep.subr.mxu0 0.0
    %2082 = vmatpush1.msra.mxu0 0.0
    %2083 = vmatprep.subr.mxu0 0.0
    %2084 = vmatpush1.msra.mxu0 0.0
    %2085 = vmatprep.subr.mxu0 0.0
    %2086 = vmatpush1.msra.mxu0 0.0
    %2087 = vmatprep.subr.mxu0 0.0
    %2088 = vmatpush1.msra.mxu0 0.0
    %2089 = vmatprep.subr.mxu0 0.0
    %2090 = vmatpush1.msra.mxu0 0.0
    %2091 = vmatprep.subr.mxu0 0.0
    %2092 = vmatpush1.msra.mxu0 0.0
    %2093 = vmatprep.subr.mxu0 0.0
    %2094 = vmatpush1.msra.mxu0 0.0
    %2095 = vmatprep.subr.mxu0 0.0
    %2096 = vmatpush1.msra.mxu0 0.0
    %2097 = vmatprep.subr.mxu0 0.0
    %2098 = vmatpush1.msra.mxu0 0.0
    %2099 = vmatprep.subr.mxu0 0.0
    %2100 = vmatpush1.msra.mxu0 0.0
    %2101 = vmatprep.subr.mxu0 0.0
    %2102 = vmatpush1.msra.mxu0 0.0
    %2103 = vmatprep.subr.mxu0 0.0
    %2104 = vmatpush1.msra.mxu0 0.0
    %2105 = vmatprep.subr.mxu0 0.0
    %2106 = vmatpush1.msra.mxu0 0.0
    %2107 = vmatprep.subr.mxu0 0.0
    %2108 = vmatpush1.msra.mxu0 0.0
    %2109 = vmatprep.subr.mxu0 0.0
    %2110 = vmatpush1.msra.mxu0 0.0
    %2111 = vmatprep.subr.mxu0 0.0
    %2112 = vmatpush1.msra.mxu0 0.0
    %2113 = vmatprep.subr.mxu0 0.0
    %2114 = vmatpush1.msra.mxu0 0.0
    %2115 = vmatprep.subr.mxu0 0.0
    %2116 = vmatpush1.msra.mxu0 0.0
    %2117 = vmatprep.subr.mxu0 0.0
    %2118 = vmatpush1.msra.mxu0 0.0
    %2119 = vmatprep.subr.mxu0 0.0
    %2120 = vmatpush1.msra.mxu0 0.0
    %2121 = vmatprep.subr.mxu0 0.0
    %2122 = vmatpush1.msra.mxu0 0.0
    %2123 = vmatprep.subr.mxu0 0.0
    %2124 = vmatpush1.msra.mxu0 0.0
    %2125 = vmatprep.mubr.f32.mxu0 0.0
    %v2126 = vand.u32 %v1650, 4294901760
    %2127 = vmatmul.mubr.f32.gmra.mrb[0].mxu0 %v2126
    %v2128 = vpop.f32.mrb[0].mxu0
    %v2129 = vadd.f32 %v2031, %v2128
    %v2130 = vpop.f32.mrb[0].mxu0
    %2131 = vmatprep.mubr.f32.mxu0 0.0
    %v2132 = vand.u32 %v1653, 4294901760
    %2133 = vmatmul.mubr.f32.gmra.mrb[0].mxu0 %v2132
    %v2134 = vpop.f32.mrb[0].mxu0
    %v2135 = vadd.f32 %v2039, %v2134
    %v2136 = vpop.f32.mrb[0].mxu0
    %2137 = vmatprep.mubr.f32.mxu0 0.0
    %v2138 = vand.u32 %v1656, 4294901760
    %2139 = vmatmul.mubr.f32.gmra.mrb[0].mxu0 %v2138
    %v2140 = vpop.f32.mrb[0].mxu0
    %v2141 = vadd.f32 %v2047, %v2140
    %v2142 = vpop.f32.mrb[0].mxu0
    %2143 = vmatprep.mubr.f32.mxu0 0.0
    %v2144 = vand.u32 %v1659, 4294901760
    %2145 = vmatmul.mubr.f32.gmra.mrb[0].mxu0 %v2144
    %v2146 = vpop.f32.mrb[0].mxu0
    %v2147 = vadd.f32 %v2055, %v2146
    %v2148 = vpop.f32.mrb[0].mxu0
    %2149 = vdwg.mxu0
    %2150 = vmatprep.subr.mxu0 0.0
    %v2151 = vand.u32 %v1663, 4294901760
    %2152 = vmatpush1.msra.mxu0 %v2151
    %2153 = vmatprep.subr.mxu0 0.0
    %2154 = vmatpush1.msra.mxu0 0.0
    %2155 = vmatprep.subr.mxu0 0.0
    %2156 = vmatpush1.msra.mxu0 0.0
    %2157 = vmatprep.subr.mxu0 0.0
    %2158 = vmatpush1.msra.mxu0 0.0
    %2159 = vmatprep.subr.mxu0 0.0
    %2160 = vmatpush1.msra.mxu0 0.0
    %2161 = vmatprep.subr.mxu0 0.0
    %2162 = vmatpush1.msra.mxu0 0.0
    %2163 = vmatprep.subr.mxu0 0.0
    %2164 = vmatpush1.msra.mxu0 0.0
    %2165 = vmatprep.subr.mxu0 0.0
    %2166 = vmatpush1.msra.mxu0 0.0
    %2167 = vmatprep.subr.mxu0 0.0
    %2168 = vmatpush1.msra.mxu0 0.0
    %2169 = vmatprep.subr.mxu0 0.0
    %2170 = vmatpush1.msra.mxu0 0.0
    %2171 = vmatprep.subr.mxu0 0.0
    %2172 = vmatpush1.msra.mxu0 0.0
    %2173 = vmatprep.subr.mxu0 0.0
    %2174 = vmatpush1.msra.mxu0 0.0
    %2175 = vmatprep.subr.mxu0 0.0
    %2176 = vmatpush1.msra.mxu0 0.0
    %2177 = vmatprep.subr.mxu0 0.0
    %2178 = vmatpush1.msra.mxu0 0.0
    %2179 = vmatprep.subr.mxu0 0.0
    %2180 = vmatpush1.msra.mxu0 0.0
    %2181 = vmatprep.subr.mxu0 0.0
    %2182 = vmatpush1.msra.mxu0 0.0
    %2183 = vmatprep.subr.mxu0 0.0
    %2184 = vmatpush1.msra.mxu0 0.0
    %2185 = vmatprep.subr.mxu0 0.0
    %2186 = vmatpush1.msra.mxu0 0.0
    %2187 = vmatprep.subr.mxu0 0.0
    %2188 = vmatpush1.msra.mxu0 0.0
    %2189 = vmatprep.subr.mxu0 0.0
    %2190 = vmatpush1.msra.mxu0 0.0
    %2191 = vmatprep.subr.mxu0 0.0
    %2192 = vmatpush1.msra.mxu0 0.0
    %2193 = vmatprep.subr.mxu0 0.0
    %2194 = vmatpush1.msra.mxu0 0.0
    %2195 = vmatprep.subr.mxu0 0.0
    %2196 = vmatpush1.msra.mxu0 0.0
    %2197 = vmatprep.subr.mxu0 0.0
    %2198 = vmatpush1.msra.mxu0 0.0
    %2199 = vmatprep.subr.mxu0 0.0
    %2200 = vmatpush1.msra.mxu0 0.0
    %2201 = vmatprep.subr.mxu0 0.0
    %2202 = vmatpush1.msra.mxu0 0.0
    %2203 = vmatprep.subr.mxu0 0.0
    %2204 = vmatpush1.msra.mxu0 0.0
    %2205 = vmatprep.subr.mxu0 0.0
    %2206 = vmatpush1.msra.mxu0 0.0
    %2207 = vmatprep.subr.mxu0 0.0
    %2208 = vmatpush1.msra.mxu0 0.0
    %2209 = vmatprep.subr.mxu0 0.0
    %2210 = vmatpush1.msra.mxu0 0.0
    %2211 = vmatprep.subr.mxu0 0.0
    %2212 = vmatpush1.msra.mxu0 0.0
    %2213 = vmatprep.subr.mxu0 0.0
    %2214 = vmatpush1.msra.mxu0 0.0
    %2215 = vmatprep.mubr.f32.mxu0 0.0
    %v2216 = vand.u32 %v1650, 4294901760
    %2217 = vmatmul.mubr.f32.gmra.mrb[0].mxu0 %v2216
    %v2218 = vpop.f32.mrb[0].mxu0
    %v2219 = vadd.f32 %v2129, %v2218
    %v2220 = vpop.f32.mrb[0].mxu0
    %2221 = vmatprep.mubr.f32.mxu0 0.0
    %v2222 = vand.u32 %v1653, 4294901760
    %2223 = vmatmul.mubr.f32.gmra.mrb[0].mxu0 %v2222
    %v2224 = vpop.f32.mrb[0].mxu0
    %v2225 = vadd.f32 %v2135, %v2224
    %v2226 = vpop.f32.mrb[0].mxu0
    %2227 = vmatprep.mubr.f32.mxu0 0.0
    %v2228 = vand.u32 %v1656, 4294901760
    %2229 = vmatmul.mubr.f32.gmra.mrb[0].mxu0 %v2228
    %v2230 = vpop.f32.mrb[0].mxu0
    %v2231 = vadd.f32 %v2141, %v2230
    %v2232 = vpop.f32.mrb[0].mxu0
    %2233 = vmatprep.mubr.f32.mxu0 0.0
    %v2234 = vand.u32 %v1659, 4294901760
    %2235 = vmatmul.mubr.f32.gmra.mrb[0].mxu0 %v2234
    %v2236 = vpop.f32.mrb[0].mxu0
    %v2237 = vadd.f32 %v2147, %v2236
    %v2238 = vpop.f32.mrb[0].mxu0
    %2239 = vdwg.mxu0
    %v2241 = vsel %vm1661, %v1161, 0
    %2243 = vmatprep.subr.mxu0 0.0
    %v2244 = vand.u32 %v2241, 4294901760
    %2245 = vmatpush1.msra.mxu0 %v2244
    %2246 = vmatprep.subr.mxu0 0.0
    %2247 = vmatpush1.msra.mxu0 0.0
    %2248 = vmatprep.subr.mxu0 0.0
    %2249 = vmatpush1.msra.mxu0 0.0
    %2250 = vmatprep.subr.mxu0 0.0
    %2251 = vmatpush1.msra.mxu0 0.0
    %2252 = vmatprep.subr.mxu0 0.0
    %2253 = vmatpush1.msra.mxu0 0.0
    %2254 = vmatprep.subr.mxu0 0.0
    %2255 = vmatpush1.msra.mxu0 0.0
    %2256 = vmatprep.subr.mxu0 0.0
    %2257 = vmatpush1.msra.mxu0 0.0
    %2258 = vmatprep.subr.mxu0 0.0
    %2259 = vmatpush1.msra.mxu0 0.0
    %2260 = vmatprep.subr.mxu0 0.0
    %2261 = vmatpush1.msra.mxu0 0.0
    %2262 = vmatprep.subr.mxu0 0.0
    %2263 = vmatpush1.msra.mxu0 0.0
    %2264 = vmatprep.subr.mxu0 0.0
    %2265 = vmatpush1.msra.mxu0 0.0
    %2266 = vmatprep.subr.mxu0 0.0
    %2267 = vmatpush1.msra.mxu0 0.0
    %2268 = vmatprep.subr.mxu0 0.0
    %2269 = vmatpush1.msra.mxu0 0.0
    %2270 = vmatprep.subr.mxu0 0.0
    %2271 = vmatpush1.msra.mxu0 0.0
    %2272 = vmatprep.subr.mxu0 0.0
    %2273 = vmatpush1.msra.mxu0 0.0
    %2274 = vmatprep.subr.mxu0 0.0
    %2275 = vmatpush1.msra.mxu0 0.0
    %2276 = vmatprep.subr.mxu0 0.0
    %2277 = vmatpush1.msra.mxu0 0.0
    %2278 = vmatprep.subr.mxu0 0.0
    %2279 = vmatpush1.msra.mxu0 0.0
    %2280 = vmatprep.subr.mxu0 0.0
    %2281 = vmatpush1.msra.mxu0 0.0
    %2282 = vmatprep.subr.mxu0 0.0
    %2283 = vmatpush1.msra.mxu0 0.0
    %2284 = vmatprep.subr.mxu0 0.0
    %2285 = vmatpush1.msra.mxu0 0.0
    %2286 = vmatprep.subr.mxu0 0.0
    %2287 = vmatpush1.msra.mxu0 0.0
    %2288 = vmatprep.subr.mxu0 0.0
    %2289 = vmatpush1.msra.mxu0 0.0
    %2290 = vmatprep.subr.mxu0 0.0
    %2291 = vmatpush1.msra.mxu0 0.0
    %2292 = vmatprep.subr.mxu0 0.0
    %2293 = vmatpush1.msra.mxu0 0.0
    %2294 = vmatprep.subr.mxu0 0.0
    %2295 = vmatpush1.msra.mxu0 0.0
    %2296 = vmatprep.subr.mxu0 0.0
    %2297 = vmatpush1.msra.mxu0 0.0
    %2298 = vmatprep.subr.mxu0 0.0
    %2299 = vmatpush1.msra.mxu0 0.0
    %2300 = vmatprep.subr.mxu0 0.0
    %2301 = vmatpush1.msra.mxu0 0.0
    %2302 = vmatprep.subr.mxu0 0.0
    %2303 = vmatpush1.msra.mxu0 0.0
    %2304 = vmatprep.subr.mxu0 0.0
    %2305 = vmatpush1.msra.mxu0 0.0
    %2306 = vmatprep.subr.mxu0 0.0
    %2307 = vmatpush1.msra.mxu0 0.0
    %2308 = vmatprep.mubr.f32.mxu0 0.0
    %v2309 = vand.u32 %v1650, 4294901760
    %v2310 = vsub.f32 %v1650, %v2309
    %v2311 = vand.u32 %v2310, 4294901760
    %v2312 = vsub.f32 %v2310, %v2311
    %v2313 = vand.u32 %v2312, 4294901760
    %2314 = vmatmul.mubr.f32.gmra.mrb[0].mxu0 %v2313
    %v2315 = vpop.f32.mrb[0].mxu0
    %v2316 = vadd.f32 %v2219, %v2315
    %v2317 = vpop.f32.mrb[0].mxu0
    %2318 = vmatprep.mubr.f32.mxu0 0.0
    %v2319 = vand.u32 %v1653, 4294901760
    %v2320 = vsub.f32 %v1653, %v2319
    %v2321 = vand.u32 %v2320, 4294901760
    %v2322 = vsub.f32 %v2320, %v2321
    %v2323 = vand.u32 %v2322, 4294901760
    %2324 = vmatmul.mubr.f32.gmra.mrb[0].mxu0 %v2323
    %v2325 = vpop.f32.mrb[0].mxu0
    %v2326 = vadd.f32 %v2225, %v2325
    %v2327 = vpop.f32.mrb[0].mxu0
    %2328 = vmatprep.mubr.f32.mxu0 0.0
    %v2329 = vand.u32 %v1656, 4294901760
    %v2330 = vsub.f32 %v1656, %v2329
    %v2331 = vand.u32 %v2330, 4294901760
    %v2332 = vsub.f32 %v2330, %v2331
    %v2333 = vand.u32 %v2332, 4294901760
    %2334 = vmatmul.mubr.f32.gmra.mrb[0].mxu0 %v2333
    %v2335 = vpop.f32.mrb[0].mxu0
    %v2336 = vadd.f32 %v2231, %v2335
    %v2337 = vpop.f32.mrb[0].mxu0
    %2338 = vmatprep.mubr.f32.mxu0 0.0
    %v2339 = vand.u32 %v1659, 4294901760
    %v2340 = vsub.f32 %v1659, %v2339
    %v2341 = vand.u32 %v2340, 4294901760
    %v2342 = vsub.f32 %v2340, %v2341
    %v2343 = vand.u32 %v2342, 4294901760
    %2344 = vmatmul.mubr.f32.gmra.mrb[0].mxu0 %v2343
    %v2345 = vpop.f32.mrb[0].mxu0
    %v2346 = vadd.f32 %v2237, %v2345
    %v2347 = vpop.f32.mrb[0].mxu0
    %2348 = vdwg.mxu0
    %2349 = vmatprep.subr.mxu0 0.0
    %v2350 = vand.u32 %v2241, 4294901760
    %v2351 = vsub.f32 %v2241, %v2350
    %v2352 = vand.u32 %v2351, 4294901760
    %v2353 = vsub.f32 %v2351, %v2352
    %v2354 = vand.u32 %v2353, 4294901760
    %2355 = vmatpush1.msra.mxu0 %v2354
    %2356 = vmatprep.subr.mxu0 0.0
    %2357 = vmatpush1.msra.mxu0 0.0
    %2358 = vmatprep.subr.mxu0 0.0
    %2359 = vmatpush1.msra.mxu0 0.0
    %2360 = vmatprep.subr.mxu0 0.0
    %2361 = vmatpush1.msra.mxu0 0.0
    %2362 = vmatprep.subr.mxu0 0.0
    %2363 = vmatpush1.msra.mxu0 0.0
    %2364 = vmatprep.subr.mxu0 0.0
    %2365 = vmatpush1.msra.mxu0 0.0
    %2366 = vmatprep.subr.mxu0 0.0
    %2367 = vmatpush1.msra.mxu0 0.0
    %2368 = vmatprep.subr.mxu0 0.0
    %2369 = vmatpush1.msra.mxu0 0.0
    %2370 = vmatprep.subr.mxu0 0.0
    %2371 = vmatpush1.msra.mxu0 0.0
    %2372 = vmatprep.subr.mxu0 0.0
    %2373 = vmatpush1.msra.mxu0 0.0
    %2374 = vmatprep.subr.mxu0 0.0
    %2375 = vmatpush1.msra.mxu0 0.0
    %2376 = vmatprep.subr.mxu0 0.0
    %2377 = vmatpush1.msra.mxu0 0.0
    %2378 = vmatprep.subr.mxu0 0.0
    %2379 = vmatpush1.msra.mxu0 0.0
    %2380 = vmatprep.subr.mxu0 0.0
    %2381 = vmatpush1.msra.mxu0 0.0
    %2382 = vmatprep.subr.mxu0 0.0
    %2383 = vmatpush1.msra.mxu0 0.0
    %2384 = vmatprep.subr.mxu0 0.0
    %2385 = vmatpush1.msra.mxu0 0.0
    %2386 = vmatprep.subr.mxu0 0.0
    %2387 = vmatpush1.msra.mxu0 0.0
    %2388 = vmatprep.subr.mxu0 0.0
    %2389 = vmatpush1.msra.mxu0 0.0
    %2390 = vmatprep.subr.mxu0 0.0
    %2391 = vmatpush1.msra.mxu0 0.0
    %2392 = vmatprep.subr.mxu0 0.0
    %2393 = vmatpush1.msra.mxu0 0.0
    %2394 = vmatprep.subr.mxu0 0.0
    %2395 = vmatpush1.msra.mxu0 0.0
    %2396 = vmatprep.subr.mxu0 0.0
    %2397 = vmatpush1.msra.mxu0 0.0
    %2398 = vmatprep.subr.mxu0 0.0
    %2399 = vmatpush1.msra.mxu0 0.0
    %2400 = vmatprep.subr.mxu0 0.0
    %2401 = vmatpush1.msra.mxu0 0.0
    %2402 = vmatprep.subr.mxu0 0.0
    %2403 = vmatpush1.msra.mxu0 0.0
    %2404 = vmatprep.subr.mxu0 0.0
    %2405 = vmatpush1.msra.mxu0 0.0
    %2406 = vmatprep.subr.mxu0 0.0
    %2407 = vmatpush1.msra.mxu0 0.0
    %2408 = vmatprep.subr.mxu0 0.0
    %2409 = vmatpush1.msra.mxu0 0.0
    %2410 = vmatprep.subr.mxu0 0.0
    %2411 = vmatpush1.msra.mxu0 0.0
    %2412 = vmatprep.subr.mxu0 0.0
    %2413 = vmatpush1.msra.mxu0 0.0
    %2414 = vmatprep.subr.mxu0 0.0
    %2415 = vmatpush1.msra.mxu0 0.0
    %2416 = vmatprep.subr.mxu0 0.0
    %2417 = vmatpush1.msra.mxu0 0.0
    %2418 = vmatprep.mubr.f32.mxu0 0.0
    %v2419 = vand.u32 %v1650, 4294901760
    %2420 = vmatmul.mubr.f32.gmra.mrb[0].mxu0 %v2419
    %v2421 = vpop.f32.mrb[0].mxu0
    %v2422 = vadd.f32 %v2316, %v2421
    %v2423 = vpop.f32.mrb[0].mxu0
    %2424 = vmatprep.mubr.f32.mxu0 0.0
    %v2425 = vand.u32 %v1653, 4294901760
    %2426 = vmatmul.mubr.f32.gmra.mrb[0].mxu0 %v2425
    %v2427 = vpop.f32.mrb[0].mxu0
    %v2428 = vadd.f32 %v2326, %v2427
    %v2429 = vpop.f32.mrb[0].mxu0
    %2430 = vmatprep.mubr.f32.mxu0 0.0
    %v2431 = vand.u32 %v1656, 4294901760
    %2432 = vmatmul.mubr.f32.gmra.mrb[0].mxu0 %v2431
    %v2433 = vpop.f32.mrb[0].mxu0
    %v2434 = vadd.f32 %v2336, %v2433
    %v2435 = vpop.f32.mrb[0].mxu0
    %2436 = vmatprep.mubr.f32.mxu0 0.0
    %v2437 = vand.u32 %v1659, 4294901760
    %2438 = vmatmul.mubr.f32.gmra.mrb[0].mxu0 %v2437
    %v2439 = vpop.f32.mrb[0].mxu0
    %v2440 = vadd.f32 %v2346, %v2439
    %v2441 = vpop.f32.mrb[0].mxu0
    %2442 = vdwg.mxu0
    %2443 = vmatprep.subr.mxu0 0.0
    %v2444 = vand.u32 %v2241, 4294901760
    %v2445 = vsub.f32 %v2241, %v2444
    %2446 = vmatpush1.msra.mxu0 %v2445
    %2447 = vmatprep.subr.mxu0 0.0
    %2448 = vmatpush1.msra.mxu0 0.0
    %2449 = vmatprep.subr.mxu0 0.0
    %2450 = vmatpush1.msra.mxu0 0.0
    %2451 = vmatprep.subr.mxu0 0.0
    %2452 = vmatpush1.msra.mxu0 0.0
    %2453 = vmatprep.subr.mxu0 0.0
    %2454 = vmatpush1.msra.mxu0 0.0
    %2455 = vmatprep.subr.mxu0 0.0
    %2456 = vmatpush1.msra.mxu0 0.0
    %2457 = vmatprep.subr.mxu0 0.0
    %2458 = vmatpush1.msra.mxu0 0.0
    %2459 = vmatprep.subr.mxu0 0.0
    %2460 = vmatpush1.msra.mxu0 0.0
    %2461 = vmatprep.subr.mxu0 0.0
    %2462 = vmatpush1.msra.mxu0 0.0
    %2463 = vmatprep.subr.mxu0 0.0
    %2464 = vmatpush1.msra.mxu0 0.0
    %2465 = vmatprep.subr.mxu0 0.0
    %2466 = vmatpush1.msra.mxu0 0.0
    %2467 = vmatprep.subr.mxu0 0.0
    %2468 = vmatpush1.msra.mxu0 0.0
    %2469 = vmatprep.subr.mxu0 0.0
    %2470 = vmatpush1.msra.mxu0 0.0
    %2471 = vmatprep.subr.mxu0 0.0
    %2472 = vmatpush1.msra.mxu0 0.0
    %2473 = vmatprep.subr.mxu0 0.0
    %2474 = vmatpush1.msra.mxu0 0.0
    %2475 = vmatprep.subr.mxu0 0.0
    %2476 = vmatpush1.msra.mxu0 0.0
    %2477 = vmatprep.subr.mxu0 0.0
    %2478 = vmatpush1.msra.mxu0 0.0
    %2479 = vmatprep.subr.mxu0 0.0
    %2480 = vmatpush1.msra.mxu0 0.0
    %2481 = vmatprep.subr.mxu0 0.0
    %2482 = vmatpush1.msra.mxu0 0.0
    %2483 = vmatprep.subr.mxu0 0.0
    %2484 = vmatpush1.msra.mxu0 0.0
    %2485 = vmatprep.subr.mxu0 0.0
    %2486 = vmatpush1.msra.mxu0 0.0
    %2487 = vmatprep.subr.mxu0 0.0
    %2488 = vmatpush1.msra.mxu0 0.0
    %2489 = vmatprep.subr.mxu0 0.0
    %2490 = vmatpush1.msra.mxu0 0.0
    %2491 = vmatprep.subr.mxu0 0.0
    %2492 = vmatpush1.msra.mxu0 0.0
    %2493 = vmatprep.subr.mxu0 0.0
    %2494 = vmatpush1.msra.mxu0 0.0
    %2495 = vmatprep.subr.mxu0 0.0
    %2496 = vmatpush1.msra.mxu0 0.0
    %2497 = vmatprep.subr.mxu0 0.0
    %2498 = vmatpush1.msra.mxu0 0.0
    %2499 = vmatprep.subr.mxu0 0.0
    %2500 = vmatpush1.msra.mxu0 0.0
    %2501 = vmatprep.subr.mxu0 0.0
    %2502 = vmatpush1.msra.mxu0 0.0
    %2503 = vmatprep.subr.mxu0 0.0
    %2504 = vmatpush1.msra.mxu0 0.0
    %2505 = vmatprep.subr.mxu0 0.0
    %2506 = vmatpush1.msra.mxu0 0.0
    %2507 = vmatprep.subr.mxu0 0.0
    %2508 = vmatpush1.msra.mxu0 0.0
    %2509 = vmatprep.mubr.f32.mxu0 0.0
    %v2510 = vand.u32 %v1650, 4294901760
    %v2511 = vsub.f32 %v1650, %v2510
    %2512 = vmatmul.mubr.f32.gmra.mrb[0].mxu0 %v2511
    %v2513 = vpop.f32.mrb[0].mxu0
    %v2514 = vadd.f32 %v2422, %v2513
    %v2515 = vpop.f32.mrb[0].mxu0
    %2516 = vmatprep.mubr.f32.mxu0 0.0
    %v2517 = vand.u32 %v1653, 4294901760
    %v2518 = vsub.f32 %v1653, %v2517
    %2519 = vmatmul.mubr.f32.gmra.mrb[0].mxu0 %v2518
    %v2520 = vpop.f32.mrb[0].mxu0
    %v2521 = vadd.f32 %v2428, %v2520
    %v2522 = vpop.f32.mrb[0].mxu0
    %2523 = vmatprep.mubr.f32.mxu0 0.0
    %v2524 = vand.u32 %v1656, 4294901760
    %v2525 = vsub.f32 %v1656, %v2524
    %2526 = vmatmul.mubr.f32.gmra.mrb[0].mxu0 %v2525
    %v2527 = vpop.f32.mrb[0].mxu0
    %v2528 = vadd.f32 %v2434, %v2527
    %v2529 = vpop.f32.mrb[0].mxu0
    %2530 = vmatprep.mubr.f32.mxu0 0.0
    %v2531 = vand.u32 %v1659, 4294901760
    %v2532 = vsub.f32 %v1659, %v2531
    %2533 = vmatmul.mubr.f32.gmra.mrb[0].mxu0 %v2532
    %v2534 = vpop.f32.mrb[0].mxu0
    %v2535 = vadd.f32 %v2440, %v2534
    %v2536 = vpop.f32.mrb[0].mxu0
    %2537 = vdwg.mxu0
    %2538 = vmatprep.subr.mxu0 0.0
    %v2539 = vand.u32 %v2241, 4294901760
    %2540 = vmatpush1.msra.mxu0 %v2539
    %2541 = vmatprep.subr.mxu0 0.0
    %2542 = vmatpush1.msra.mxu0 0.0
    %2543 = vmatprep.subr.mxu0 0.0
    %2544 = vmatpush1.msra.mxu0 0.0
    %2545 = vmatprep.subr.mxu0 0.0
    %2546 = vmatpush1.msra.mxu0 0.0
    %2547 = vmatprep.subr.mxu0 0.0
    %2548 = vmatpush1.msra.mxu0 0.0
    %2549 = vmatprep.subr.mxu0 0.0
    %2550 = vmatpush1.msra.mxu0 0.0
    %2551 = vmatprep.subr.mxu0 0.0
    %2552 = vmatpush1.msra.mxu0 0.0
    %2553 = vmatprep.subr.mxu0 0.0
    %2554 = vmatpush1.msra.mxu0 0.0
    %2555 = vmatprep.subr.mxu0 0.0
    %2556 = vmatpush1.msra.mxu0 0.0
    %2557 = vmatprep.subr.mxu0 0.0
    %2558 = vmatpush1.msra.mxu0 0.0
    %2559 = vmatprep.subr.mxu0 0.0
    %2560 = vmatpush1.msra.mxu0 0.0
    %2561 = vmatprep.subr.mxu0 0.0
    %2562 = vmatpush1.msra.mxu0 0.0
    %2563 = vmatprep.subr.mxu0 0.0
    %2564 = vmatpush1.msra.mxu0 0.0
    %2565 = vmatprep.subr.mxu0 0.0
    %2566 = vmatpush1.msra.mxu0 0.0
    %2567 = vmatprep.subr.mxu0 0.0
    %2568 = vmatpush1.msra.mxu0 0.0
    %2569 = vmatprep.subr.mxu0 0.0
    %2570 = vmatpush1.msra.mxu0 0.0
    %2571 = vmatprep.subr.mxu0 0.0
    %2572 = vmatpush1.msra.mxu0 0.0
    %2573 = vmatprep.subr.mxu0 0.0
    %2574 = vmatpush1.msra.mxu0 0.0
    %2575 = vmatprep.subr.mxu0 0.0
    %2576 = vmatpush1.msra.mxu0 0.0
    %2577 = vmatprep.subr.mxu0 0.0
    %2578 = vmatpush1.msra.mxu0 0.0
    %2579 = vmatprep.subr.mxu0 0.0
    %2580 = vmatpush1.msra.mxu0 0.0
    %2581 = vmatprep.subr.mxu0 0.0
    %2582 = vmatpush1.msra.mxu0 0.0
    %2583 = vmatprep.subr.mxu0 0.0
    %2584 = vmatpush1.msra.mxu0 0.0
    %2585 = vmatprep.subr.mxu0 0.0
    %2586 = vmatpush1.msra.mxu0 0.0
    %2587 = vmatprep.subr.mxu0 0.0
    %2588 = vmatpush1.msra.mxu0 0.0
    %2589 = vmatprep.subr.mxu0 0.0
    %2590 = vmatpush1.msra.mxu0 0.0
    %2591 = vmatprep.subr.mxu0 0.0
    %2592 = vmatpush1.msra.mxu0 0.0
    %2593 = vmatprep.subr.mxu0 0.0
    %2594 = vmatpush1.msra.mxu0 0.0
    %2595 = vmatprep.subr.mxu0 0.0
    %2596 = vmatpush1.msra.mxu0 0.0
    %2597 = vmatprep.subr.mxu0 0.0
    %2598 = vmatpush1.msra.mxu0 0.0
    %2599 = vmatprep.subr.mxu0 0.0
    %2600 = vmatpush1.msra.mxu0 0.0
    %2601 = vmatprep.subr.mxu0 0.0
    %2602 = vmatpush1.msra.mxu0 0.0
    %2603 = vmatprep.mubr.f32.mxu0 0.0
    %v2604 = vand.u32 %v1650, 4294901760
    %v2605 = vsub.f32 %v1650, %v2604
    %v2606 = vand.u32 %v2605, 4294901760
    %2607 = vmatmul.mubr.f32.gmra.mrb[0].mxu0 %v2606
    %v2608 = vpop.f32.mrb[0].mxu0
    %v2609 = vadd.f32 %v2514, %v2608
    %v2610 = vpop.f32.mrb[0].mxu0
    %2611 = vmatprep.mubr.f32.mxu0 0.0
    %v2612 = vand.u32 %v1653, 4294901760
    %v2613 = vsub.f32 %v1653, %v2612
    %v2614 = vand.u32 %v2613, 4294901760
    %2615 = vmatmul.mubr.f32.gmra.mrb[0].mxu0 %v2614
    %v2616 = vpop.f32.mrb[0].mxu0
    %v2617 = vadd.f32 %v2521, %v2616
    %v2618 = vpop.f32.mrb[0].mxu0
    %2619 = vmatprep.mubr.f32.mxu0 0.0
    %v2620 = vand.u32 %v1656, 4294901760
    %v2621 = vsub.f32 %v1656, %v2620
    %v2622 = vand.u32 %v2621, 4294901760
    %2623 = vmatmul.mubr.f32.gmra.mrb[0].mxu0 %v2622
    %v2624 = vpop.f32.mrb[0].mxu0
    %v2625 = vadd.f32 %v2528, %v2624
    %v2626 = vpop.f32.mrb[0].mxu0
    %2627 = vmatprep.mubr.f32.mxu0 0.0
    %v2628 = vand.u32 %v1659, 4294901760
    %v2629 = vsub.f32 %v1659, %v2628
    %v2630 = vand.u32 %v2629, 4294901760
    %2631 = vmatmul.mubr.f32.gmra.mrb[0].mxu0 %v2630
    %v2632 = vpop.f32.mrb[0].mxu0
    %v2633 = vadd.f32 %v2535, %v2632
    %v2634 = vpop.f32.mrb[0].mxu0
    %2635 = vdwg.mxu0
    %2636 = vmatprep.subr.mxu0 0.0
    %v2637 = vand.u32 %v2241, 4294901760
    %v2638 = vsub.f32 %v2241, %v2637
    %v2639 = vand.u32 %v2638, 4294901760
    %2640 = vmatpush1.msra.mxu0 %v2639
    %2641 = vmatprep.subr.mxu0 0.0
    %2642 = vmatpush1.msra.mxu0 0.0
    %2643 = vmatprep.subr.mxu0 0.0
    %2644 = vmatpush1.msra.mxu0 0.0
    %2645 = vmatprep.subr.mxu0 0.0
    %2646 = vmatpush1.msra.mxu0 0.0
    %2647 = vmatprep.subr.mxu0 0.0
    %2648 = vmatpush1.msra.mxu0 0.0
    %2649 = vmatprep.subr.mxu0 0.0
    %2650 = vmatpush1.msra.mxu0 0.0
    %2651 = vmatprep.subr.mxu0 0.0
    %2652 = vmatpush1.msra.mxu0 0.0
    %2653 = vmatprep.subr.mxu0 0.0
    %2654 = vmatpush1.msra.mxu0 0.0
    %2655 = vmatprep.subr.mxu0 0.0
    %2656 = vmatpush1.msra.mxu0 0.0
    %2657 = vmatprep.subr.mxu0 0.0
    %2658 = vmatpush1.msra.mxu0 0.0
    %2659 = vmatprep.subr.mxu0 0.0
    %2660 = vmatpush1.msra.mxu0 0.0
    %2661 = vmatprep.subr.mxu0 0.0
    %2662 = vmatpush1.msra.mxu0 0.0
    %2663 = vmatprep.subr.mxu0 0.0
    %2664 = vmatpush1.msra.mxu0 0.0
    %2665 = vmatprep.subr.mxu0 0.0
    %2666 = vmatpush1.msra.mxu0 0.0
    %2667 = vmatprep.subr.mxu0 0.0
    %2668 = vmatpush1.msra.mxu0 0.0
    %2669 = vmatprep.subr.mxu0 0.0
    %2670 = vmatpush1.msra.mxu0 0.0
    %2671 = vmatprep.subr.mxu0 0.0
    %2672 = vmatpush1.msra.mxu0 0.0
    %2673 = vmatprep.subr.mxu0 0.0
    %2674 = vmatpush1.msra.mxu0 0.0
    %2675 = vmatprep.subr.mxu0 0.0
    %2676 = vmatpush1.msra.mxu0 0.0
    %2677 = vmatprep.subr.mxu0 0.0
    %2678 = vmatpush1.msra.mxu0 0.0
    %2679 = vmatprep.subr.mxu0 0.0
    %2680 = vmatpush1.msra.mxu0 0.0
    %2681 = vmatprep.subr.mxu0 0.0
    %2682 = vmatpush1.msra.mxu0 0.0
    %2683 = vmatprep.subr.mxu0 0.0
    %2684 = vmatpush1.msra.mxu0 0.0
    %2685 = vmatprep.subr.mxu0 0.0
    %2686 = vmatpush1.msra.mxu0 0.0
    %2687 = vmatprep.subr.mxu0 0.0
    %2688 = vmatpush1.msra.mxu0 0.0
    %2689 = vmatprep.subr.mxu0 0.0
    %2690 = vmatpush1.msra.mxu0 0.0
    %2691 = vmatprep.subr.mxu0 0.0
    %2692 = vmatpush1.msra.mxu0 0.0
    %2693 = vmatprep.subr.mxu0 0.0
    %2694 = vmatpush1.msra.mxu0 0.0
    %2695 = vmatprep.subr.mxu0 0.0
    %2696 = vmatpush1.msra.mxu0 0.0
    %2697 = vmatprep.subr.mxu0 0.0
    %2698 = vmatpush1.msra.mxu0 0.0
    %2699 = vmatprep.subr.mxu0 0.0
    %2700 = vmatpush1.msra.mxu0 0.0
    %2701 = vmatprep.subr.mxu0 0.0
    %2702 = vmatpush1.msra.mxu0 0.0
    %2703 = vmatprep.mubr.f32.mxu0 0.0
    %v2704 = vand.u32 %v1650, 4294901760
    %2705 = vmatmul.mubr.f32.gmra.mrb[0].mxu0 %v2704
    %v2706 = vpop.f32.mrb[0].mxu0
    %v2707 = vadd.f32 %v2609, %v2706
    %v2708 = vpop.f32.mrb[0].mxu0
    %2709 = vmatprep.mubr.f32.mxu0 0.0
    %v2710 = vand.u32 %v1653, 4294901760
    %2711 = vmatmul.mubr.f32.gmra.mrb[0].mxu0 %v2710
    %v2712 = vpop.f32.mrb[0].mxu0
    %v2713 = vadd.f32 %v2617, %v2712
    %v2714 = vpop.f32.mrb[0].mxu0
    %2715 = vmatprep.mubr.f32.mxu0 0.0
    %v2716 = vand.u32 %v1656, 4294901760
    %2717 = vmatmul.mubr.f32.gmra.mrb[0].mxu0 %v2716
    %v2718 = vpop.f32.mrb[0].mxu0
    %v2719 = vadd.f32 %v2625, %v2718
    %v2720 = vpop.f32.mrb[0].mxu0
    %2721 = vmatprep.mubr.f32.mxu0 0.0
    %v2722 = vand.u32 %v1659, 4294901760
    %2723 = vmatmul.mubr.f32.gmra.mrb[0].mxu0 %v2722
    %v2724 = vpop.f32.mrb[0].mxu0
    %v2725 = vadd.f32 %v2633, %v2724
    %v2726 = vpop.f32.mrb[0].mxu0
    %2727 = vdwg.mxu0
    %2728 = vmatprep.subr.mxu0 0.0
    %v2729 = vand.u32 %v2241, 4294901760
    %2730 = vmatpush1.msra.mxu0 %v2729
    %2731 = vmatprep.subr.mxu0 0.0
    %2732 = vmatpush1.msra.mxu0 0.0
    %2733 = vmatprep.subr.mxu0 0.0
    %2734 = vmatpush1.msra.mxu0 0.0
    %2735 = vmatprep.subr.mxu0 0.0
    %2736 = vmatpush1.msra.mxu0 0.0
    %2737 = vmatprep.subr.mxu0 0.0
    %2738 = vmatpush1.msra.mxu0 0.0
    %2739 = vmatprep.subr.mxu0 0.0
    %2740 = vmatpush1.msra.mxu0 0.0
    %2741 = vmatprep.subr.mxu0 0.0
    %2742 = vmatpush1.msra.mxu0 0.0
    %2743 = vmatprep.subr.mxu0 0.0
    %2744 = vmatpush1.msra.mxu0 0.0
    %2745 = vmatprep.subr.mxu0 0.0
    %2746 = vmatpush1.msra.mxu0 0.0
    %2747 = vmatprep.subr.mxu0 0.0
    %2748 = vmatpush1.msra.mxu0 0.0
    %2749 = vmatprep.subr.mxu0 0.0
    %2750 = vmatpush1.msra.mxu0 0.0
    %2751 = vmatprep.subr.mxu0 0.0
    %2752 = vmatpush1.msra.mxu0 0.0
    %2753 = vmatprep.subr.mxu0 0.0
    %2754 = vmatpush1.msra.mxu0 0.0
    %2755 = vmatprep.subr.mxu0 0.0
    %2756 = vmatpush1.msra.mxu0 0.0
    %2757 = vmatprep.subr.mxu0 0.0
    %2758 = vmatpush1.msra.mxu0 0.0
    %2759 = vmatprep.subr.mxu0 0.0
    %2760 = vmatpush1.msra.mxu0 0.0
    %2761 = vmatprep.subr.mxu0 0.0
    %2762 = vmatpush1.msra.mxu0 0.0
    %2763 = vmatprep.subr.mxu0 0.0
    %2764 = vmatpush1.msra.mxu0 0.0
    %2765 = vmatprep.subr.mxu0 0.0
    %2766 = vmatpush1.msra.mxu0 0.0
    %2767 = vmatprep.subr.mxu0 0.0
    %2768 = vmatpush1.msra.mxu0 0.0
    %2769 = vmatprep.subr.mxu0 0.0
    %2770 = vmatpush1.msra.mxu0 0.0
    %2771 = vmatprep.subr.mxu0 0.0
    %2772 = vmatpush1.msra.mxu0 0.0
    %2773 = vmatprep.subr.mxu0 0.0
    %2774 = vmatpush1.msra.mxu0 0.0
    %2775 = vmatprep.subr.mxu0 0.0
    %2776 = vmatpush1.msra.mxu0 0.0
    %2777 = vmatprep.subr.mxu0 0.0
    %2778 = vmatpush1.msra.mxu0 0.0
    %2779 = vmatprep.subr.mxu0 0.0
    %2780 = vmatpush1.msra.mxu0 0.0
    %2781 = vmatprep.subr.mxu0 0.0
    %2782 = vmatpush1.msra.mxu0 0.0
    %2783 = vmatprep.subr.mxu0 0.0
    %2784 = vmatpush1.msra.mxu0 0.0
    %2785 = vmatprep.subr.mxu0 0.0
    %2786 = vmatpush1.msra.mxu0 0.0
    %2787 = vmatprep.subr.mxu0 0.0
    %2788 = vmatpush1.msra.mxu0 0.0
    %2789 = vmatprep.subr.mxu0 0.0
    %2790 = vmatpush1.msra.mxu0 0.0
    %2791 = vmatprep.subr.mxu0 0.0
    %2792 = vmatpush1.msra.mxu0 0.0
    %2793 = vmatprep.mubr.f32.mxu0 0.0
    %v2794 = vand.u32 %v1650, 4294901760
    %2795 = vmatmul.mubr.f32.gmra.mrb[0].mxu0 %v2794
    %v2796 = vpop.f32.mrb[0].mxu0
    %v2797 = vadd.f32 %v2707, %v2796
    %v2798 = vpop.f32.mrb[0].mxu0
    %2799 = vmatprep.mubr.f32.mxu0 0.0
    %v2800 = vand.u32 %v1653, 4294901760
    %2801 = vmatmul.mubr.f32.gmra.mrb[0].mxu0 %v2800
    %v2802 = vpop.f32.mrb[0].mxu0
    %v2803 = vadd.f32 %v2713, %v2802
    %v2804 = vpop.f32.mrb[0].mxu0
    %2805 = vmatprep.mubr.f32.mxu0 0.0
    %v2806 = vand.u32 %v1656, 4294901760
    %2807 = vmatmul.mubr.f32.gmra.mrb[0].mxu0 %v2806
    %v2808 = vpop.f32.mrb[0].mxu0
    %v2809 = vadd.f32 %v2719, %v2808
    %v2810 = vpop.f32.mrb[0].mxu0
    %2811 = vmatprep.mubr.f32.mxu0 0.0
    %v2812 = vand.u32 %v1659, 4294901760
    %2813 = vmatmul.mubr.f32.gmra.mrb[0].mxu0 %v2812
    %v2814 = vpop.f32.mrb[0].mxu0
    %v2815 = vadd.f32 %v2725, %v2814
    %v2816 = vpop.f32.mrb[0].mxu0
    %2817 = vdwg.mxu0
    %v2818 = vxor.u32 %v2797, 2147483648
    %v2819 = vxor.u32 %v2803, 2147483648
    %v2820 = vxor.u32 %v2809, 2147483648
    %v2821 = vxor.u32 %v2815, 2147483648
    %v2822 = vmul.f32 %v2818, 1.442695
    %v2823 = vpow.pop %v2822
    %v2824 = vmul.f32 %v2819, 1.442695
    %v2825 = vpow.pop %v2824
    %v2826 = vmul.f32 %v2820, 1.442695
    %v2827 = vpow.pop %v2826
    %v2828 = vmul.f32 %v2821, 1.442695
    %v2829 = vpow.pop %v2828
    %v2830 = vadd.f32 %v2823, 1.0
    %v2831 = vadd.f32 %v2825, 1.0
    %v2832 = vadd.f32 %v2827, 1.0
    %v2833 = vadd.f32 %v2829, 1.0
    %v2834 = vrcp.pop %v2830
    %v2835 = vmul.f32 1.0, %v2834
    %v2836 = vrcp.pop %v2831
    %v2837 = vmul.f32 1.0, %v2836
    %v2838 = vrcp.pop %v2832
    %v2839 = vmul.f32 1.0, %v2838
    %v2840 = vrcp.pop %v2833
    %v2841 = vmul.f32 1.0, %v2840
    %2843 = vset.pattern.permute.xlu0 0
    %2844 = vperm.xlu0 %2843, %v2835
    %v2845 = vpop.permute.xlu0 %2844
    %2848 = vset.pattern.permute.xlu0 0
    %2849 = vperm.xlu0 %2848, %v2837
    %v2850 = vpop.permute.xlu0 %2849
    %2853 = vset.pattern.permute.xlu0 0
    %2854 = vperm.xlu0 %2853, %v2839
    %v2855 = vpop.permute.xlu0 %2854
    %2858 = vset.pattern.permute.xlu0 0
    %2859 = vperm.xlu0 %2858, %v2841
    %v2860 = vpop.permute.xlu0 %2859
    %v2862 = vmul.f32 %v34, %v2845
    %v2863 = vmul.f32 %v35, %v2845
    %v2864 = vmul.f32 %v36, %v2850
    %v2865 = vmul.f32 %v37, %v2850
    %v2866 = vmul.f32 %v38, %v2855
    %v2867 = vmul.f32 %v39, %v2855
    %v2868 = vmul.f32 %v40, %v2860
    %v2869 = vmul.f32 %v41, %v2860
    %2870 = vst [vmem:[#allocation5] sm:$0xff] %v2862
    %2871 = vst [vmem:[#allocation5 + $0x8] sm:$0xff] %v2863
    %2872 = vst [vmem:[#allocation5 + $0x10] sm:$0xff] %v2864
    %2873 = vst [vmem:[#allocation5 + $0x18] sm:$0xff] %v2865
    %2874 = vst [vmem:[#allocation5 + $0x20] sm:$0xff] %v2866
    %2875 = vst [vmem:[#allocation5 + $0x28] sm:$0xff] %v2867
    %2876 = vst [vmem:[#allocation5 + $0x30] sm:$0xff] %v2868
    %2877 = vst [vmem:[#allocation5 + $0x38] sm:$0xff] %v2869
    %s2878 = scalar_lea.vmem [#allocation2], 64
    %v2879 = vld [vmem:[%s2878] sm:$0xff]
    %v2880 = vld [vmem:[%s2878 + $0x8] sm:$0xff]
    %v2881 = vld [vmem:[%s2878 + $0x10] sm:$0xff]
    %v2882 = vld [vmem:[%s2878 + $0x18] sm:$0xff]
    %v2883 = vld [vmem:[%s2878 + $0x20] sm:$0xff]
    %v2884 = vld [vmem:[%s2878 + $0x28] sm:$0xff]
    %v2885 = vld [vmem:[%s2878 + $0x30] sm:$0xff]
    %v2886 = vld [vmem:[%s2878 + $0x38] sm:$0xff]
    %2887 = vmatprep.subr.mxu0 0.0
    %2888 = vmatpush1.msra.mxu0 1.0
    %2889 = vmatprep.subr.mxu0 0.0
    %2890 = vmatpush1.msra.mxu0 1.0
    %2891 = vmatprep.subr.mxu0 0.0
    %2892 = vmatpush1.msra.mxu0 1.0
    %2893 = vmatprep.subr.mxu0 0.0
    %2894 = vmatpush1.msra.mxu0 1.0
    %2895 = vmatprep.subr.mxu0 0.0
    %2896 = vmatpush1.msra.mxu0 1.0
    %2897 = vmatprep.subr.mxu0 0.0
    %2898 = vmatpush1.msra.mxu0 1.0
    %2899 = vmatprep.subr.mxu0 0.0
    %2900 = vmatpush1.msra.mxu0 1.0
    %2901 = vmatprep.subr.mxu0 0.0
    %2902 = vmatpush1.msra.mxu0 1.0
    %2903 = vmatprep.subr.mxu0 0.0
    %2904 = vmatpush1.msra.mxu0 1.0
    %2905 = vmatprep.subr.mxu0 0.0
    %2906 = vmatpush1.msra.mxu0 1.0
    %2907 = vmatprep.subr.mxu0 0.0
    %2908 = vmatpush1.msra.mxu0 1.0
    %2909 = vmatprep.subr.mxu0 0.0
    %2910 = vmatpush1.msra.mxu0 1.0
    %2911 = vmatprep.subr.mxu0 0.0
    %2912 = vmatpush1.msra.mxu0 1.0
    %2913 = vmatprep.subr.mxu0 0.0
    %2914 = vmatpush1.msra.mxu0 1.0
    %2915 = vmatprep.subr.mxu0 0.0
    %2916 = vmatpush1.msra.mxu0 1.0
    %2917 = vmatprep.subr.mxu0 0.0
    %2918 = vmatpush1.msra.mxu0 1.0
    %2919 = vmatprep.subr.mxu0 0.0
    %2920 = vmatpush1.msra.mxu0 1.0
    %2921 = vmatprep.subr.mxu0 0.0
    %2922 = vmatpush1.msra.mxu0 1.0
    %2923 = vmatprep.subr.mxu0 0.0
    %2924 = vmatpush1.msra.mxu0 1.0
    %2925 = vmatprep.subr.mxu0 0.0
    %2926 = vmatpush1.msra.mxu0 1.0
    %2927 = vmatprep.subr.mxu0 0.0
    %2928 = vmatpush1.msra.mxu0 1.0
    %2929 = vmatprep.subr.mxu0 0.0
    %2930 = vmatpush1.msra.mxu0 1.0
    %2931 = vmatprep.subr.mxu0 0.0
    %2932 = vmatpush1.msra.mxu0 1.0
    %2933 = vmatprep.subr.mxu0 0.0
    %2934 = vmatpush1.msra.mxu0 1.0
    %2935 = vmatprep.subr.mxu0 0.0
    %2936 = vmatpush1.msra.mxu0 1.0
    %2937 = vmatprep.subr.mxu0 0.0
    %2938 = vmatpush1.msra.mxu0 1.0
    %2939 = vmatprep.subr.mxu0 0.0
    %2940 = vmatpush1.msra.mxu0 1.0
    %2941 = vmatprep.subr.mxu0 0.0
    %2942 = vmatpush1.msra.mxu0 1.0
    %2943 = vmatprep.subr.mxu0 0.0
    %2944 = vmatpush1.msra.mxu0 1.0
    %2945 = vmatprep.subr.mxu0 0.0
    %2946 = vmatpush1.msra.mxu0 1.0
    %2947 = vmatprep.subr.mxu0 0.0
    %2948 = vmatpush1.msra.mxu0 1.0
    %2949 = vmatprep.subr.mxu0 0.0
    %2950 = vmatpush1.msra.mxu0 1.0
    %v2951 = vand.u32 %v2880, 4294901760
    %v2952 = vsub.f32 %v2880, %v2951
    %v2953 = vand.u32 %v2952, 4294901760
    %v2954 = vsub.f32 %v2952, %v2953
    %v2955 = vand.u32 %v2954, 4294901760
    %2956 = vmatprep.mubr.f32.mxu0 %v2955
    %v2957 = vand.u32 %v2879, 4294901760
    %v2958 = vsub.f32 %v2879, %v2957
    %v2959 = vand.u32 %v2958, 4294901760
    %v2960 = vsub.f32 %v2958, %v2959
    %v2961 = vand.u32 %v2960, 4294901760
    %2962 = vmatmul.mubr.f32.gmra.mrb[0].mxu0 %v2961
    %v2963 = vpop.f32.mrb[0].mxu0
    %v2964 = vadd.f32 0.0, %v2963
    %v2965 = vpop.f32.mrb[0].mxu0
    %v2966 = vand.u32 %v2882, 4294901760
    %v2967 = vsub.f32 %v2882, %v2966
    %v2968 = vand.u32 %v2967, 4294901760
    %v2969 = vsub.f32 %v2967, %v2968
    %v2970 = vand.u32 %v2969, 4294901760
    %2971 = vmatprep.mubr.f32.mxu0 %v2970
    %v2972 = vand.u32 %v2881, 4294901760
    %v2973 = vsub.f32 %v2881, %v2972
    %v2974 = vand.u32 %v2973, 4294901760
    %v2975 = vsub.f32 %v2973, %v2974
    %v2976 = vand.u32 %v2975, 4294901760
    %2977 = vmatmul.mubr.f32.gmra.mrb[0].mxu0 %v2976
    %v2978 = vpop.f32.mrb[0].mxu0
    %v2979 = vadd.f32 0.0, %v2978
    %v2980 = vpop.f32.mrb[0].mxu0
    %v2981 = vand.u32 %v2884, 4294901760
    %v2982 = vsub.f32 %v2884, %v2981
    %v2983 = vand.u32 %v2982, 4294901760
    %v2984 = vsub.f32 %v2982, %v2983
    %v2985 = vand.u32 %v2984, 4294901760
    %2986 = vmatprep.mubr.f32.mxu0 %v2985
    %v2987 = vand.u32 %v2883, 4294901760
    %v2988 = vsub.f32 %v2883, %v2987
    %v2989 = vand.u32 %v2988, 4294901760
    %v2990 = vsub.f32 %v2988, %v2989
    %v2991 = vand.u32 %v2990, 4294901760
    %2992 = vmatmul.mubr.f32.gmra.mrb[0].mxu0 %v2991
    %v2993 = vpop.f32.mrb[0].mxu0
    %v2994 = vadd.f32 0.0, %v2993
    %v2995 = vpop.f32.mrb[0].mxu0
    %v2996 = vand.u32 %v2886, 4294901760
    %v2997 = vsub.f32 %v2886, %v2996
    %v2998 = vand.u32 %v2997, 4294901760
    %v2999 = vsub.f32 %v2997, %v2998
    %v3000 = vand.u32 %v2999, 4294901760
    %3001 = vmatprep.mubr.f32.mxu0 %v3000
    %v3002 = vand.u32 %v2885, 4294901760
    %v3003 = vsub.f32 %v2885, %v3002
    %v3004 = vand.u32 %v3003, 4294901760
    %v3005 = vsub.f32 %v3003, %v3004
    %v3006 = vand.u32 %v3005, 4294901760
    %3007 = vmatmul.mubr.f32.gmra.mrb[0].mxu0 %v3006
    %v3008 = vpop.f32.mrb[0].mxu0
    %v3009 = vadd.f32 0.0, %v3008
    %v3010 = vpop.f32.mrb[0].mxu0
    %3011 = vdwg.mxu0
    %3012 = vmatprep.subr.mxu0 0.0
    %3013 = vmatpush1.msra.mxu0 0.0
    %3014 = vmatprep.subr.mxu0 0.0
    %3015 = vmatpush1.msra.mxu0 0.0
    %3016 = vmatprep.subr.mxu0 0.0
    %3017 = vmatpush1.msra.mxu0 0.0
    %3018 = vmatprep.subr.mxu0 0.0
    %3019 = vmatpush1.msra.mxu0 0.0
    %3020 = vmatprep.subr.mxu0 0.0
    %3021 = vmatpush1.msra.mxu0 0.0
    %3022 = vmatprep.subr.mxu0 0.0
    %3023 = vmatpush1.msra.mxu0 0.0
    %3024 = vmatprep.subr.mxu0 0.0
    %3025 = vmatpush1.msra.mxu0 0.0
    %3026 = vmatprep.subr.mxu0 0.0
    %3027 = vmatpush1.msra.mxu0 0.0
    %3028 = vmatprep.subr.mxu0 0.0
    %3029 = vmatpush1.msra.mxu0 0.0
    %3030 = vmatprep.subr.mxu0 0.0
    %3031 = vmatpush1.msra.mxu0 0.0
    %3032 = vmatprep.subr.mxu0 0.0
    %3033 = vmatpush1.msra.mxu0 0.0
    %3034 = vmatprep.subr.mxu0 0.0
    %3035 = vmatpush1.msra.mxu0 0.0
    %3036 = vmatprep.subr.mxu0 0.0
    %3037 = vmatpush1.msra.mxu0 0.0
    %3038 = vmatprep.subr.mxu0 0.0
    %3039 = vmatpush1.msra.mxu0 0.0
    %3040 = vmatprep.subr.mxu0 0.0
    %3041 = vmatpush1.msra.mxu0 0.0
    %3042 = vmatprep.subr.mxu0 0.0
    %3043 = vmatpush1.msra.mxu0 0.0
    %3044 = vmatprep.subr.mxu0 0.0
    %3045 = vmatpush1.msra.mxu0 0.0
    %3046 = vmatprep.subr.mxu0 0.0
    %3047 = vmatpush1.msra.mxu0 0.0
    %3048 = vmatprep.subr.mxu0 0.0
    %3049 = vmatpush1.msra.mxu0 0.0
    %3050 = vmatprep.subr.mxu0 0.0
    %3051 = vmatpush1.msra.mxu0 0.0
    %3052 = vmatprep.subr.mxu0 0.0
    %3053 = vmatpush1.msra.mxu0 0.0
    %3054 = vmatprep.subr.mxu0 0.0
    %3055 = vmatpush1.msra.mxu0 0.0
    %3056 = vmatprep.subr.mxu0 0.0
    %3057 = vmatpush1.msra.mxu0 0.0
    %3058 = vmatprep.subr.mxu0 0.0
    %3059 = vmatpush1.msra.mxu0 0.0
    %3060 = vmatprep.subr.mxu0 0.0
    %3061 = vmatpush1.msra.mxu0 0.0
    %3062 = vmatprep.subr.mxu0 0.0
    %3063 = vmatpush1.msra.mxu0 0.0
    %3064 = vmatprep.subr.mxu0 0.0
    %3065 = vmatpush1.msra.mxu0 0.0
    %3066 = vmatprep.subr.mxu0 0.0
    %3067 = vmatpush1.msra.mxu0 0.0
    %3068 = vmatprep.subr.mxu0 0.0
    %3069 = vmatpush1.msra.mxu0 0.0
    %3070 = vmatprep.subr.mxu0 0.0
    %3071 = vmatpush1.msra.mxu0 0.0
    %3072 = vmatprep.subr.mxu0 0.0
    %3073 = vmatpush1.msra.mxu0 0.0
    %3074 = vmatprep.subr.mxu0 0.0
    %3075 = vmatpush1.msra.mxu0 0.0
    %v3076 = vand.u32 %v2880, 4294901760
    %3077 = vmatprep.mubr.f32.mxu0 %v3076
    %v3078 = vand.u32 %v2879, 4294901760
    %3079 = vmatmul.mubr.f32.gmra.mrb[0].mxu0 %v3078
    %v3080 = vpop.f32.mrb[0].mxu0
    %v3081 = vadd.f32 %v2964, %v3080
    %v3082 = vpop.f32.mrb[0].mxu0
    %v3083 = vand.u32 %v2882, 4294901760
    %3084 = vmatprep.mubr.f32.mxu0 %v3083
    %v3085 = vand.u32 %v2881, 4294901760
    %3086 = vmatmul.mubr.f32.gmra.mrb[0].mxu0 %v3085
    %v3087 = vpop.f32.mrb[0].mxu0
    %v3088 = vadd.f32 %v2979, %v3087
    %v3089 = vpop.f32.mrb[0].mxu0
    %v3090 = vand.u32 %v2884, 4294901760
    %3091 = vmatprep.mubr.f32.mxu0 %v3090
    %v3092 = vand.u32 %v2883, 4294901760
    %3093 = vmatmul.mubr.f32.gmra.mrb[0].mxu0 %v3092
    %v3094 = vpop.f32.mrb[0].mxu0
    %v3095 = vadd.f32 %v2994, %v3094
    %v3096 = vpop.f32.mrb[0].mxu0
    %v3097 = vand.u32 %v2886, 4294901760
    %3098 = vmatprep.mubr.f32.mxu0 %v3097
    %v3099 = vand.u32 %v2885, 4294901760
    %3100 = vmatmul.mubr.f32.gmra.mrb[0].mxu0 %v3099
    %v3101 = vpop.f32.mrb[0].mxu0
    %v3102 = vadd.f32 %v3009, %v3101
    %v3103 = vpop.f32.mrb[0].mxu0
    %3104 = vdwg.mxu0
    %3105 = vmatprep.subr.mxu0 0.0
    %3106 = vmatpush1.msra.mxu0 0.0
    %3107 = vmatprep.subr.mxu0 0.0
    %3108 = vmatpush1.msra.mxu0 0.0
    %3109 = vmatprep.subr.mxu0 0.0
    %3110 = vmatpush1.msra.mxu0 0.0
    %3111 = vmatprep.subr.mxu0 0.0
    %3112 = vmatpush1.msra.mxu0 0.0
    %3113 = vmatprep.subr.mxu0 0.0
    %3114 = vmatpush1.msra.mxu0 0.0
    %3115 = vmatprep.subr.mxu0 0.0
    %3116 = vmatpush1.msra.mxu0 0.0
    %3117 = vmatprep.subr.mxu0 0.0
    %3118 = vmatpush1.msra.mxu0 0.0
    %3119 = vmatprep.subr.mxu0 0.0
    %3120 = vmatpush1.msra.mxu0 0.0
    %3121 = vmatprep.subr.mxu0 0.0
    %3122 = vmatpush1.msra.mxu0 0.0
    %3123 = vmatprep.subr.mxu0 0.0
    %3124 = vmatpush1.msra.mxu0 0.0
    %3125 = vmatprep.subr.mxu0 0.0
    %3126 = vmatpush1.msra.mxu0 0.0
    %3127 = vmatprep.subr.mxu0 0.0
    %3128 = vmatpush1.msra.mxu0 0.0
    %3129 = vmatprep.subr.mxu0 0.0
    %3130 = vmatpush1.msra.mxu0 0.0
    %3131 = vmatprep.subr.mxu0 0.0
    %3132 = vmatpush1.msra.mxu0 0.0
    %3133 = vmatprep.subr.mxu0 0.0
    %3134 = vmatpush1.msra.mxu0 0.0
    %3135 = vmatprep.subr.mxu0 0.0
    %3136 = vmatpush1.msra.mxu0 0.0
    %3137 = vmatprep.subr.mxu0 0.0
    %3138 = vmatpush1.msra.mxu0 0.0
    %3139 = vmatprep.subr.mxu0 0.0
    %3140 = vmatpush1.msra.mxu0 0.0
    %3141 = vmatprep.subr.mxu0 0.0
    %3142 = vmatpush1.msra.mxu0 0.0
    %3143 = vmatprep.subr.mxu0 0.0
    %3144 = vmatpush1.msra.mxu0 0.0
    %3145 = vmatprep.subr.mxu0 0.0
    %3146 = vmatpush1.msra.mxu0 0.0
    %3147 = vmatprep.subr.mxu0 0.0
    %3148 = vmatpush1.msra.mxu0 0.0
    %3149 = vmatprep.subr.mxu0 0.0
    %3150 = vmatpush1.msra.mxu0 0.0
    %3151 = vmatprep.subr.mxu0 0.0
    %3152 = vmatpush1.msra.mxu0 0.0
    %3153 = vmatprep.subr.mxu0 0.0
    %3154 = vmatpush1.msra.mxu0 0.0
    %3155 = vmatprep.subr.mxu0 0.0
    %3156 = vmatpush1.msra.mxu0 0.0
    %3157 = vmatprep.subr.mxu0 0.0
    %3158 = vmatpush1.msra.mxu0 0.0
    %3159 = vmatprep.subr.mxu0 0.0
    %3160 = vmatpush1.msra.mxu0 0.0
    %3161 = vmatprep.subr.mxu0 0.0
    %3162 = vmatpush1.msra.mxu0 0.0
    %3163 = vmatprep.subr.mxu0 0.0
    %3164 = vmatpush1.msra.mxu0 0.0
    %3165 = vmatprep.subr.mxu0 0.0
    %3166 = vmatpush1.msra.mxu0 0.0
    %3167 = vmatprep.subr.mxu0 0.0
    %3168 = vmatpush1.msra.mxu0 0.0
    %v3169 = vand.u32 %v2880, 4294901760
    %v3170 = vsub.f32 %v2880, %v3169
    %3171 = vmatprep.mubr.f32.mxu0 %v3170
    %v3172 = vand.u32 %v2879, 4294901760
    %v3173 = vsub.f32 %v2879, %v3172
    %3174 = vmatmul.mubr.f32.gmra.mrb[0].mxu0 %v3173
    %v3175 = vpop.f32.mrb[0].mxu0
    %v3176 = vadd.f32 %v3081, %v3175
    %v3177 = vpop.f32.mrb[0].mxu0
    %v3178 = vand.u32 %v2882, 4294901760
    %v3179 = vsub.f32 %v2882, %v3178
    %3180 = vmatprep.mubr.f32.mxu0 %v3179
    %v3181 = vand.u32 %v2881, 4294901760
    %v3182 = vsub.f32 %v2881, %v3181
    %3183 = vmatmul.mubr.f32.gmra.mrb[0].mxu0 %v3182
    %v3184 = vpop.f32.mrb[0].mxu0
    %v3185 = vadd.f32 %v3088, %v3184
    %v3186 = vpop.f32.mrb[0].mxu0
    %v3187 = vand.u32 %v2884, 4294901760
    %v3188 = vsub.f32 %v2884, %v3187
    %3189 = vmatprep.mubr.f32.mxu0 %v3188
    %v3190 = vand.u32 %v2883, 4294901760
    %v3191 = vsub.f32 %v2883, %v3190
    %3192 = vmatmul.mubr.f32.gmra.mrb[0].mxu0 %v3191
    %v3193 = vpop.f32.mrb[0].mxu0
    %v3194 = vadd.f32 %v3095, %v3193
    %v3195 = vpop.f32.mrb[0].mxu0
    %v3196 = vand.u32 %v2886, 4294901760
    %v3197 = vsub.f32 %v2886, %v3196
    %3198 = vmatprep.mubr.f32.mxu0 %v3197
    %v3199 = vand.u32 %v2885, 4294901760
    %v3200 = vsub.f32 %v2885, %v3199
    %3201 = vmatmul.mubr.f32.gmra.mrb[0].mxu0 %v3200
    %v3202 = vpop.f32.mrb[0].mxu0
    %v3203 = vadd.f32 %v3102, %v3202
    %v3204 = vpop.f32.mrb[0].mxu0
    %3205 = vdwg.mxu0
    %3206 = vmatprep.subr.mxu0 0.0
    %3207 = vmatpush1.msra.mxu0 1.0
    %3208 = vmatprep.subr.mxu0 0.0
    %3209 = vmatpush1.msra.mxu0 1.0
    %3210 = vmatprep.subr.mxu0 0.0
    %3211 = vmatpush1.msra.mxu0 1.0
    %3212 = vmatprep.subr.mxu0 0.0
    %3213 = vmatpush1.msra.mxu0 1.0
    %3214 = vmatprep.subr.mxu0 0.0
    %3215 = vmatpush1.msra.mxu0 1.0
    %3216 = vmatprep.subr.mxu0 0.0
    %3217 = vmatpush1.msra.mxu0 1.0
    %3218 = vmatprep.subr.mxu0 0.0
    %3219 = vmatpush1.msra.mxu0 1.0
    %3220 = vmatprep.subr.mxu0 0.0
    %3221 = vmatpush1.msra.mxu0 1.0
    %3222 = vmatprep.subr.mxu0 0.0
    %3223 = vmatpush1.msra.mxu0 1.0
    %3224 = vmatprep.subr.mxu0 0.0
    %3225 = vmatpush1.msra.mxu0 1.0
    %3226 = vmatprep.subr.mxu0 0.0
    %3227 = vmatpush1.msra.mxu0 1.0
    %3228 = vmatprep.subr.mxu0 0.0
    %3229 = vmatpush1.msra.mxu0 1.0
    %3230 = vmatprep.subr.mxu0 0.0
    %3231 = vmatpush1.msra.mxu0 1.0
    %3232 = vmatprep.subr.mxu0 0.0
    %3233 = vmatpush1.msra.mxu0 1.0
    %3234 = vmatprep.subr.mxu0 0.0
    %3235 = vmatpush1.msra.mxu0 1.0
    %3236 = vmatprep.subr.mxu0 0.0
    %3237 = vmatpush1.msra.mxu0 1.0
    %3238 = vmatprep.subr.mxu0 0.0
    %3239 = vmatpush1.msra.mxu0 1.0
    %3240 = vmatprep.subr.mxu0 0.0
    %3241 = vmatpush1.msra.mxu0 1.0
    %3242 = vmatprep.subr.mxu0 0.0
    %3243 = vmatpush1.msra.mxu0 1.0
    %3244 = vmatprep.subr.mxu0 0.0
    %3245 = vmatpush1.msra.mxu0 1.0
    %3246 = vmatprep.subr.mxu0 0.0
    %3247 = vmatpush1.msra.mxu0 1.0
    %3248 = vmatprep.subr.mxu0 0.0
    %3249 = vmatpush1.msra.mxu0 1.0
    %3250 = vmatprep.subr.mxu0 0.0
    %3251 = vmatpush1.msra.mxu0 1.0
    %3252 = vmatprep.subr.mxu0 0.0
    %3253 = vmatpush1.msra.mxu0 1.0
    %3254 = vmatprep.subr.mxu0 0.0
    %3255 = vmatpush1.msra.mxu0 1.0
    %3256 = vmatprep.subr.mxu0 0.0
    %3257 = vmatpush1.msra.mxu0 1.0
    %3258 = vmatprep.subr.mxu0 0.0
    %3259 = vmatpush1.msra.mxu0 1.0
    %3260 = vmatprep.subr.mxu0 0.0
    %3261 = vmatpush1.msra.mxu0 1.0
    %3262 = vmatprep.subr.mxu0 0.0
    %3263 = vmatpush1.msra.mxu0 1.0
    %3264 = vmatprep.subr.mxu0 0.0
    %3265 = vmatpush1.msra.mxu0 1.0
    %3266 = vmatprep.subr.mxu0 0.0
    %3267 = vmatpush1.msra.mxu0 1.0
    %3268 = vmatprep.subr.mxu0 0.0
    %3269 = vmatpush1.msra.mxu0 1.0
    %v3270 = vand.u32 %v2880, 4294901760
    %v3271 = vsub.f32 %v2880, %v3270
    %v3272 = vand.u32 %v3271, 4294901760
    %3273 = vmatprep.mubr.f32.mxu0 %v3272
    %v3274 = vand.u32 %v2879, 4294901760
    %v3275 = vsub.f32 %v2879, %v3274
    %v3276 = vand.u32 %v3275, 4294901760
    %3277 = vmatmul.mubr.f32.gmra.mrb[0].mxu0 %v3276
    %v3278 = vpop.f32.mrb[0].mxu0
    %v3279 = vadd.f32 %v3176, %v3278
    %v3280 = vpop.f32.mrb[0].mxu0
    %v3281 = vand.u32 %v2882, 4294901760
    %v3282 = vsub.f32 %v2882, %v3281
    %v3283 = vand.u32 %v3282, 4294901760
    %3284 = vmatprep.mubr.f32.mxu0 %v3283
    %v3285 = vand.u32 %v2881, 4294901760
    %v3286 = vsub.f32 %v2881, %v3285
    %v3287 = vand.u32 %v3286, 4294901760
    %3288 = vmatmul.mubr.f32.gmra.mrb[0].mxu0 %v3287
    %v3289 = vpop.f32.mrb[0].mxu0
    %v3290 = vadd.f32 %v3185, %v3289
    %v3291 = vpop.f32.mrb[0].mxu0
    %v3292 = vand.u32 %v2884, 4294901760
    %v3293 = vsub.f32 %v2884, %v3292
    %v3294 = vand.u32 %v3293, 4294901760
    %3295 = vmatprep.mubr.f32.mxu0 %v3294
    %v3296 = vand.u32 %v2883, 4294901760
    %v3297 = vsub.f32 %v2883, %v3296
    %v3298 = vand.u32 %v3297, 4294901760
    %3299 = vmatmul.mubr.f32.gmra.mrb[0].mxu0 %v3298
    %v3300 = vpop.f32.mrb[0].mxu0
    %v3301 = vadd.f32 %v3194, %v3300
    %v3302 = vpop.f32.mrb[0].mxu0
    %v3303 = vand.u32 %v2886, 4294901760
    %v3304 = vsub.f32 %v2886, %v3303
    %v3305 = vand.u32 %v3304, 4294901760
    %3306 = vmatprep.mubr.f32.mxu0 %v3305
    %v3307 = vand.u32 %v2885, 4294901760
    %v3308 = vsub.f32 %v2885, %v3307
    %v3309 = vand.u32 %v3308, 4294901760
    %3310 = vmatmul.mubr.f32.gmra.mrb[0].mxu0 %v3309
    %v3311 = vpop.f32.mrb[0].mxu0
    %v3312 = vadd.f32 %v3203, %v3311
    %v3313 = vpop.f32.mrb[0].mxu0
    %3314 = vdwg.mxu0
    %3315 = vmatprep.subr.mxu0 0.0
    %3316 = vmatpush1.msra.mxu0 0.0
    %3317 = vmatprep.subr.mxu0 0.0
    %3318 = vmatpush1.msra.mxu0 0.0
    %3319 = vmatprep.subr.mxu0 0.0
    %3320 = vmatpush1.msra.mxu0 0.0
    %3321 = vmatprep.subr.mxu0 0.0
    %3322 = vmatpush1.msra.mxu0 0.0
    %3323 = vmatprep.subr.mxu0 0.0
    %3324 = vmatpush1.msra.mxu0 0.0
    %3325 = vmatprep.subr.mxu0 0.0
    %3326 = vmatpush1.msra.mxu0 0.0
    %3327 = vmatprep.subr.mxu0 0.0
    %3328 = vmatpush1.msra.mxu0 0.0
    %3329 = vmatprep.subr.mxu0 0.0
    %3330 = vmatpush1.msra.mxu0 0.0
    %3331 = vmatprep.subr.mxu0 0.0
    %3332 = vmatpush1.msra.mxu0 0.0
    %3333 = vmatprep.subr.mxu0 0.0
    %3334 = vmatpush1.msra.mxu0 0.0
    %3335 = vmatprep.subr.mxu0 0.0
    %3336 = vmatpush1.msra.mxu0 0.0
    %3337 = vmatprep.subr.mxu0 0.0
    %3338 = vmatpush1.msra.mxu0 0.0
    %3339 = vmatprep.subr.mxu0 0.0
    %3340 = vmatpush1.msra.mxu0 0.0
    %3341 = vmatprep.subr.mxu0 0.0
    %3342 = vmatpush1.msra.mxu0 0.0
    %3343 = vmatprep.subr.mxu0 0.0
    %3344 = vmatpush1.msra.mxu0 0.0
    %3345 = vmatprep.subr.mxu0 0.0
    %3346 = vmatpush1.msra.mxu0 0.0
    %3347 = vmatprep.subr.mxu0 0.0
    %3348 = vmatpush1.msra.mxu0 0.0
    %3349 = vmatprep.subr.mxu0 0.0
    %3350 = vmatpush1.msra.mxu0 0.0
    %3351 = vmatprep.subr.mxu0 0.0
    %3352 = vmatpush1.msra.mxu0 0.0
    %3353 = vmatprep.subr.mxu0 0.0
    %3354 = vmatpush1.msra.mxu0 0.0
    %3355 = vmatprep.subr.mxu0 0.0
    %3356 = vmatpush1.msra.mxu0 0.0
    %3357 = vmatprep.subr.mxu0 0.0
    %3358 = vmatpush1.msra.mxu0 0.0
    %3359 = vmatprep.subr.mxu0 0.0
    %3360 = vmatpush1.msra.mxu0 0.0
    %3361 = vmatprep.subr.mxu0 0.0
    %3362 = vmatpush1.msra.mxu0 0.0
    %3363 = vmatprep.subr.mxu0 0.0
    %3364 = vmatpush1.msra.mxu0 0.0
    %3365 = vmatprep.subr.mxu0 0.0
    %3366 = vmatpush1.msra.mxu0 0.0
    %3367 = vmatprep.subr.mxu0 0.0
    %3368 = vmatpush1.msra.mxu0 0.0
    %3369 = vmatprep.subr.mxu0 0.0
    %3370 = vmatpush1.msra.mxu0 0.0
    %3371 = vmatprep.subr.mxu0 0.0
    %3372 = vmatpush1.msra.mxu0 0.0
    %3373 = vmatprep.subr.mxu0 0.0
    %3374 = vmatpush1.msra.mxu0 0.0
    %3375 = vmatprep.subr.mxu0 0.0
    %3376 = vmatpush1.msra.mxu0 0.0
    %3377 = vmatprep.subr.mxu0 0.0
    %3378 = vmatpush1.msra.mxu0 0.0
    %v3379 = vand.u32 %v2880, 4294901760
    %3380 = vmatprep.mubr.f32.mxu0 %v3379
    %v3381 = vand.u32 %v2879, 4294901760
    %3382 = vmatmul.mubr.f32.gmra.mrb[0].mxu0 %v3381
    %v3383 = vpop.f32.mrb[0].mxu0
    %v3384 = vadd.f32 %v3279, %v3383
    %v3385 = vpop.f32.mrb[0].mxu0
    %v3386 = vand.u32 %v2882, 4294901760
    %3387 = vmatprep.mubr.f32.mxu0 %v3386
    %v3388 = vand.u32 %v2881, 4294901760
    %3389 = vmatmul.mubr.f32.gmra.mrb[0].mxu0 %v3388
    %v3390 = vpop.f32.mrb[0].mxu0
    %v3391 = vadd.f32 %v3290, %v3390
    %v3392 = vpop.f32.mrb[0].mxu0
    %v3393 = vand.u32 %v2884, 4294901760
    %3394 = vmatprep.mubr.f32.mxu0 %v3393
    %v3395 = vand.u32 %v2883, 4294901760
    %3396 = vmatmul.mubr.f32.gmra.mrb[0].mxu0 %v3395
    %v3397 = vpop.f32.mrb[0].mxu0
    %v3398 = vadd.f32 %v3301, %v3397
    %v3399 = vpop.f32.mrb[0].mxu0
    %v3400 = vand.u32 %v2886, 4294901760
    %3401 = vmatprep.mubr.f32.mxu0 %v3400
    %v3402 = vand.u32 %v2885, 4294901760
    %3403 = vmatmul.mubr.f32.gmra.mrb[0].mxu0 %v3402
    %v3404 = vpop.f32.mrb[0].mxu0
    %v3405 = vadd.f32 %v3312, %v3404
    %v3406 = vpop.f32.mrb[0].mxu0
    %3407 = vdwg.mxu0
    %3408 = vmatprep.subr.mxu0 0.0
    %3409 = vmatpush1.msra.mxu0 1.0
    %3410 = vmatprep.subr.mxu0 0.0
    %3411 = vmatpush1.msra.mxu0 1.0
    %3412 = vmatprep.subr.mxu0 0.0
    %3413 = vmatpush1.msra.mxu0 1.0
    %3414 = vmatprep.subr.mxu0 0.0
    %3415 = vmatpush1.msra.mxu0 1.0
    %3416 = vmatprep.subr.mxu0 0.0
    %3417 = vmatpush1.msra.mxu0 1.0
    %3418 = vmatprep.subr.mxu0 0.0
    %3419 = vmatpush1.msra.mxu0 1.0
    %3420 = vmatprep.subr.mxu0 0.0
    %3421 = vmatpush1.msra.mxu0 1.0
    %3422 = vmatprep.subr.mxu0 0.0
    %3423 = vmatpush1.msra.mxu0 1.0
    %3424 = vmatprep.subr.mxu0 0.0
    %3425 = vmatpush1.msra.mxu0 1.0
    %3426 = vmatprep.subr.mxu0 0.0
    %3427 = vmatpush1.msra.mxu0 1.0
    %3428 = vmatprep.subr.mxu0 0.0
    %3429 = vmatpush1.msra.mxu0 1.0
    %3430 = vmatprep.subr.mxu0 0.0
    %3431 = vmatpush1.msra.mxu0 1.0
    %3432 = vmatprep.subr.mxu0 0.0
    %3433 = vmatpush1.msra.mxu0 1.0
    %3434 = vmatprep.subr.mxu0 0.0
    %3435 = vmatpush1.msra.mxu0 1.0
    %3436 = vmatprep.subr.mxu0 0.0
    %3437 = vmatpush1.msra.mxu0 1.0
    %3438 = vmatprep.subr.mxu0 0.0
    %3439 = vmatpush1.msra.mxu0 1.0
    %3440 = vmatprep.subr.mxu0 0.0
    %3441 = vmatpush1.msra.mxu0 1.0
    %3442 = vmatprep.subr.mxu0 0.0
    %3443 = vmatpush1.msra.mxu0 1.0
    %3444 = vmatprep.subr.mxu0 0.0
    %3445 = vmatpush1.msra.mxu0 1.0
    %3446 = vmatprep.subr.mxu0 0.0
    %3447 = vmatpush1.msra.mxu0 1.0
    %3448 = vmatprep.subr.mxu0 0.0
    %3449 = vmatpush1.msra.mxu0 1.0
    %3450 = vmatprep.subr.mxu0 0.0
    %3451 = vmatpush1.msra.mxu0 1.0
    %3452 = vmatprep.subr.mxu0 0.0
    %3453 = vmatpush1.msra.mxu0 1.0
    %3454 = vmatprep.subr.mxu0 0.0
    %3455 = vmatpush1.msra.mxu0 1.0
    %3456 = vmatprep.subr.mxu0 0.0
    %3457 = vmatpush1.msra.mxu0 1.0
    %3458 = vmatprep.subr.mxu0 0.0
    %3459 = vmatpush1.msra.mxu0 1.0
    %3460 = vmatprep.subr.mxu0 0.0
    %3461 = vmatpush1.msra.mxu0 1.0
    %3462 = vmatprep.subr.mxu0 0.0
    %3463 = vmatpush1.msra.mxu0 1.0
    %3464 = vmatprep.subr.mxu0 0.0
    %3465 = vmatpush1.msra.mxu0 1.0
    %3466 = vmatprep.subr.mxu0 0.0
    %3467 = vmatpush1.msra.mxu0 1.0
    %3468 = vmatprep.subr.mxu0 0.0
    %3469 = vmatpush1.msra.mxu0 1.0
    %3470 = vmatprep.subr.mxu0 0.0
    %3471 = vmatpush1.msra.mxu0 1.0
    %v3472 = vand.u32 %v2880, 4294901760
    %3473 = vmatprep.mubr.f32.mxu0 %v3472
    %v3474 = vand.u32 %v2879, 4294901760
    %3475 = vmatmul.mubr.f32.gmra.mrb[0].mxu0 %v3474
    %v3476 = vpop.f32.mrb[0].mxu0
    %v3477 = vadd.f32 %v3384, %v3476
    %v3478 = vpop.f32.mrb[0].mxu0
    %v3479 = vand.u32 %v2882, 4294901760
    %3480 = vmatprep.mubr.f32.mxu0 %v3479
    %v3481 = vand.u32 %v2881, 4294901760
    %3482 = vmatmul.mubr.f32.gmra.mrb[0].mxu0 %v3481
    %v3483 = vpop.f32.mrb[0].mxu0
    %v3484 = vadd.f32 %v3391, %v3483
    %v3485 = vpop.f32.mrb[0].mxu0
    %v3486 = vand.u32 %v2884, 4294901760
    %3487 = vmatprep.mubr.f32.mxu0 %v3486
    %v3488 = vand.u32 %v2883, 4294901760
    %3489 = vmatmul.mubr.f32.gmra.mrb[0].mxu0 %v3488
    %v3490 = vpop.f32.mrb[0].mxu0
    %v3491 = vadd.f32 %v3398, %v3490
    %v3492 = vpop.f32.mrb[0].mxu0
    %v3493 = vand.u32 %v2886, 4294901760
    %3494 = vmatprep.mubr.f32.mxu0 %v3493
    %v3495 = vand.u32 %v2885, 4294901760
    %3496 = vmatmul.mubr.f32.gmra.mrb[0].mxu0 %v3495
    %v3497 = vpop.f32.mrb[0].mxu0
    %v3498 = vadd.f32 %v3405, %v3497
    %v3499 = vpop.f32.mrb[0].mxu0
    %3500 = vdwg.mxu0
    %v3501 = vmul.f32 %v3477, 0.00390625
    %v3502 = vmul.f32 %v3484, 0.00390625
    %v3503 = vmul.f32 %v3491, 0.00390625
    %v3504 = vmul.f32 %v3498, 0.00390625
    %v3505 = vmax.f32 %v2879, %v2880
    %3506 = vmax.xlane.f32.xlu0 %v3505
    %v3507 = vpop.xlane.xlu0 %3506
    %v3508 = vmax.f32 %v2881, %v2882
    %3509 = vmax.xlane.f32.xlu0 %v3508
    %v3510 = vpop.xlane.xlu0 %3509
    %v3511 = vmax.f32 %v2883, %v2884
    %3512 = vmax.xlane.f32.xlu0 %v3511
    %v3513 = vpop.xlane.xlu0 %3512
    %v3514 = vmax.f32 %v2885, %v2886
    %3515 = vmax.xlane.f32.xlu0 %v3514
    %v3516 = vpop.xlane.xlu0 %3515
    %3517 = vmatprep.subr.mxu0 0.0
    %v3518 = vand.u32 %v3501, 4294901760
    %3519 = vmatpush1.msra.mxu0 %v3518
    %3520 = vmatprep.subr.mxu0 0.0
    %v3521 = vand.u32 %v3502, 4294901760
    %3522 = vmatpush1.msra.mxu0 %v3521
    %3523 = vmatprep.subr.mxu0 0.0
    %v3524 = vand.u32 %v3503, 4294901760
    %3525 = vmatpush1.msra.mxu0 %v3524
    %3526 = vmatprep.subr.mxu0 0.0
    %v3527 = vand.u32 %v3504, 4294901760
    %3528 = vmatpush1.msra.mxu0 %v3527
    %3529 = vmatprep.subr.mxu0 0.0
    %3530 = vmatpush1.msra.mxu0 0.0
    %3531 = vmatprep.subr.mxu0 0.0
    %3532 = vmatpush1.msra.mxu0 0.0
    %3533 = vmatprep.subr.mxu0 0.0
    %3534 = vmatpush1.msra.mxu0 0.0
    %3535 = vmatprep.subr.mxu0 0.0
    %3536 = vmatpush1.msra.mxu0 0.0
    %3537 = vmatprep.subr.mxu0 0.0
    %3538 = vmatpush1.msra.mxu0 0.0
    %3539 = vmatprep.subr.mxu0 0.0
    %3540 = vmatpush1.msra.mxu0 0.0
    %3541 = vmatprep.subr.mxu0 0.0
    %3542 = vmatpush1.msra.mxu0 0.0
    %3543 = vmatprep.subr.mxu0 0.0
    %3544 = vmatpush1.msra.mxu0 0.0
    %3545 = vmatprep.subr.mxu0 0.0
    %3546 = vmatpush1.msra.mxu0 0.0
    %3547 = vmatprep.subr.mxu0 0.0
    %3548 = vmatpush1.msra.mxu0 0.0
    %3549 = vmatprep.subr.mxu0 0.0
    %3550 = vmatpush1.msra.mxu0 0.0
    %3551 = vmatprep.subr.mxu0 0.0
    %3552 = vmatpush1.msra.mxu0 0.0
    %3553 = vmatprep.subr.mxu0 0.0
    %3554 = vmatpush1.msra.mxu0 0.0
    %3555 = vmatprep.subr.mxu0 0.0
    %3556 = vmatpush1.msra.mxu0 0.0
    %3557 = vmatprep.subr.mxu0 0.0
    %3558 = vmatpush1.msra.mxu0 0.0
    %3559 = vmatprep.subr.mxu0 0.0
    %3560 = vmatpush1.msra.mxu0 0.0
    %3561 = vmatprep.subr.mxu0 0.0
    %3562 = vmatpush1.msra.mxu0 0.0
    %3563 = vmatprep.subr.mxu0 0.0
    %3564 = vmatpush1.msra.mxu0 0.0
    %3565 = vmatprep.subr.mxu0 0.0
    %3566 = vmatpush1.msra.mxu0 0.0
    %3567 = vmatprep.subr.mxu0 0.0
    %3568 = vmatpush1.msra.mxu0 0.0
    %3569 = vmatprep.subr.mxu0 0.0
    %3570 = vmatpush1.msra.mxu0 0.0
    %3571 = vmatprep.subr.mxu0 0.0
    %3572 = vmatpush1.msra.mxu0 0.0
    %3573 = vmatprep.subr.mxu0 0.0
    %3574 = vmatpush1.msra.mxu0 0.0
    %3575 = vmatprep.subr.mxu0 0.0
    %3576 = vmatpush1.msra.mxu0 0.0
    %3577 = vmatprep.subr.mxu0 0.0
    %3578 = vmatpush1.msra.mxu0 0.0
    %3579 = vmatprep.subr.mxu0 0.0
    %3580 = vmatpush1.msra.mxu0 0.0
    %3581 = vmatprep.subr.mxu0 0.0
    %3582 = vmatpush1.msra.mxu0 0.0
    %3583 = vmatprep.subr.mxu0 0.0
    %3584 = vmatpush1.msra.mxu0 0.0
    %3585 = vmatprep.mubr.f32.mxu0 0.0
    %v3586 = vand.u32 %v674, 4294901760
    %v3587 = vsub.f32 %v674, %v3586
    %v3588 = vand.u32 %v3587, 4294901760
    %v3589 = vsub.f32 %v3587, %v3588
    %v3590 = vand.u32 %v3589, 4294901760
    %3591 = vmatmul.mubr.f32.gmra.mrb[0].mxu0 %v3590
    %v3592 = vpop.f32.mrb[0].mxu0
    %v3593 = vadd.f32 0.0, %v3592
    %v3594 = vpop.f32.mrb[0].mxu0
    %3595 = vdwg.mxu0
    %3596 = vmatprep.subr.mxu0 0.0
    %v3597 = vand.u32 %v3501, 4294901760
    %v3598 = vsub.f32 %v3501, %v3597
    %v3599 = vand.u32 %v3598, 4294901760
    %v3600 = vsub.f32 %v3598, %v3599
    %v3601 = vand.u32 %v3600, 4294901760
    %3602 = vmatpush1.msra.mxu0 %v3601
    %3603 = vmatprep.subr.mxu0 0.0
    %v3604 = vand.u32 %v3502, 4294901760
    %v3605 = vsub.f32 %v3502, %v3604
    %v3606 = vand.u32 %v3605, 4294901760
    %v3607 = vsub.f32 %v3605, %v3606
    %v3608 = vand.u32 %v3607, 4294901760
    %3609 = vmatpush1.msra.mxu0 %v3608
    %3610 = vmatprep.subr.mxu0 0.0
    %v3611 = vand.u32 %v3503, 4294901760
    %v3612 = vsub.f32 %v3503, %v3611
    %v3613 = vand.u32 %v3612, 4294901760
    %v3614 = vsub.f32 %v3612, %v3613
    %v3615 = vand.u32 %v3614, 4294901760
    %3616 = vmatpush1.msra.mxu0 %v3615
    %3617 = vmatprep.subr.mxu0 0.0
    %v3618 = vand.u32 %v3504, 4294901760
    %v3619 = vsub.f32 %v3504, %v3618
    %v3620 = vand.u32 %v3619, 4294901760
    %v3621 = vsub.f32 %v3619, %v3620
    %v3622 = vand.u32 %v3621, 4294901760
    %3623 = vmatpush1.msra.mxu0 %v3622
    %3624 = vmatprep.subr.mxu0 0.0
    %3625 = vmatpush1.msra.mxu0 0.0
    %3626 = vmatprep.subr.mxu0 0.0
    %3627 = vmatpush1.msra.mxu0 0.0
    %3628 = vmatprep.subr.mxu0 0.0
    %3629 = vmatpush1.msra.mxu0 0.0
    %3630 = vmatprep.subr.mxu0 0.0
    %3631 = vmatpush1.msra.mxu0 0.0
    %3632 = vmatprep.subr.mxu0 0.0
    %3633 = vmatpush1.msra.mxu0 0.0
    %3634 = vmatprep.subr.mxu0 0.0
    %3635 = vmatpush1.msra.mxu0 0.0
    %3636 = vmatprep.subr.mxu0 0.0
    %3637 = vmatpush1.msra.mxu0 0.0
    %3638 = vmatprep.subr.mxu0 0.0
    %3639 = vmatpush1.msra.mxu0 0.0
    %3640 = vmatprep.subr.mxu0 0.0
    %3641 = vmatpush1.msra.mxu0 0.0
    %3642 = vmatprep.subr.mxu0 0.0
    %3643 = vmatpush1.msra.mxu0 0.0
    %3644 = vmatprep.subr.mxu0 0.0
    %3645 = vmatpush1.msra.mxu0 0.0
    %3646 = vmatprep.subr.mxu0 0.0
    %3647 = vmatpush1.msra.mxu0 0.0
    %3648 = vmatprep.subr.mxu0 0.0
    %3649 = vmatpush1.msra.mxu0 0.0
    %3650 = vmatprep.subr.mxu0 0.0
    %3651 = vmatpush1.msra.mxu0 0.0
    %3652 = vmatprep.subr.mxu0 0.0
    %3653 = vmatpush1.msra.mxu0 0.0
    %3654 = vmatprep.subr.mxu0 0.0
    %3655 = vmatpush1.msra.mxu0 0.0
    %3656 = vmatprep.subr.mxu0 0.0
    %3657 = vmatpush1.msra.mxu0 0.0
    %3658 = vmatprep.subr.mxu0 0.0
    %3659 = vmatpush1.msra.mxu0 0.0
    %3660 = vmatprep.subr.mxu0 0.0
    %3661 = vmatpush1.msra.mxu0 0.0
    %3662 = vmatprep.subr.mxu0 0.0
    %3663 = vmatpush1.msra.mxu0 0.0
    %3664 = vmatprep.subr.mxu0 0.0
    %3665 = vmatpush1.msra.mxu0 0.0
    %3666 = vmatprep.subr.mxu0 0.0
    %3667 = vmatpush1.msra.mxu0 0.0
    %3668 = vmatprep.subr.mxu0 0.0
    %3669 = vmatpush1.msra.mxu0 0.0
    %3670 = vmatprep.subr.mxu0 0.0
    %3671 = vmatpush1.msra.mxu0 0.0
    %3672 = vmatprep.subr.mxu0 0.0
    %3673 = vmatpush1.msra.mxu0 0.0
    %3674 = vmatprep.subr.mxu0 0.0
    %3675 = vmatpush1.msra.mxu0 0.0
    %3676 = vmatprep.subr.mxu0 0.0
    %3677 = vmatpush1.msra.mxu0 0.0
    %3678 = vmatprep.subr.mxu0 0.0
    %3679 = vmatpush1.msra.mxu0 0.0
    %3680 = vmatprep.mubr.f32.mxu0 0.0
    %v3681 = vand.u32 %v674, 4294901760
    %3682 = vmatmul.mubr.f32.gmra.mrb[0].mxu0 %v3681
    %v3683 = vpop.f32.mrb[0].mxu0
    %v3684 = vadd.f32 %v3593, %v3683
    %v3685 = vpop.f32.mrb[0].mxu0
    %3686 = vdwg.mxu0
    %3687 = vmatprep.subr.mxu0 0.0
    %v3688 = vand.u32 %v3501, 4294901760
    %v3689 = vsub.f32 %v3501, %v3688
    %3690 = vmatpush1.msra.mxu0 %v3689
    %3691 = vmatprep.subr.mxu0 0.0
    %v3692 = vand.u32 %v3502, 4294901760
    %v3693 = vsub.f32 %v3502, %v3692
    %3694 = vmatpush1.msra.mxu0 %v3693
    %3695 = vmatprep.subr.mxu0 0.0
    %v3696 = vand.u32 %v3503, 4294901760
    %v3697 = vsub.f32 %v3503, %v3696
    %3698 = vmatpush1.msra.mxu0 %v3697
    %3699 = vmatprep.subr.mxu0 0.0
    %v3700 = vand.u32 %v3504, 4294901760
    %v3701 = vsub.f32 %v3504, %v3700
    %3702 = vmatpush1.msra.mxu0 %v3701
    %3703 = vmatprep.subr.mxu0 0.0
    %3704 = vmatpush1.msra.mxu0 0.0
    %3705 = vmatprep.subr.mxu0 0.0
    %3706 = vmatpush1.msra.mxu0 0.0
    %3707 = vmatprep.subr.mxu0 0.0
    %3708 = vmatpush1.msra.mxu0 0.0
    %3709 = vmatprep.subr.mxu0 0.0
    %3710 = vmatpush1.msra.mxu0 0.0
    %3711 = vmatprep.subr.mxu0 0.0
    %3712 = vmatpush1.msra.mxu0 0.0
    %3713 = vmatprep.subr.mxu0 0.0
    %3714 = vmatpush1.msra.mxu0 0.0
    %3715 = vmatprep.subr.mxu0 0.0
    %3716 = vmatpush1.msra.mxu0 0.0
    %3717 = vmatprep.subr.mxu0 0.0
    %3718 = vmatpush1.msra.mxu0 0.0
    %3719 = vmatprep.subr.mxu0 0.0
    %3720 = vmatpush1.msra.mxu0 0.0
    %3721 = vmatprep.subr.mxu0 0.0
    %3722 = vmatpush1.msra.mxu0 0.0
    %3723 = vmatprep.subr.mxu0 0.0
    %3724 = vmatpush1.msra.mxu0 0.0
    %3725 = vmatprep.subr.mxu0 0.0
    %3726 = vmatpush1.msra.mxu0 0.0
    %3727 = vmatprep.subr.mxu0 0.0
    %3728 = vmatpush1.msra.mxu0 0.0
    %3729 = vmatprep.subr.mxu0 0.0
    %3730 = vmatpush1.msra.mxu0 0.0
    %3731 = vmatprep.subr.mxu0 0.0
    %3732 = vmatpush1.msra.mxu0 0.0
    %3733 = vmatprep.subr.mxu0 0.0
    %3734 = vmatpush1.msra.mxu0 0.0
    %3735 = vmatprep.subr.mxu0 0.0
    %3736 = vmatpush1.msra.mxu0 0.0
    %3737 = vmatprep.subr.mxu0 0.0
    %3738 = vmatpush1.msra.mxu0 0.0
    %3739 = vmatprep.subr.mxu0 0.0
    %3740 = vmatpush1.msra.mxu0 0.0
    %3741 = vmatprep.subr.mxu0 0.0
    %3742 = vmatpush1.msra.mxu0 0.0
    %3743 = vmatprep.subr.mxu0 0.0
    %3744 = vmatpush1.msra.mxu0 0.0
    %3745 = vmatprep.subr.mxu0 0.0
    %3746 = vmatpush1.msra.mxu0 0.0
    %3747 = vmatprep.subr.mxu0 0.0
    %3748 = vmatpush1.msra.mxu0 0.0
    %3749 = vmatprep.subr.mxu0 0.0
    %3750 = vmatpush1.msra.mxu0 0.0
    %3751 = vmatprep.subr.mxu0 0.0
    %3752 = vmatpush1.msra.mxu0 0.0
    %3753 = vmatprep.subr.mxu0 0.0
    %3754 = vmatpush1.msra.mxu0 0.0
    %3755 = vmatprep.subr.mxu0 0.0
    %3756 = vmatpush1.msra.mxu0 0.0
    %3757 = vmatprep.subr.mxu0 0.0
    %3758 = vmatpush1.msra.mxu0 0.0
    %3759 = vmatprep.mubr.f32.mxu0 0.0
    %v3760 = vand.u32 %v674, 4294901760
    %v3761 = vsub.f32 %v674, %v3760
    %3762 = vmatmul.mubr.f32.gmra.mrb[0].mxu0 %v3761
    %v3763 = vpop.f32.mrb[0].mxu0
    %v3764 = vadd.f32 %v3684, %v3763
    %v3765 = vpop.f32.mrb[0].mxu0
    %3766 = vdwg.mxu0
    %3767 = vmatprep.subr.mxu0 0.0
    %v3768 = vand.u32 %v3501, 4294901760
    %3769 = vmatpush1.msra.mxu0 %v3768
    %3770 = vmatprep.subr.mxu0 0.0
    %v3771 = vand.u32 %v3502, 4294901760
    %3772 = vmatpush1.msra.mxu0 %v3771
    %3773 = vmatprep.subr.mxu0 0.0
    %v3774 = vand.u32 %v3503, 4294901760
    %3775 = vmatpush1.msra.mxu0 %v3774
    %3776 = vmatprep.subr.mxu0 0.0
    %v3777 = vand.u32 %v3504, 4294901760
    %3778 = vmatpush1.msra.mxu0 %v3777
    %3779 = vmatprep.subr.mxu0 0.0
    %3780 = vmatpush1.msra.mxu0 0.0
    %3781 = vmatprep.subr.mxu0 0.0
    %3782 = vmatpush1.msra.mxu0 0.0
    %3783 = vmatprep.subr.mxu0 0.0
    %3784 = vmatpush1.msra.mxu0 0.0
    %3785 = vmatprep.subr.mxu0 0.0
    %3786 = vmatpush1.msra.mxu0 0.0
    %3787 = vmatprep.subr.mxu0 0.0
    %3788 = vmatpush1.msra.mxu0 0.0
    %3789 = vmatprep.subr.mxu0 0.0
    %3790 = vmatpush1.msra.mxu0 0.0
    %3791 = vmatprep.subr.mxu0 0.0
    %3792 = vmatpush1.msra.mxu0 0.0
    %3793 = vmatprep.subr.mxu0 0.0
    %3794 = vmatpush1.msra.mxu0 0.0
    %3795 = vmatprep.subr.mxu0 0.0
    %3796 = vmatpush1.msra.mxu0 0.0
    %3797 = vmatprep.subr.mxu0 0.0
    %3798 = vmatpush1.msra.mxu0 0.0
    %3799 = vmatprep.subr.mxu0 0.0
    %3800 = vmatpush1.msra.mxu0 0.0
    %3801 = vmatprep.subr.mxu0 0.0
    %3802 = vmatpush1.msra.mxu0 0.0
    %3803 = vmatprep.subr.mxu0 0.0
    %3804 = vmatpush1.msra.mxu0 0.0
    %3805 = vmatprep.subr.mxu0 0.0
    %3806 = vmatpush1.msra.mxu0 0.0
    %3807 = vmatprep.subr.mxu0 0.0
    %3808 = vmatpush1.msra.mxu0 0.0
    %3809 = vmatprep.subr.mxu0 0.0
    %3810 = vmatpush1.msra.mxu0 0.0
    %3811 = vmatprep.subr.mxu0 0.0
    %3812 = vmatpush1.msra.mxu0 0.0
    %3813 = vmatprep.subr.mxu0 0.0
    %3814 = vmatpush1.msra.mxu0 0.0
    %3815 = vmatprep.subr.mxu0 0.0
    %3816 = vmatpush1.msra.mxu0 0.0
    %3817 = vmatprep.subr.mxu0 0.0
    %3818 = vmatpush1.msra.mxu0 0.0
    %3819 = vmatprep.subr.mxu0 0.0
    %3820 = vmatpush1.msra.mxu0 0.0
    %3821 = vmatprep.subr.mxu0 0.0
    %3822 = vmatpush1.msra.mxu0 0.0
    %3823 = vmatprep.subr.mxu0 0.0
    %3824 = vmatpush1.msra.mxu0 0.0
    %3825 = vmatprep.subr.mxu0 0.0
    %3826 = vmatpush1.msra.mxu0 0.0
    %3827 = vmatprep.subr.mxu0 0.0
    %3828 = vmatpush1.msra.mxu0 0.0
    %3829 = vmatprep.subr.mxu0 0.0
    %3830 = vmatpush1.msra.mxu0 0.0
    %3831 = vmatprep.subr.mxu0 0.0
    %3832 = vmatpush1.msra.mxu0 0.0
    %3833 = vmatprep.subr.mxu0 0.0
    %3834 = vmatpush1.msra.mxu0 0.0
    %3835 = vmatprep.mubr.f32.mxu0 0.0
    %v3836 = vand.u32 %v674, 4294901760
    %v3837 = vsub.f32 %v674, %v3836
    %v3838 = vand.u32 %v3837, 4294901760
    %3839 = vmatmul.mubr.f32.gmra.mrb[0].mxu0 %v3838
    %v3840 = vpop.f32.mrb[0].mxu0
    %v3841 = vadd.f32 %v3764, %v3840
    %v3842 = vpop.f32.mrb[0].mxu0
    %3843 = vdwg.mxu0
    %3844 = vmatprep.subr.mxu0 0.0
    %v3845 = vand.u32 %v3501, 4294901760
    %v3846 = vsub.f32 %v3501, %v3845
    %v3847 = vand.u32 %v3846, 4294901760
    %3848 = vmatpush1.msra.mxu0 %v3847
    %3849 = vmatprep.subr.mxu0 0.0
    %v3850 = vand.u32 %v3502, 4294901760
    %v3851 = vsub.f32 %v3502, %v3850
    %v3852 = vand.u32 %v3851, 4294901760
    %3853 = vmatpush1.msra.mxu0 %v3852
    %3854 = vmatprep.subr.mxu0 0.0
    %v3855 = vand.u32 %v3503, 4294901760
    %v3856 = vsub.f32 %v3503, %v3855
    %v3857 = vand.u32 %v3856, 4294901760
    %3858 = vmatpush1.msra.mxu0 %v3857
    %3859 = vmatprep.subr.mxu0 0.0
    %v3860 = vand.u32 %v3504, 4294901760
    %v3861 = vsub.f32 %v3504, %v3860
    %v3862 = vand.u32 %v3861, 4294901760
    %3863 = vmatpush1.msra.mxu0 %v3862
    %3864 = vmatprep.subr.mxu0 0.0
    %3865 = vmatpush1.msra.mxu0 0.0
    %3866 = vmatprep.subr.mxu0 0.0
    %3867 = vmatpush1.msra.mxu0 0.0
    %3868 = vmatprep.subr.mxu0 0.0
    %3869 = vmatpush1.msra.mxu0 0.0
    %3870 = vmatprep.subr.mxu0 0.0
    %3871 = vmatpush1.msra.mxu0 0.0
    %3872 = vmatprep.subr.mxu0 0.0
    %3873 = vmatpush1.msra.mxu0 0.0
    %3874 = vmatprep.subr.mxu0 0.0
    %3875 = vmatpush1.msra.mxu0 0.0
    %3876 = vmatprep.subr.mxu0 0.0
    %3877 = vmatpush1.msra.mxu0 0.0
    %3878 = vmatprep.subr.mxu0 0.0
    %3879 = vmatpush1.msra.mxu0 0.0
    %3880 = vmatprep.subr.mxu0 0.0
    %3881 = vmatpush1.msra.mxu0 0.0
    %3882 = vmatprep.subr.mxu0 0.0
    %3883 = vmatpush1.msra.mxu0 0.0
    %3884 = vmatprep.subr.mxu0 0.0
    %3885 = vmatpush1.msra.mxu0 0.0
    %3886 = vmatprep.subr.mxu0 0.0
    %3887 = vmatpush1.msra.mxu0 0.0
    %3888 = vmatprep.subr.mxu0 0.0
    %3889 = vmatpush1.msra.mxu0 0.0
    %3890 = vmatprep.subr.mxu0 0.0
    %3891 = vmatpush1.msra.mxu0 0.0
    %3892 = vmatprep.subr.mxu0 0.0
    %3893 = vmatpush1.msra.mxu0 0.0
    %3894 = vmatprep.subr.mxu0 0.0
    %3895 = vmatpush1.msra.mxu0 0.0
    %3896 = vmatprep.subr.mxu0 0.0
    %3897 = vmatpush1.msra.mxu0 0.0
    %3898 = vmatprep.subr.mxu0 0.0
    %3899 = vmatpush1.msra.mxu0 0.0
    %3900 = vmatprep.subr.mxu0 0.0
    %3901 = vmatpush1.msra.mxu0 0.0
    %3902 = vmatprep.subr.mxu0 0.0
    %3903 = vmatpush1.msra.mxu0 0.0
    %3904 = vmatprep.subr.mxu0 0.0
    %3905 = vmatpush1.msra.mxu0 0.0
    %3906 = vmatprep.subr.mxu0 0.0
    %3907 = vmatpush1.msra.mxu0 0.0
    %3908 = vmatprep.subr.mxu0 0.0
    %3909 = vmatpush1.msra.mxu0 0.0
    %3910 = vmatprep.subr.mxu0 0.0
    %3911 = vmatpush1.msra.mxu0 0.0
    %3912 = vmatprep.subr.mxu0 0.0
    %3913 = vmatpush1.msra.mxu0 0.0
    %3914 = vmatprep.subr.mxu0 0.0
    %3915 = vmatpush1.msra.mxu0 0.0
    %3916 = vmatprep.subr.mxu0 0.0
    %3917 = vmatpush1.msra.mxu0 0.0
    %3918 = vmatprep.subr.mxu0 0.0
    %3919 = vmatpush1.msra.mxu0 0.0
    %3920 = vmatprep.mubr.f32.mxu0 0.0
    %v3921 = vand.u32 %v674, 4294901760
    %3922 = vmatmul.mubr.f32.gmra.mrb[0].mxu0 %v3921
    %v3923 = vpop.f32.mrb[0].mxu0
    %v3924 = vadd.f32 %v3841, %v3923
    %v3925 = vpop.f32.mrb[0].mxu0
    %3926 = vdwg.mxu0
    %3927 = vmatprep.subr.mxu0 0.0
    %v3928 = vand.u32 %v3501, 4294901760
    %3929 = vmatpush1.msra.mxu0 %v3928
    %3930 = vmatprep.subr.mxu0 0.0
    %v3931 = vand.u32 %v3502, 4294901760
    %3932 = vmatpush1.msra.mxu0 %v3931
    %3933 = vmatprep.subr.mxu0 0.0
    %v3934 = vand.u32 %v3503, 4294901760
    %3935 = vmatpush1.msra.mxu0 %v3934
    %3936 = vmatprep.subr.mxu0 0.0
    %v3937 = vand.u32 %v3504, 4294901760
    %3938 = vmatpush1.msra.mxu0 %v3937
    %3939 = vmatprep.subr.mxu0 0.0
    %3940 = vmatpush1.msra.mxu0 0.0
    %3941 = vmatprep.subr.mxu0 0.0
    %3942 = vmatpush1.msra.mxu0 0.0
    %3943 = vmatprep.subr.mxu0 0.0
    %3944 = vmatpush1.msra.mxu0 0.0
    %3945 = vmatprep.subr.mxu0 0.0
    %3946 = vmatpush1.msra.mxu0 0.0
    %3947 = vmatprep.subr.mxu0 0.0
    %3948 = vmatpush1.msra.mxu0 0.0
    %3949 = vmatprep.subr.mxu0 0.0
    %3950 = vmatpush1.msra.mxu0 0.0
    %3951 = vmatprep.subr.mxu0 0.0
    %3952 = vmatpush1.msra.mxu0 0.0
    %3953 = vmatprep.subr.mxu0 0.0
    %3954 = vmatpush1.msra.mxu0 0.0
    %3955 = vmatprep.subr.mxu0 0.0
    %3956 = vmatpush1.msra.mxu0 0.0
    %3957 = vmatprep.subr.mxu0 0.0
    %3958 = vmatpush1.msra.mxu0 0.0
    %3959 = vmatprep.subr.mxu0 0.0
    %3960 = vmatpush1.msra.mxu0 0.0
    %3961 = vmatprep.subr.mxu0 0.0
    %3962 = vmatpush1.msra.mxu0 0.0
    %3963 = vmatprep.subr.mxu0 0.0
    %3964 = vmatpush1.msra.mxu0 0.0
    %3965 = vmatprep.subr.mxu0 0.0
    %3966 = vmatpush1.msra.mxu0 0.0
    %3967 = vmatprep.subr.mxu0 0.0
    %3968 = vmatpush1.msra.mxu0 0.0
    %3969 = vmatprep.subr.mxu0 0.0
    %3970 = vmatpush1.msra.mxu0 0.0
    %3971 = vmatprep.subr.mxu0 0.0
    %3972 = vmatpush1.msra.mxu0 0.0
    %3973 = vmatprep.subr.mxu0 0.0
    %3974 = vmatpush1.msra.mxu0 0.0
    %3975 = vmatprep.subr.mxu0 0.0
    %3976 = vmatpush1.msra.mxu0 0.0
    %3977 = vmatprep.subr.mxu0 0.0
    %3978 = vmatpush1.msra.mxu0 0.0
    %3979 = vmatprep.subr.mxu0 0.0
    %3980 = vmatpush1.msra.mxu0 0.0
    %3981 = vmatprep.subr.mxu0 0.0
    %3982 = vmatpush1.msra.mxu0 0.0
    %3983 = vmatprep.subr.mxu0 0.0
    %3984 = vmatpush1.msra.mxu0 0.0
    %3985 = vmatprep.subr.mxu0 0.0
    %3986 = vmatpush1.msra.mxu0 0.0
    %3987 = vmatprep.subr.mxu0 0.0
    %3988 = vmatpush1.msra.mxu0 0.0
    %3989 = vmatprep.subr.mxu0 0.0
    %3990 = vmatpush1.msra.mxu0 0.0
    %3991 = vmatprep.subr.mxu0 0.0
    %3992 = vmatpush1.msra.mxu0 0.0
    %3993 = vmatprep.subr.mxu0 0.0
    %3994 = vmatpush1.msra.mxu0 0.0
    %3995 = vmatprep.mubr.f32.mxu0 0.0
    %v3996 = vand.u32 %v674, 4294901760
    %3997 = vmatmul.mubr.f32.gmra.mrb[0].mxu0 %v3996
    %v3998 = vpop.f32.mrb[0].mxu0
    %v3999 = vadd.f32 %v3924, %v3998
    %v4000 = vpop.f32.mrb[0].mxu0
    %4001 = vdwg.mxu0
    %v4002 = vmax.f32 %v3999, 0.0
    %4003 = vmatprep.subr.mxu0 0.0
    %v4004 = vand.u32 %v3507, 4294901760
    %4005 = vmatpush1.msra.mxu0 %v4004
    %4006 = vmatprep.subr.mxu0 0.0
    %v4007 = vand.u32 %v3510, 4294901760
    %4008 = vmatpush1.msra.mxu0 %v4007
    %4009 = vmatprep.subr.mxu0 0.0
    %v4010 = vand.u32 %v3513, 4294901760
    %4011 = vmatpush1.msra.mxu0 %v4010
    %4012 = vmatprep.subr.mxu0 0.0
    %v4013 = vand.u32 %v3516, 4294901760
    %4014 = vmatpush1.msra.mxu0 %v4013
    %4015 = vmatprep.subr.mxu0 0.0
    %4016 = vmatpush1.msra.mxu0 0.0
    %4017 = vmatprep.subr.mxu0 0.0
    %4018 = vmatpush1.msra.mxu0 0.0
    %4019 = vmatprep.subr.mxu0 0.0
    %4020 = vmatpush1.msra.mxu0 0.0
    %4021 = vmatprep.subr.mxu0 0.0
    %4022 = vmatpush1.msra.mxu0 0.0
    %4023 = vmatprep.subr.mxu0 0.0
    %4024 = vmatpush1.msra.mxu0 0.0
    %4025 = vmatprep.subr.mxu0 0.0
    %4026 = vmatpush1.msra.mxu0 0.0
    %4027 = vmatprep.subr.mxu0 0.0
    %4028 = vmatpush1.msra.mxu0 0.0
    %4029 = vmatprep.subr.mxu0 0.0
    %4030 = vmatpush1.msra.mxu0 0.0
    %4031 = vmatprep.subr.mxu0 0.0
    %4032 = vmatpush1.msra.mxu0 0.0
    %4033 = vmatprep.subr.mxu0 0.0
    %4034 = vmatpush1.msra.mxu0 0.0
    %4035 = vmatprep.subr.mxu0 0.0
    %4036 = vmatpush1.msra.mxu0 0.0
    %4037 = vmatprep.subr.mxu0 0.0
    %4038 = vmatpush1.msra.mxu0 0.0
    %4039 = vmatprep.subr.mxu0 0.0
    %4040 = vmatpush1.msra.mxu0 0.0
    %4041 = vmatprep.subr.mxu0 0.0
    %4042 = vmatpush1.msra.mxu0 0.0
    %4043 = vmatprep.subr.mxu0 0.0
    %4044 = vmatpush1.msra.mxu0 0.0
    %4045 = vmatprep.subr.mxu0 0.0
    %4046 = vmatpush1.msra.mxu0 0.0
    %4047 = vmatprep.subr.mxu0 0.0
    %4048 = vmatpush1.msra.mxu0 0.0
    %4049 = vmatprep.subr.mxu0 0.0
    %4050 = vmatpush1.msra.mxu0 0.0
    %4051 = vmatprep.subr.mxu0 0.0
    %4052 = vmatpush1.msra.mxu0 0.0
    %4053 = vmatprep.subr.mxu0 0.0
    %4054 = vmatpush1.msra.mxu0 0.0
    %4055 = vmatprep.subr.mxu0 0.0
    %4056 = vmatpush1.msra.mxu0 0.0
    %4057 = vmatprep.subr.mxu0 0.0
    %4058 = vmatpush1.msra.mxu0 0.0
    %4059 = vmatprep.subr.mxu0 0.0
    %4060 = vmatpush1.msra.mxu0 0.0
    %4061 = vmatprep.subr.mxu0 0.0
    %4062 = vmatpush1.msra.mxu0 0.0
    %4063 = vmatprep.subr.mxu0 0.0
    %4064 = vmatpush1.msra.mxu0 0.0
    %4065 = vmatprep.subr.mxu0 0.0
    %4066 = vmatpush1.msra.mxu0 0.0
    %4067 = vmatprep.subr.mxu0 0.0
    %4068 = vmatpush1.msra.mxu0 0.0
    %4069 = vmatprep.subr.mxu0 0.0
    %4070 = vmatpush1.msra.mxu0 0.0
    %4071 = vmatprep.mubr.f32.mxu0 0.0
    %v4072 = vand.u32 %v674, 4294901760
    %v4073 = vsub.f32 %v674, %v4072
    %v4074 = vand.u32 %v4073, 4294901760
    %v4075 = vsub.f32 %v4073, %v4074
    %v4076 = vand.u32 %v4075, 4294901760
    %4077 = vmatmul.mubr.f32.gmra.mrb[0].mxu0 %v4076
    %v4078 = vpop.f32.mrb[0].mxu0
    %v4079 = vadd.f32 0.0, %v4078
    %v4080 = vpop.f32.mrb[0].mxu0
    %4081 = vdwg.mxu0
    %4082 = vmatprep.subr.mxu0 0.0
    %v4083 = vand.u32 %v3507, 4294901760
    %v4084 = vsub.f32 %v3507, %v4083
    %v4085 = vand.u32 %v4084, 4294901760
    %v4086 = vsub.f32 %v4084, %v4085
    %v4087 = vand.u32 %v4086, 4294901760
    %4088 = vmatpush1.msra.mxu0 %v4087
    %4089 = vmatprep.subr.mxu0 0.0
    %v4090 = vand.u32 %v3510, 4294901760
    %v4091 = vsub.f32 %v3510, %v4090
    %v4092 = vand.u32 %v4091, 4294901760
    %v4093 = vsub.f32 %v4091, %v4092
    %v4094 = vand.u32 %v4093, 4294901760
    %4095 = vmatpush1.msra.mxu0 %v4094
    %4096 = vmatprep.subr.mxu0 0.0
    %v4097 = vand.u32 %v3513, 4294901760
    %v4098 = vsub.f32 %v3513, %v4097
    %v4099 = vand.u32 %v4098, 4294901760
    %v4100 = vsub.f32 %v4098, %v4099
    %v4101 = vand.u32 %v4100, 4294901760
    %4102 = vmatpush1.msra.mxu0 %v4101
    %4103 = vmatprep.subr.mxu0 0.0
    %v4104 = vand.u32 %v3516, 4294901760
    %v4105 = vsub.f32 %v3516, %v4104
    %v4106 = vand.u32 %v4105, 4294901760
    %v4107 = vsub.f32 %v4105, %v4106
    %v4108 = vand.u32 %v4107, 4294901760
    %4109 = vmatpush1.msra.mxu0 %v4108
    %4110 = vmatprep.subr.mxu0 0.0
    %4111 = vmatpush1.msra.mxu0 0.0
    %4112 = vmatprep.subr.mxu0 0.0
    %4113 = vmatpush1.msra.mxu0 0.0
    %4114 = vmatprep.subr.mxu0 0.0
    %4115 = vmatpush1.msra.mxu0 0.0
    %4116 = vmatprep.subr.mxu0 0.0
    %4117 = vmatpush1.msra.mxu0 0.0
    %4118 = vmatprep.subr.mxu0 0.0
    %4119 = vmatpush1.msra.mxu0 0.0
    %4120 = vmatprep.subr.mxu0 0.0
    %4121 = vmatpush1.msra.mxu0 0.0
    %4122 = vmatprep.subr.mxu0 0.0
    %4123 = vmatpush1.msra.mxu0 0.0
    %4124 = vmatprep.subr.mxu0 0.0
    %4125 = vmatpush1.msra.mxu0 0.0
    %4126 = vmatprep.subr.mxu0 0.0
    %4127 = vmatpush1.msra.mxu0 0.0
    %4128 = vmatprep.subr.mxu0 0.0
    %4129 = vmatpush1.msra.mxu0 0.0
    %4130 = vmatprep.subr.mxu0 0.0
    %4131 = vmatpush1.msra.mxu0 0.0
    %4132 = vmatprep.subr.mxu0 0.0
    %4133 = vmatpush1.msra.mxu0 0.0
    %4134 = vmatprep.subr.mxu0 0.0
    %4135 = vmatpush1.msra.mxu0 0.0
    %4136 = vmatprep.subr.mxu0 0.0
    %4137 = vmatpush1.msra.mxu0 0.0
    %4138 = vmatprep.subr.mxu0 0.0
    %4139 = vmatpush1.msra.mxu0 0.0
    %4140 = vmatprep.subr.mxu0 0.0
    %4141 = vmatpush1.msra.mxu0 0.0
    %4142 = vmatprep.subr.mxu0 0.0
    %4143 = vmatpush1.msra.mxu0 0.0
    %4144 = vmatprep.subr.mxu0 0.0
    %4145 = vmatpush1.msra.mxu0 0.0
    %4146 = vmatprep.subr.mxu0 0.0
    %4147 = vmatpush1.msra.mxu0 0.0
    %4148 = vmatprep.subr.mxu0 0.0
    %4149 = vmatpush1.msra.mxu0 0.0
    %4150 = vmatprep.subr.mxu0 0.0
    %4151 = vmatpush1.msra.mxu0 0.0
    %4152 = vmatprep.subr.mxu0 0.0
    %4153 = vmatpush1.msra.mxu0 0.0
    %4154 = vmatprep.subr.mxu0 0.0
    %4155 = vmatpush1.msra.mxu0 0.0
    %4156 = vmatprep.subr.mxu0 0.0
    %4157 = vmatpush1.msra.mxu0 0.0
    %4158 = vmatprep.subr.mxu0 0.0
    %4159 = vmatpush1.msra.mxu0 0.0
    %4160 = vmatprep.subr.mxu0 0.0
    %4161 = vmatpush1.msra.mxu0 0.0
    %4162 = vmatprep.subr.mxu0 0.0
    %4163 = vmatpush1.msra.mxu0 0.0
    %4164 = vmatprep.subr.mxu0 0.0
    %4165 = vmatpush1.msra.mxu0 0.0
    %4166 = vmatprep.mubr.f32.mxu0 0.0
    %v4167 = vand.u32 %v674, 4294901760
    %4168 = vmatmul.mubr.f32.gmra.mrb[0].mxu0 %v4167
    %v4169 = vpop.f32.mrb[0].mxu0
    %v4170 = vadd.f32 %v4079, %v4169
    %v4171 = vpop.f32.mrb[0].mxu0
    %4172 = vdwg.mxu0
    %4173 = vmatprep.subr.mxu0 0.0
    %v4174 = vand.u32 %v3507, 4294901760
    %v4175 = vsub.f32 %v3507, %v4174
    %4176 = vmatpush1.msra.mxu0 %v4175
    %4177 = vmatprep.subr.mxu0 0.0
    %v4178 = vand.u32 %v3510, 4294901760
    %v4179 = vsub.f32 %v3510, %v4178
    %4180 = vmatpush1.msra.mxu0 %v4179
    %4181 = vmatprep.subr.mxu0 0.0
    %v4182 = vand.u32 %v3513, 4294901760
    %v4183 = vsub.f32 %v3513, %v4182
    %4184 = vmatpush1.msra.mxu0 %v4183
    %4185 = vmatprep.subr.mxu0 0.0
    %v4186 = vand.u32 %v3516, 4294901760
    %v4187 = vsub.f32 %v3516, %v4186
    %4188 = vmatpush1.msra.mxu0 %v4187
    %4189 = vmatprep.subr.mxu0 0.0
    %4190 = vmatpush1.msra.mxu0 0.0
    %4191 = vmatprep.subr.mxu0 0.0
    %4192 = vmatpush1.msra.mxu0 0.0
    %4193 = vmatprep.subr.mxu0 0.0
    %4194 = vmatpush1.msra.mxu0 0.0
    %4195 = vmatprep.subr.mxu0 0.0
    %4196 = vmatpush1.msra.mxu0 0.0
    %4197 = vmatprep.subr.mxu0 0.0
    %4198 = vmatpush1.msra.mxu0 0.0
    %4199 = vmatprep.subr.mxu0 0.0
    %4200 = vmatpush1.msra.mxu0 0.0
    %4201 = vmatprep.subr.mxu0 0.0
    %4202 = vmatpush1.msra.mxu0 0.0
    %4203 = vmatprep.subr.mxu0 0.0
    %4204 = vmatpush1.msra.mxu0 0.0
    %4205 = vmatprep.subr.mxu0 0.0
    %4206 = vmatpush1.msra.mxu0 0.0
    %4207 = vmatprep.subr.mxu0 0.0
    %4208 = vmatpush1.msra.mxu0 0.0
    %4209 = vmatprep.subr.mxu0 0.0
    %4210 = vmatpush1.msra.mxu0 0.0
    %4211 = vmatprep.subr.mxu0 0.0
    %4212 = vmatpush1.msra.mxu0 0.0
    %4213 = vmatprep.subr.mxu0 0.0
    %4214 = vmatpush1.msra.mxu0 0.0
    %4215 = vmatprep.subr.mxu0 0.0
    %4216 = vmatpush1.msra.mxu0 0.0
    %4217 = vmatprep.subr.mxu0 0.0
    %4218 = vmatpush1.msra.mxu0 0.0
    %4219 = vmatprep.subr.mxu0 0.0
    %4220 = vmatpush1.msra.mxu0 0.0
    %4221 = vmatprep.subr.mxu0 0.0
    %4222 = vmatpush1.msra.mxu0 0.0
    %4223 = vmatprep.subr.mxu0 0.0
    %4224 = vmatpush1.msra.mxu0 0.0
    %4225 = vmatprep.subr.mxu0 0.0
    %4226 = vmatpush1.msra.mxu0 0.0
    %4227 = vmatprep.subr.mxu0 0.0
    %4228 = vmatpush1.msra.mxu0 0.0
    %4229 = vmatprep.subr.mxu0 0.0
    %4230 = vmatpush1.msra.mxu0 0.0
    %4231 = vmatprep.subr.mxu0 0.0
    %4232 = vmatpush1.msra.mxu0 0.0
    %4233 = vmatprep.subr.mxu0 0.0
    %4234 = vmatpush1.msra.mxu0 0.0
    %4235 = vmatprep.subr.mxu0 0.0
    %4236 = vmatpush1.msra.mxu0 0.0
    %4237 = vmatprep.subr.mxu0 0.0
    %4238 = vmatpush1.msra.mxu0 0.0
    %4239 = vmatprep.subr.mxu0 0.0
    %4240 = vmatpush1.msra.mxu0 0.0
    %4241 = vmatprep.subr.mxu0 0.0
    %4242 = vmatpush1.msra.mxu0 0.0
    %4243 = vmatprep.subr.mxu0 0.0
    %4244 = vmatpush1.msra.mxu0 0.0
    %4245 = vmatprep.mubr.f32.mxu0 0.0
    %v4246 = vand.u32 %v674, 4294901760
    %v4247 = vsub.f32 %v674, %v4246
    %4248 = vmatmul.mubr.f32.gmra.mrb[0].mxu0 %v4247
    %v4249 = vpop.f32.mrb[0].mxu0
    %v4250 = vadd.f32 %v4170, %v4249
    %v4251 = vpop.f32.mrb[0].mxu0
    %4252 = vdwg.mxu0
    %4253 = vmatprep.subr.mxu0 0.0
    %v4254 = vand.u32 %v3507, 4294901760
    %4255 = vmatpush1.msra.mxu0 %v4254
    %4256 = vmatprep.subr.mxu0 0.0
    %v4257 = vand.u32 %v3510, 4294901760
    %4258 = vmatpush1.msra.mxu0 %v4257
    %4259 = vmatprep.subr.mxu0 0.0
    %v4260 = vand.u32 %v3513, 4294901760
    %4261 = vmatpush1.msra.mxu0 %v4260
    %4262 = vmatprep.subr.mxu0 0.0
    %v4263 = vand.u32 %v3516, 4294901760
    %4264 = vmatpush1.msra.mxu0 %v4263
    %4265 = vmatprep.subr.mxu0 0.0
    %4266 = vmatpush1.msra.mxu0 0.0
    %4267 = vmatprep.subr.mxu0 0.0
    %4268 = vmatpush1.msra.mxu0 0.0
    %4269 = vmatprep.subr.mxu0 0.0
    %4270 = vmatpush1.msra.mxu0 0.0
    %4271 = vmatprep.subr.mxu0 0.0
    %4272 = vmatpush1.msra.mxu0 0.0
    %4273 = vmatprep.subr.mxu0 0.0
    %4274 = vmatpush1.msra.mxu0 0.0
    %4275 = vmatprep.subr.mxu0 0.0
    %4276 = vmatpush1.msra.mxu0 0.0
    %4277 = vmatprep.subr.mxu0 0.0
    %4278 = vmatpush1.msra.mxu0 0.0
    %4279 = vmatprep.subr.mxu0 0.0
    %4280 = vmatpush1.msra.mxu0 0.0
    %4281 = vmatprep.subr.mxu0 0.0
    %4282 = vmatpush1.msra.mxu0 0.0
    %4283 = vmatprep.subr.mxu0 0.0
    %4284 = vmatpush1.msra.mxu0 0.0
    %4285 = vmatprep.subr.mxu0 0.0
    %4286 = vmatpush1.msra.mxu0 0.0
    %4287 = vmatprep.subr.mxu0 0.0
    %4288 = vmatpush1.msra.mxu0 0.0
    %4289 = vmatprep.subr.mxu0 0.0
    %4290 = vmatpush1.msra.mxu0 0.0
    %4291 = vmatprep.subr.mxu0 0.0
    %4292 = vmatpush1.msra.mxu0 0.0
    %4293 = vmatprep.subr.mxu0 0.0
    %4294 = vmatpush1.msra.mxu0 0.0
    %4295 = vmatprep.subr.mxu0 0.0
    %4296 = vmatpush1.msra.mxu0 0.0
    %4297 = vmatprep.subr.mxu0 0.0
    %4298 = vmatpush1.msra.mxu0 0.0
    %4299 = vmatprep.subr.mxu0 0.0
    %4300 = vmatpush1.msra.mxu0 0.0
    %4301 = vmatprep.subr.mxu0 0.0
    %4302 = vmatpush1.msra.mxu0 0.0
    %4303 = vmatprep.subr.mxu0 0.0
    %4304 = vmatpush1.msra.mxu0 0.0
    %4305 = vmatprep.subr.mxu0 0.0
    %4306 = vmatpush1.msra.mxu0 0.0
    %4307 = vmatprep.subr.mxu0 0.0
    %4308 = vmatpush1.msra.mxu0 0.0
    %4309 = vmatprep.subr.mxu0 0.0
    %4310 = vmatpush1.msra.mxu0 0.0
    %4311 = vmatprep.subr.mxu0 0.0
    %4312 = vmatpush1.msra.mxu0 0.0
    %4313 = vmatprep.subr.mxu0 0.0
    %4314 = vmatpush1.msra.mxu0 0.0
    %4315 = vmatprep.subr.mxu0 0.0
    %4316 = vmatpush1.msra.mxu0 0.0
    %4317 = vmatprep.subr.mxu0 0.0
    %4318 = vmatpush1.msra.mxu0 0.0
    %4319 = vmatprep.subr.mxu0 0.0
    %4320 = vmatpush1.msra.mxu0 0.0
    %4321 = vmatprep.mubr.f32.mxu0 0.0
    %v4322 = vand.u32 %v674, 4294901760
    %v4323 = vsub.f32 %v674, %v4322
    %v4324 = vand.u32 %v4323, 4294901760
    %4325 = vmatmul.mubr.f32.gmra.mrb[0].mxu0 %v4324
    %v4326 = vpop.f32.mrb[0].mxu0
    %v4327 = vadd.f32 %v4250, %v4326
    %v4328 = vpop.f32.mrb[0].mxu0
    %4329 = vdwg.mxu0
    %4330 = vmatprep.subr.mxu0 0.0
    %v4331 = vand.u32 %v3507, 4294901760
    %v4332 = vsub.f32 %v3507, %v4331
    %v4333 = vand.u32 %v4332, 4294901760
    %4334 = vmatpush1.msra.mxu0 %v4333
    %4335 = vmatprep.subr.mxu0 0.0
    %v4336 = vand.u32 %v3510, 4294901760
    %v4337 = vsub.f32 %v3510, %v4336
    %v4338 = vand.u32 %v4337, 4294901760
    %4339 = vmatpush1.msra.mxu0 %v4338
    %4340 = vmatprep.subr.mxu0 0.0
    %v4341 = vand.u32 %v3513, 4294901760
    %v4342 = vsub.f32 %v3513, %v4341
    %v4343 = vand.u32 %v4342, 4294901760
    %4344 = vmatpush1.msra.mxu0 %v4343
    %4345 = vmatprep.subr.mxu0 0.0
    %v4346 = vand.u32 %v3516, 4294901760
    %v4347 = vsub.f32 %v3516, %v4346
    %v4348 = vand.u32 %v4347, 4294901760
    %4349 = vmatpush1.msra.mxu0 %v4348
    %4350 = vmatprep.subr.mxu0 0.0
    %4351 = vmatpush1.msra.mxu0 0.0
    %4352 = vmatprep.subr.mxu0 0.0
    %4353 = vmatpush1.msra.mxu0 0.0
    %4354 = vmatprep.subr.mxu0 0.0
    %4355 = vmatpush1.msra.mxu0 0.0
    %4356 = vmatprep.subr.mxu0 0.0
    %4357 = vmatpush1.msra.mxu0 0.0
    %4358 = vmatprep.subr.mxu0 0.0
    %4359 = vmatpush1.msra.mxu0 0.0
    %4360 = vmatprep.subr.mxu0 0.0
    %4361 = vmatpush1.msra.mxu0 0.0
    %4362 = vmatprep.subr.mxu0 0.0
    %4363 = vmatpush1.msra.mxu0 0.0
    %4364 = vmatprep.subr.mxu0 0.0
    %4365 = vmatpush1.msra.mxu0 0.0
    %4366 = vmatprep.subr.mxu0 0.0
    %4367 = vmatpush1.msra.mxu0 0.0
    %4368 = vmatprep.subr.mxu0 0.0
    %4369 = vmatpush1.msra.mxu0 0.0
    %4370 = vmatprep.subr.mxu0 0.0
    %4371 = vmatpush1.msra.mxu0 0.0
    %4372 = vmatprep.subr.mxu0 0.0
    %4373 = vmatpush1.msra.mxu0 0.0
    %4374 = vmatprep.subr.mxu0 0.0
    %4375 = vmatpush1.msra.mxu0 0.0
    %4376 = vmatprep.subr.mxu0 0.0
    %4377 = vmatpush1.msra.mxu0 0.0
    %4378 = vmatprep.subr.mxu0 0.0
    %4379 = vmatpush1.msra.mxu0 0.0
    %4380 = vmatprep.subr.mxu0 0.0
    %4381 = vmatpush1.msra.mxu0 0.0
    %4382 = vmatprep.subr.mxu0 0.0
    %4383 = vmatpush1.msra.mxu0 0.0
    %4384 = vmatprep.subr.mxu0 0.0
    %4385 = vmatpush1.msra.mxu0 0.0
    %4386 = vmatprep.subr.mxu0 0.0
    %4387 = vmatpush1.msra.mxu0 0.0
    %4388 = vmatprep.subr.mxu0 0.0
    %4389 = vmatpush1.msra.mxu0 0.0
    %4390 = vmatprep.subr.mxu0 0.0
    %4391 = vmatpush1.msra.mxu0 0.0
    %4392 = vmatprep.subr.mxu0 0.0
    %4393 = vmatpush1.msra.mxu0 0.0
    %4394 = vmatprep.subr.mxu0 0.0
    %4395 = vmatpush1.msra.mxu0 0.0
    %4396 = vmatprep.subr.mxu0 0.0
    %4397 = vmatpush1.msra.mxu0 0.0
    %4398 = vmatprep.subr.mxu0 0.0
    %4399 = vmatpush1.msra.mxu0 0.0
    %4400 = vmatprep.subr.mxu0 0.0
    %4401 = vmatpush1.msra.mxu0 0.0
    %4402 = vmatprep.subr.mxu0 0.0
    %4403 = vmatpush1.msra.mxu0 0.0
    %4404 = vmatprep.subr.mxu0 0.0
    %4405 = vmatpush1.msra.mxu0 0.0
    %4406 = vmatprep.mubr.f32.mxu0 0.0
    %v4407 = vand.u32 %v674, 4294901760
    %4408 = vmatmul.mubr.f32.gmra.mrb[0].mxu0 %v4407
    %v4409 = vpop.f32.mrb[0].mxu0
    %v4410 = vadd.f32 %v4327, %v4409
    %v4411 = vpop.f32.mrb[0].mxu0
    %4412 = vdwg.mxu0
    %4413 = vmatprep.subr.mxu0 0.0
    %v4414 = vand.u32 %v3507, 4294901760
    %4415 = vmatpush1.msra.mxu0 %v4414
    %4416 = vmatprep.subr.mxu0 0.0
    %v4417 = vand.u32 %v3510, 4294901760
    %4418 = vmatpush1.msra.mxu0 %v4417
    %4419 = vmatprep.subr.mxu0 0.0
    %v4420 = vand.u32 %v3513, 4294901760
    %4421 = vmatpush1.msra.mxu0 %v4420
    %4422 = vmatprep.subr.mxu0 0.0
    %v4423 = vand.u32 %v3516, 4294901760
    %4424 = vmatpush1.msra.mxu0 %v4423
    %4425 = vmatprep.subr.mxu0 0.0
    %4426 = vmatpush1.msra.mxu0 0.0
    %4427 = vmatprep.subr.mxu0 0.0
    %4428 = vmatpush1.msra.mxu0 0.0
    %4429 = vmatprep.subr.mxu0 0.0
    %4430 = vmatpush1.msra.mxu0 0.0
    %4431 = vmatprep.subr.mxu0 0.0
    %4432 = vmatpush1.msra.mxu0 0.0
    %4433 = vmatprep.subr.mxu0 0.0
    %4434 = vmatpush1.msra.mxu0 0.0
    %4435 = vmatprep.subr.mxu0 0.0
    %4436 = vmatpush1.msra.mxu0 0.0
    %4437 = vmatprep.subr.mxu0 0.0
    %4438 = vmatpush1.msra.mxu0 0.0
    %4439 = vmatprep.subr.mxu0 0.0
    %4440 = vmatpush1.msra.mxu0 0.0
    %4441 = vmatprep.subr.mxu0 0.0
    %4442 = vmatpush1.msra.mxu0 0.0
    %4443 = vmatprep.subr.mxu0 0.0
    %4444 = vmatpush1.msra.mxu0 0.0
    %4445 = vmatprep.subr.mxu0 0.0
    %4446 = vmatpush1.msra.mxu0 0.0
    %4447 = vmatprep.subr.mxu0 0.0
    %4448 = vmatpush1.msra.mxu0 0.0
    %4449 = vmatprep.subr.mxu0 0.0
    %4450 = vmatpush1.msra.mxu0 0.0
    %4451 = vmatprep.subr.mxu0 0.0
    %4452 = vmatpush1.msra.mxu0 0.0
    %4453 = vmatprep.subr.mxu0 0.0
    %4454 = vmatpush1.msra.mxu0 0.0
    %4455 = vmatprep.subr.mxu0 0.0
    %4456 = vmatpush1.msra.mxu0 0.0
    %4457 = vmatprep.subr.mxu0 0.0
    %4458 = vmatpush1.msra.mxu0 0.0
    %4459 = vmatprep.subr.mxu0 0.0
    %4460 = vmatpush1.msra.mxu0 0.0
    %4461 = vmatprep.subr.mxu0 0.0
    %4462 = vmatpush1.msra.mxu0 0.0
    %4463 = vmatprep.subr.mxu0 0.0
    %4464 = vmatpush1.msra.mxu0 0.0
    %4465 = vmatprep.subr.mxu0 0.0
    %4466 = vmatpush1.msra.mxu0 0.0
    %4467 = vmatprep.subr.mxu0 0.0
    %4468 = vmatpush1.msra.mxu0 0.0
    %4469 = vmatprep.subr.mxu0 0.0
    %4470 = vmatpush1.msra.mxu0 0.0
    %4471 = vmatprep.subr.mxu0 0.0
    %4472 = vmatpush1.msra.mxu0 0.0
    %4473 = vmatprep.subr.mxu0 0.0
    %4474 = vmatpush1.msra.mxu0 0.0
    %4475 = vmatprep.subr.mxu0 0.0
    %4476 = vmatpush1.msra.mxu0 0.0
    %4477 = vmatprep.subr.mxu0 0.0
    %4478 = vmatpush1.msra.mxu0 0.0
    %4479 = vmatprep.subr.mxu0 0.0
    %4480 = vmatpush1.msra.mxu0 0.0
    %4481 = vmatprep.mubr.f32.mxu0 0.0
    %v4482 = vand.u32 %v674, 4294901760
    %4483 = vmatmul.mubr.f32.gmra.mrb[0].mxu0 %v4482
    %v4484 = vpop.f32.mrb[0].mxu0
    %v4485 = vadd.f32 %v4410, %v4484
    %v4486 = vpop.f32.mrb[0].mxu0
    %4487 = vdwg.mxu0
    %v4488 = vmax.f32 %v4485, 0.0
    %v4490 = vsel %vm1661, %v4488, 0
    %4492 = vmatprep.subr.mxu0 0.0
    %v4493 = vand.u32 %v4490, 4294901760
    %4494 = vmatpush1.msra.mxu0 %v4493
    %4495 = vmatprep.subr.mxu0 0.0
    %4496 = vmatpush1.msra.mxu0 0.0
    %4497 = vmatprep.subr.mxu0 0.0
    %4498 = vmatpush1.msra.mxu0 0.0
    %4499 = vmatprep.subr.mxu0 0.0
    %4500 = vmatpush1.msra.mxu0 0.0
    %4501 = vmatprep.subr.mxu0 0.0
    %4502 = vmatpush1.msra.mxu0 0.0
    %4503 = vmatprep.subr.mxu0 0.0
    %4504 = vmatpush1.msra.mxu0 0.0
    %4505 = vmatprep.subr.mxu0 0.0
    %4506 = vmatpush1.msra.mxu0 0.0
    %4507 = vmatprep.subr.mxu0 0.0
    %4508 = vmatpush1.msra.mxu0 0.0
    %4509 = vmatprep.subr.mxu0 0.0
    %4510 = vmatpush1.msra.mxu0 0.0
    %4511 = vmatprep.subr.mxu0 0.0
    %4512 = vmatpush1.msra.mxu0 0.0
    %4513 = vmatprep.subr.mxu0 0.0
    %4514 = vmatpush1.msra.mxu0 0.0
    %4515 = vmatprep.subr.mxu0 0.0
    %4516 = vmatpush1.msra.mxu0 0.0
    %4517 = vmatprep.subr.mxu0 0.0
    %4518 = vmatpush1.msra.mxu0 0.0
    %4519 = vmatprep.subr.mxu0 0.0
    %4520 = vmatpush1.msra.mxu0 0.0
    %4521 = vmatprep.subr.mxu0 0.0
    %4522 = vmatpush1.msra.mxu0 0.0
    %4523 = vmatprep.subr.mxu0 0.0
    %4524 = vmatpush1.msra.mxu0 0.0
    %4525 = vmatprep.subr.mxu0 0.0
    %4526 = vmatpush1.msra.mxu0 0.0
    %4527 = vmatprep.subr.mxu0 0.0
    %4528 = vmatpush1.msra.mxu0 0.0
    %4529 = vmatprep.subr.mxu0 0.0
    %4530 = vmatpush1.msra.mxu0 0.0
    %4531 = vmatprep.subr.mxu0 0.0
    %4532 = vmatpush1.msra.mxu0 0.0
    %4533 = vmatprep.subr.mxu0 0.0
    %4534 = vmatpush1.msra.mxu0 0.0
    %4535 = vmatprep.subr.mxu0 0.0
    %4536 = vmatpush1.msra.mxu0 0.0
    %4537 = vmatprep.subr.mxu0 0.0
    %4538 = vmatpush1.msra.mxu0 0.0
    %4539 = vmatprep.subr.mxu0 0.0
    %4540 = vmatpush1.msra.mxu0 0.0
    %4541 = vmatprep.subr.mxu0 0.0
    %4542 = vmatpush1.msra.mxu0 0.0
    %4543 = vmatprep.subr.mxu0 0.0
    %4544 = vmatpush1.msra.mxu0 0.0
    %4545 = vmatprep.subr.mxu0 0.0
    %4546 = vmatpush1.msra.mxu0 0.0
    %4547 = vmatprep.subr.mxu0 0.0
    %4548 = vmatpush1.msra.mxu0 0.0
    %4549 = vmatprep.subr.mxu0 0.0
    %4550 = vmatpush1.msra.mxu0 0.0
    %4551 = vmatprep.subr.mxu0 0.0
    %4552 = vmatpush1.msra.mxu0 0.0
    %4553 = vmatprep.subr.mxu0 0.0
    %4554 = vmatpush1.msra.mxu0 0.0
    %4555 = vmatprep.subr.mxu0 0.0
    %4556 = vmatpush1.msra.mxu0 0.0
    %4557 = vmatprep.mubr.f32.mxu0 0.0
    %v4558 = vand.u32 %v1650, 4294901760
    %v4559 = vsub.f32 %v1650, %v4558
    %v4560 = vand.u32 %v4559, 4294901760
    %v4561 = vsub.f32 %v4559, %v4560
    %v4562 = vand.u32 %v4561, 4294901760
    %4563 = vmatmul.mubr.f32.gmra.mrb[0].mxu0 %v4562
    %v4564 = vpop.f32.mrb[0].mxu0
    %v4565 = vadd.f32 0.0, %v4564
    %v4566 = vpop.f32.mrb[0].mxu0
    %4567 = vmatprep.mubr.f32.mxu0 0.0
    %v4568 = vand.u32 %v1653, 4294901760
    %v4569 = vsub.f32 %v1653, %v4568
    %v4570 = vand.u32 %v4569, 4294901760
    %v4571 = vsub.f32 %v4569, %v4570
    %v4572 = vand.u32 %v4571, 4294901760
    %4573 = vmatmul.mubr.f32.gmra.mrb[0].mxu0 %v4572
    %v4574 = vpop.f32.mrb[0].mxu0
    %v4575 = vadd.f32 0.0, %v4574
    %v4576 = vpop.f32.mrb[0].mxu0
    %4577 = vmatprep.mubr.f32.mxu0 0.0
    %v4578 = vand.u32 %v1656, 4294901760
    %v4579 = vsub.f32 %v1656, %v4578
    %v4580 = vand.u32 %v4579, 4294901760
    %v4581 = vsub.f32 %v4579, %v4580
    %v4582 = vand.u32 %v4581, 4294901760
    %4583 = vmatmul.mubr.f32.gmra.mrb[0].mxu0 %v4582
    %v4584 = vpop.f32.mrb[0].mxu0
    %v4585 = vadd.f32 0.0, %v4584
    %v4586 = vpop.f32.mrb[0].mxu0
    %4587 = vmatprep.mubr.f32.mxu0 0.0
    %v4588 = vand.u32 %v1659, 4294901760
    %v4589 = vsub.f32 %v1659, %v4588
    %v4590 = vand.u32 %v4589, 4294901760
    %v4591 = vsub.f32 %v4589, %v4590
    %v4592 = vand.u32 %v4591, 4294901760
    %4593 = vmatmul.mubr.f32.gmra.mrb[0].mxu0 %v4592
    %v4594 = vpop.f32.mrb[0].mxu0
    %v4595 = vadd.f32 0.0, %v4594
    %v4596 = vpop.f32.mrb[0].mxu0
    %4597 = vdwg.mxu0
    %4598 = vmatprep.subr.mxu0 0.0
    %v4599 = vand.u32 %v4490, 4294901760
    %v4600 = vsub.f32 %v4490, %v4599
    %v4601 = vand.u32 %v4600, 4294901760
    %v4602 = vsub.f32 %v4600, %v4601
    %v4603 = vand.u32 %v4602, 4294901760
    %4604 = vmatpush1.msra.mxu0 %v4603
    %4605 = vmatprep.subr.mxu0 0.0
    %4606 = vmatpush1.msra.mxu0 0.0
    %4607 = vmatprep.subr.mxu0 0.0
    %4608 = vmatpush1.msra.mxu0 0.0
    %4609 = vmatprep.subr.mxu0 0.0
    %4610 = vmatpush1.msra.mxu0 0.0
    %4611 = vmatprep.subr.mxu0 0.0
    %4612 = vmatpush1.msra.mxu0 0.0
    %4613 = vmatprep.subr.mxu0 0.0
    %4614 = vmatpush1.msra.mxu0 0.0
    %4615 = vmatprep.subr.mxu0 0.0
    %4616 = vmatpush1.msra.mxu0 0.0
    %4617 = vmatprep.subr.mxu0 0.0
    %4618 = vmatpush1.msra.mxu0 0.0
    %4619 = vmatprep.subr.mxu0 0.0
    %4620 = vmatpush1.msra.mxu0 0.0
    %4621 = vmatprep.subr.mxu0 0.0
    %4622 = vmatpush1.msra.mxu0 0.0
    %4623 = vmatprep.subr.mxu0 0.0
    %4624 = vmatpush1.msra.mxu0 0.0
    %4625 = vmatprep.subr.mxu0 0.0
    %4626 = vmatpush1.msra.mxu0 0.0
    %4627 = vmatprep.subr.mxu0 0.0
    %4628 = vmatpush1.msra.mxu0 0.0
    %4629 = vmatprep.subr.mxu0 0.0
    %4630 = vmatpush1.msra.mxu0 0.0
    %4631 = vmatprep.subr.mxu0 0.0
    %4632 = vmatpush1.msra.mxu0 0.0
    %4633 = vmatprep.subr.mxu0 0.0
    %4634 = vmatpush1.msra.mxu0 0.0
    %4635 = vmatprep.subr.mxu0 0.0
    %4636 = vmatpush1.msra.mxu0 0.0
    %4637 = vmatprep.subr.mxu0 0.0
    %4638 = vmatpush1.msra.mxu0 0.0
    %4639 = vmatprep.subr.mxu0 0.0
    %4640 = vmatpush1.msra.mxu0 0.0
    %4641 = vmatprep.subr.mxu0 0.0
    %4642 = vmatpush1.msra.mxu0 0.0
    %4643 = vmatprep.subr.mxu0 0.0
    %4644 = vmatpush1.msra.mxu0 0.0
    %4645 = vmatprep.subr.mxu0 0.0
    %4646 = vmatpush1.msra.mxu0 0.0
    %4647 = vmatprep.subr.mxu0 0.0
    %4648 = vmatpush1.msra.mxu0 0.0
    %4649 = vmatprep.subr.mxu0 0.0
    %4650 = vmatpush1.msra.mxu0 0.0
    %4651 = vmatprep.subr.mxu0 0.0
    %4652 = vmatpush1.msra.mxu0 0.0
    %4653 = vmatprep.subr.mxu0 0.0
    %4654 = vmatpush1.msra.mxu0 0.0
    %4655 = vmatprep.subr.mxu0 0.0
    %4656 = vmatpush1.msra.mxu0 0.0
    %4657 = vmatprep.subr.mxu0 0.0
    %4658 = vmatpush1.msra.mxu0 0.0
    %4659 = vmatprep.subr.mxu0 0.0
    %4660 = vmatpush1.msra.mxu0 0.0
    %4661 = vmatprep.subr.mxu0 0.0
    %4662 = vmatpush1.msra.mxu0 0.0
    %4663 = vmatprep.subr.mxu0 0.0
    %4664 = vmatpush1.msra.mxu0 0.0
    %4665 = vmatprep.subr.mxu0 0.0
    %4666 = vmatpush1.msra.mxu0 0.0
    %4667 = vmatprep.mubr.f32.mxu0 0.0
    %v4668 = vand.u32 %v1650, 4294901760
    %4669 = vmatmul.mubr.f32.gmra.mrb[0].mxu0 %v4668
    %v4670 = vpop.f32.mrb[0].mxu0
    %v4671 = vadd.f32 %v4565, %v4670
    %v4672 = vpop.f32.mrb[0].mxu0
    %4673 = vmatprep.mubr.f32.mxu0 0.0
    %v4674 = vand.u32 %v1653, 4294901760
    %4675 = vmatmul.mubr.f32.gmra.mrb[0].mxu0 %v4674
    %v4676 = vpop.f32.mrb[0].mxu0
    %v4677 = vadd.f32 %v4575, %v4676
    %v4678 = vpop.f32.mrb[0].mxu0
    %4679 = vmatprep.mubr.f32.mxu0 0.0
    %v4680 = vand.u32 %v1656, 4294901760
    %4681 = vmatmul.mubr.f32.gmra.mrb[0].mxu0 %v4680
    %v4682 = vpop.f32.mrb[0].mxu0
    %v4683 = vadd.f32 %v4585, %v4682
    %v4684 = vpop.f32.mrb[0].mxu0
    %4685 = vmatprep.mubr.f32.mxu0 0.0
    %v4686 = vand.u32 %v1659, 4294901760
    %4687 = vmatmul.mubr.f32.gmra.mrb[0].mxu0 %v4686
    %v4688 = vpop.f32.mrb[0].mxu0
    %v4689 = vadd.f32 %v4595, %v4688
    %v4690 = vpop.f32.mrb[0].mxu0
    %4691 = vdwg.mxu0
    %4692 = vmatprep.subr.mxu0 0.0
    %v4693 = vand.u32 %v4490, 4294901760
    %v4694 = vsub.f32 %v4490, %v4693
    %4695 = vmatpush1.msra.mxu0 %v4694
    %4696 = vmatprep.subr.mxu0 0.0
    %4697 = vmatpush1.msra.mxu0 0.0
    %4698 = vmatprep.subr.mxu0 0.0
    %4699 = vmatpush1.msra.mxu0 0.0
    %4700 = vmatprep.subr.mxu0 0.0
    %4701 = vmatpush1.msra.mxu0 0.0
    %4702 = vmatprep.subr.mxu0 0.0
    %4703 = vmatpush1.msra.mxu0 0.0
    %4704 = vmatprep.subr.mxu0 0.0
    %4705 = vmatpush1.msra.mxu0 0.0
    %4706 = vmatprep.subr.mxu0 0.0
    %4707 = vmatpush1.msra.mxu0 0.0
    %4708 = vmatprep.subr.mxu0 0.0
    %4709 = vmatpush1.msra.mxu0 0.0
    %4710 = vmatprep.subr.mxu0 0.0
    %4711 = vmatpush1.msra.mxu0 0.0
    %4712 = vmatprep.subr.mxu0 0.0
    %4713 = vmatpush1.msra.mxu0 0.0
    %4714 = vmatprep.subr.mxu0 0.0
    %4715 = vmatpush1.msra.mxu0 0.0
    %4716 = vmatprep.subr.mxu0 0.0
    %4717 = vmatpush1.msra.mxu0 0.0
    %4718 = vmatprep.subr.mxu0 0.0
    %4719 = vmatpush1.msra.mxu0 0.0
    %4720 = vmatprep.subr.mxu0 0.0
    %4721 = vmatpush1.msra.mxu0 0.0
    %4722 = vmatprep.subr.mxu0 0.0
    %4723 = vmatpush1.msra.mxu0 0.0
    %4724 = vmatprep.subr.mxu0 0.0
    %4725 = vmatpush1.msra.mxu0 0.0
    %4726 = vmatprep.subr.mxu0 0.0
    %4727 = vmatpush1.msra.mxu0 0.0
    %4728 = vmatprep.subr.mxu0 0.0
    %4729 = vmatpush1.msra.mxu0 0.0
    %4730 = vmatprep.subr.mxu0 0.0
    %4731 = vmatpush1.msra.mxu0 0.0
    %4732 = vmatprep.subr.mxu0 0.0
    %4733 = vmatpush1.msra.mxu0 0.0
    %4734 = vmatprep.subr.mxu0 0.0
    %4735 = vmatpush1.msra.mxu0 0.0
    %4736 = vmatprep.subr.mxu0 0.0
    %4737 = vmatpush1.msra.mxu0 0.0
    %4738 = vmatprep.subr.mxu0 0.0
    %4739 = vmatpush1.msra.mxu0 0.0
    %4740 = vmatprep.subr.mxu0 0.0
    %4741 = vmatpush1.msra.mxu0 0.0
    %4742 = vmatprep.subr.mxu0 0.0
    %4743 = vmatpush1.msra.mxu0 0.0
    %4744 = vmatprep.subr.mxu0 0.0
    %4745 = vmatpush1.msra.mxu0 0.0
    %4746 = vmatprep.subr.mxu0 0.0
    %4747 = vmatpush1.msra.mxu0 0.0
    %4748 = vmatprep.subr.mxu0 0.0
    %4749 = vmatpush1.msra.mxu0 0.0
    %4750 = vmatprep.subr.mxu0 0.0
    %4751 = vmatpush1.msra.mxu0 0.0
    %4752 = vmatprep.subr.mxu0 0.0
    %4753 = vmatpush1.msra.mxu0 0.0
    %4754 = vmatprep.subr.mxu0 0.0
    %4755 = vmatpush1.msra.mxu0 0.0
    %4756 = vmatprep.subr.mxu0 0.0
    %4757 = vmatpush1.msra.mxu0 0.0
    %4758 = vmatprep.mubr.f32.mxu0 0.0
    %v4759 = vand.u32 %v1650, 4294901760
    %v4760 = vsub.f32 %v1650, %v4759
    %4761 = vmatmul.mubr.f32.gmra.mrb[0].mxu0 %v4760
    %v4762 = vpop.f32.mrb[0].mxu0
    %v4763 = vadd.f32 %v4671, %v4762
    %v4764 = vpop.f32.mrb[0].mxu0
    %4765 = vmatprep.mubr.f32.mxu0 0.0
    %v4766 = vand.u32 %v1653, 4294901760
    %v4767 = vsub.f32 %v1653, %v4766
    %4768 = vmatmul.mubr.f32.gmra.mrb[0].mxu0 %v4767
    %v4769 = vpop.f32.mrb[0].mxu0
    %v4770 = vadd.f32 %v4677, %v4769
    %v4771 = vpop.f32.mrb[0].mxu0
    %4772 = vmatprep.mubr.f32.mxu0 0.0
    %v4773 = vand.u32 %v1656, 4294901760
    %v4774 = vsub.f32 %v1656, %v4773
    %4775 = vmatmul.mubr.f32.gmra.mrb[0].mxu0 %v4774
    %v4776 = vpop.f32.mrb[0].mxu0
    %v4777 = vadd.f32 %v4683, %v4776
    %v4778 = vpop.f32.mrb[0].mxu0
    %4779 = vmatprep.mubr.f32.mxu0 0.0
    %v4780 = vand.u32 %v1659, 4294901760
    %v4781 = vsub.f32 %v1659, %v4780
    %4782 = vmatmul.mubr.f32.gmra.mrb[0].mxu0 %v4781
    %v4783 = vpop.f32.mrb[0].mxu0
    %v4784 = vadd.f32 %v4689, %v4783
    %v4785 = vpop.f32.mrb[0].mxu0
    %4786 = vdwg.mxu0
    %4787 = vmatprep.subr.mxu0 0.0
    %v4788 = vand.u32 %v4490, 4294901760
    %4789 = vmatpush1.msra.mxu0 %v4788
    %4790 = vmatprep.subr.mxu0 0.0
    %4791 = vmatpush1.msra.mxu0 0.0
    %4792 = vmatprep.subr.mxu0 0.0
    %4793 = vmatpush1.msra.mxu0 0.0
    %4794 = vmatprep.subr.mxu0 0.0
    %4795 = vmatpush1.msra.mxu0 0.0
    %4796 = vmatprep.subr.mxu0 0.0
    %4797 = vmatpush1.msra.mxu0 0.0
    %4798 = vmatprep.subr.mxu0 0.0
    %4799 = vmatpush1.msra.mxu0 0.0
    %4800 = vmatprep.subr.mxu0 0.0
    %4801 = vmatpush1.msra.mxu0 0.0
    %4802 = vmatprep.subr.mxu0 0.0
    %4803 = vmatpush1.msra.mxu0 0.0
    %4804 = vmatprep.subr.mxu0 0.0
    %4805 = vmatpush1.msra.mxu0 0.0
    %4806 = vmatprep.subr.mxu0 0.0
    %4807 = vmatpush1.msra.mxu0 0.0
    %4808 = vmatprep.subr.mxu0 0.0
    %4809 = vmatpush1.msra.mxu0 0.0
    %4810 = vmatprep.subr.mxu0 0.0
    %4811 = vmatpush1.msra.mxu0 0.0
    %4812 = vmatprep.subr.mxu0 0.0
    %4813 = vmatpush1.msra.mxu0 0.0
    %4814 = vmatprep.subr.mxu0 0.0
    %4815 = vmatpush1.msra.mxu0 0.0
    %4816 = vmatprep.subr.mxu0 0.0
    %4817 = vmatpush1.msra.mxu0 0.0
    %4818 = vmatprep.subr.mxu0 0.0
    %4819 = vmatpush1.msra.mxu0 0.0
    %4820 = vmatprep.subr.mxu0 0.0
    %4821 = vmatpush1.msra.mxu0 0.0
    %4822 = vmatprep.subr.mxu0 0.0
    %4823 = vmatpush1.msra.mxu0 0.0
    %4824 = vmatprep.subr.mxu0 0.0
    %4825 = vmatpush1.msra.mxu0 0.0
    %4826 = vmatprep.subr.mxu0 0.0
    %4827 = vmatpush1.msra.mxu0 0.0
    %4828 = vmatprep.subr.mxu0 0.0
    %4829 = vmatpush1.msra.mxu0 0.0
    %4830 = vmatprep.subr.mxu0 0.0
    %4831 = vmatpush1.msra.mxu0 0.0
    %4832 = vmatprep.subr.mxu0 0.0
    %4833 = vmatpush1.msra.mxu0 0.0
    %4834 = vmatprep.subr.mxu0 0.0
    %4835 = vmatpush1.msra.mxu0 0.0
    %4836 = vmatprep.subr.mxu0 0.0
    %4837 = vmatpush1.msra.mxu0 0.0
    %4838 = vmatprep.subr.mxu0 0.0
    %4839 = vmatpush1.msra.mxu0 0.0
    %4840 = vmatprep.subr.mxu0 0.0
    %4841 = vmatpush1.msra.mxu0 0.0
    %4842 = vmatprep.subr.mxu0 0.0
    %4843 = vmatpush1.msra.mxu0 0.0
    %4844 = vmatprep.subr.mxu0 0.0
    %4845 = vmatpush1.msra.mxu0 0.0
    %4846 = vmatprep.subr.mxu0 0.0
    %4847 = vmatpush1.msra.mxu0 0.0
    %4848 = vmatprep.subr.mxu0 0.0
    %4849 = vmatpush1.msra.mxu0 0.0
    %4850 = vmatprep.subr.mxu0 0.0
    %4851 = vmatpush1.msra.mxu0 0.0
    %4852 = vmatprep.mubr.f32.mxu0 0.0
    %v4853 = vand.u32 %v1650, 4294901760
    %v4854 = vsub.f32 %v1650, %v4853
    %v4855 = vand.u32 %v4854, 4294901760
    %4856 = vmatmul.mubr.f32.gmra.mrb[0].mxu0 %v4855
    %v4857 = vpop.f32.mrb[0].mxu0
    %v4858 = vadd.f32 %v4763, %v4857
    %v4859 = vpop.f32.mrb[0].mxu0
    %4860 = vmatprep.mubr.f32.mxu0 0.0
    %v4861 = vand.u32 %v1653, 4294901760
    %v4862 = vsub.f32 %v1653, %v4861
    %v4863 = vand.u32 %v4862, 4294901760
    %4864 = vmatmul.mubr.f32.gmra.mrb[0].mxu0 %v4863
    %v4865 = vpop.f32.mrb[0].mxu0
    %v4866 = vadd.f32 %v4770, %v4865
    %v4867 = vpop.f32.mrb[0].mxu0
    %4868 = vmatprep.mubr.f32.mxu0 0.0
    %v4869 = vand.u32 %v1656, 4294901760
    %v4870 = vsub.f32 %v1656, %v4869
    %v4871 = vand.u32 %v4870, 4294901760
    %4872 = vmatmul.mubr.f32.gmra.mrb[0].mxu0 %v4871
    %v4873 = vpop.f32.mrb[0].mxu0
    %v4874 = vadd.f32 %v4777, %v4873
    %v4875 = vpop.f32.mrb[0].mxu0
    %4876 = vmatprep.mubr.f32.mxu0 0.0
    %v4877 = vand.u32 %v1659, 4294901760
    %v4878 = vsub.f32 %v1659, %v4877
    %v4879 = vand.u32 %v4878, 4294901760
    %4880 = vmatmul.mubr.f32.gmra.mrb[0].mxu0 %v4879
    %v4881 = vpop.f32.mrb[0].mxu0
    %v4882 = vadd.f32 %v4784, %v4881
    %v4883 = vpop.f32.mrb[0].mxu0
    %4884 = vdwg.mxu0
    %4885 = vmatprep.subr.mxu0 0.0
    %v4886 = vand.u32 %v4490, 4294901760
    %v4887 = vsub.f32 %v4490, %v4886
    %v4888 = vand.u32 %v4887, 4294901760
    %4889 = vmatpush1.msra.mxu0 %v4888
    %4890 = vmatprep.subr.mxu0 0.0
    %4891 = vmatpush1.msra.mxu0 0.0
    %4892 = vmatprep.subr.mxu0 0.0
    %4893 = vmatpush1.msra.mxu0 0.0
    %4894 = vmatprep.subr.mxu0 0.0
    %4895 = vmatpush1.msra.mxu0 0.0
    %4896 = vmatprep.subr.mxu0 0.0
    %4897 = vmatpush1.msra.mxu0 0.0
    %4898 = vmatprep.subr.mxu0 0.0
    %4899 = vmatpush1.msra.mxu0 0.0
    %4900 = vmatprep.subr.mxu0 0.0
    %4901 = vmatpush1.msra.mxu0 0.0
    %4902 = vmatprep.subr.mxu0 0.0
    %4903 = vmatpush1.msra.mxu0 0.0
    %4904 = vmatprep.subr.mxu0 0.0
    %4905 = vmatpush1.msra.mxu0 0.0
    %4906 = vmatprep.subr.mxu0 0.0
    %4907 = vmatpush1.msra.mxu0 0.0
    %4908 = vmatprep.subr.mxu0 0.0
    %4909 = vmatpush1.msra.mxu0 0.0
    %4910 = vmatprep.subr.mxu0 0.0
    %4911 = vmatpush1.msra.mxu0 0.0
    %4912 = vmatprep.subr.mxu0 0.0
    %4913 = vmatpush1.msra.mxu0 0.0
    %4914 = vmatprep.subr.mxu0 0.0
    %4915 = vmatpush1.msra.mxu0 0.0
    %4916 = vmatprep.subr.mxu0 0.0
    %4917 = vmatpush1.msra.mxu0 0.0
    %4918 = vmatprep.subr.mxu0 0.0
    %4919 = vmatpush1.msra.mxu0 0.0
    %4920 = vmatprep.subr.mxu0 0.0
    %4921 = vmatpush1.msra.mxu0 0.0
    %4922 = vmatprep.subr.mxu0 0.0
    %4923 = vmatpush1.msra.mxu0 0.0
    %4924 = vmatprep.subr.mxu0 0.0
    %4925 = vmatpush1.msra.mxu0 0.0
    %4926 = vmatprep.subr.mxu0 0.0
    %4927 = vmatpush1.msra.mxu0 0.0
    %4928 = vmatprep.subr.mxu0 0.0
    %4929 = vmatpush1.msra.mxu0 0.0
    %4930 = vmatprep.subr.mxu0 0.0
    %4931 = vmatpush1.msra.mxu0 0.0
    %4932 = vmatprep.subr.mxu0 0.0
    %4933 = vmatpush1.msra.mxu0 0.0
    %4934 = vmatprep.subr.mxu0 0.0
    %4935 = vmatpush1.msra.mxu0 0.0
    %4936 = vmatprep.subr.mxu0 0.0
    %4937 = vmatpush1.msra.mxu0 0.0
    %4938 = vmatprep.subr.mxu0 0.0
    %4939 = vmatpush1.msra.mxu0 0.0
    %4940 = vmatprep.subr.mxu0 0.0
    %4941 = vmatpush1.msra.mxu0 0.0
    %4942 = vmatprep.subr.mxu0 0.0
    %4943 = vmatpush1.msra.mxu0 0.0
    %4944 = vmatprep.subr.mxu0 0.0
    %4945 = vmatpush1.msra.mxu0 0.0
    %4946 = vmatprep.subr.mxu0 0.0
    %4947 = vmatpush1.msra.mxu0 0.0
    %4948 = vmatprep.subr.mxu0 0.0
    %4949 = vmatpush1.msra.mxu0 0.0
    %4950 = vmatprep.subr.mxu0 0.0
    %4951 = vmatpush1.msra.mxu0 0.0
    %4952 = vmatprep.mubr.f32.mxu0 0.0
    %v4953 = vand.u32 %v1650, 4294901760
    %4954 = vmatmul.mubr.f32.gmra.mrb[0].mxu0 %v4953
    %v4955 = vpop.f32.mrb[0].mxu0
    %v4956 = vadd.f32 %v4858, %v4955
    %v4957 = vpop.f32.mrb[0].mxu0
    %4958 = vmatprep.mubr.f32.mxu0 0.0
    %v4959 = vand.u32 %v1653, 4294901760
    %4960 = vmatmul.mubr.f32.gmra.mrb[0].mxu0 %v4959
    %v4961 = vpop.f32.mrb[0].mxu0
    %v4962 = vadd.f32 %v4866, %v4961
    %v4963 = vpop.f32.mrb[0].mxu0
    %4964 = vmatprep.mubr.f32.mxu0 0.0
    %v4965 = vand.u32 %v1656, 4294901760
    %4966 = vmatmul.mubr.f32.gmra.mrb[0].mxu0 %v4965
    %v4967 = vpop.f32.mrb[0].mxu0
    %v4968 = vadd.f32 %v4874, %v4967
    %v4969 = vpop.f32.mrb[0].mxu0
    %4970 = vmatprep.mubr.f32.mxu0 0.0
    %v4971 = vand.u32 %v1659, 4294901760
    %4972 = vmatmul.mubr.f32.gmra.mrb[0].mxu0 %v4971
    %v4973 = vpop.f32.mrb[0].mxu0
    %v4974 = vadd.f32 %v4882, %v4973
    %v4975 = vpop.f32.mrb[0].mxu0
    %4976 = vdwg.mxu0
    %4977 = vmatprep.subr.mxu0 0.0
    %v4978 = vand.u32 %v4490, 4294901760
    %4979 = vmatpush1.msra.mxu0 %v4978
    %4980 = vmatprep.subr.mxu0 0.0
    %4981 = vmatpush1.msra.mxu0 0.0
    %4982 = vmatprep.subr.mxu0 0.0
    %4983 = vmatpush1.msra.mxu0 0.0
    %4984 = vmatprep.subr.mxu0 0.0
    %4985 = vmatpush1.msra.mxu0 0.0
    %4986 = vmatprep.subr.mxu0 0.0
    %4987 = vmatpush1.msra.mxu0 0.0
    %4988 = vmatprep.subr.mxu0 0.0
    %4989 = vmatpush1.msra.mxu0 0.0
    %4990 = vmatprep.subr.mxu0 0.0
    %4991 = vmatpush1.msra.mxu0 0.0
    %4992 = vmatprep.subr.mxu0 0.0
    %4993 = vmatpush1.msra.mxu0 0.0
    %4994 = vmatprep.subr.mxu0 0.0
    %4995 = vmatpush1.msra.mxu0 0.0
    %4996 = vmatprep.subr.mxu0 0.0
    %4997 = vmatpush1.msra.mxu0 0.0
    %4998 = vmatprep.subr.mxu0 0.0
    %4999 = vmatpush1.msra.mxu0 0.0
    %5000 = vmatprep.subr.mxu0 0.0
    %5001 = vmatpush1.msra.mxu0 0.0
    %5002 = vmatprep.subr.mxu0 0.0
    %5003 = vmatpush1.msra.mxu0 0.0
    %5004 = vmatprep.subr.mxu0 0.0
    %5005 = vmatpush1.msra.mxu0 0.0
    %5006 = vmatprep.subr.mxu0 0.0
    %5007 = vmatpush1.msra.mxu0 0.0
    %5008 = vmatprep.subr.mxu0 0.0
    %5009 = vmatpush1.msra.mxu0 0.0
    %5010 = vmatprep.subr.mxu0 0.0
    %5011 = vmatpush1.msra.mxu0 0.0
    %5012 = vmatprep.subr.mxu0 0.0
    %5013 = vmatpush1.msra.mxu0 0.0
    %5014 = vmatprep.subr.mxu0 0.0
    %5015 = vmatpush1.msra.mxu0 0.0
    %5016 = vmatprep.subr.mxu0 0.0
    %5017 = vmatpush1.msra.mxu0 0.0
    %5018 = vmatprep.subr.mxu0 0.0
    %5019 = vmatpush1.msra.mxu0 0.0
    %5020 = vmatprep.subr.mxu0 0.0
    %5021 = vmatpush1.msra.mxu0 0.0
    %5022 = vmatprep.subr.mxu0 0.0
    %5023 = vmatpush1.msra.mxu0 0.0
    %5024 = vmatprep.subr.mxu0 0.0
    %5025 = vmatpush1.msra.mxu0 0.0
    %5026 = vmatprep.subr.mxu0 0.0
    %5027 = vmatpush1.msra.mxu0 0.0
    %5028 = vmatprep.subr.mxu0 0.0
    %5029 = vmatpush1.msra.mxu0 0.0
    %5030 = vmatprep.subr.mxu0 0.0
    %5031 = vmatpush1.msra.mxu0 0.0
    %5032 = vmatprep.subr.mxu0 0.0
    %5033 = vmatpush1.msra.mxu0 0.0
    %5034 = vmatprep.subr.mxu0 0.0
    %5035 = vmatpush1.msra.mxu0 0.0
    %5036 = vmatprep.subr.mxu0 0.0
    %5037 = vmatpush1.msra.mxu0 0.0
    %5038 = vmatprep.subr.mxu0 0.0
    %5039 = vmatpush1.msra.mxu0 0.0
    %5040 = vmatprep.subr.mxu0 0.0
    %5041 = vmatpush1.msra.mxu0 0.0
    %5042 = vmatprep.mubr.f32.mxu0 0.0
    %v5043 = vand.u32 %v1650, 4294901760
    %5044 = vmatmul.mubr.f32.gmra.mrb[0].mxu0 %v5043
    %v5045 = vpop.f32.mrb[0].mxu0
    %v5046 = vadd.f32 %v4956, %v5045
    %v5047 = vpop.f32.mrb[0].mxu0
    %5048 = vmatprep.mubr.f32.mxu0 0.0
    %v5049 = vand.u32 %v1653, 4294901760
    %5050 = vmatmul.mubr.f32.gmra.mrb[0].mxu0 %v5049
    %v5051 = vpop.f32.mrb[0].mxu0
    %v5052 = vadd.f32 %v4962, %v5051
    %v5053 = vpop.f32.mrb[0].mxu0
    %5054 = vmatprep.mubr.f32.mxu0 0.0
    %v5055 = vand.u32 %v1656, 4294901760
    %5056 = vmatmul.mubr.f32.gmra.mrb[0].mxu0 %v5055
    %v5057 = vpop.f32.mrb[0].mxu0
    %v5058 = vadd.f32 %v4968, %v5057
    %v5059 = vpop.f32.mrb[0].mxu0
    %5060 = vmatprep.mubr.f32.mxu0 0.0
    %v5061 = vand.u32 %v1659, 4294901760
    %5062 = vmatmul.mubr.f32.gmra.mrb[0].mxu0 %v5061
    %v5063 = vpop.f32.mrb[0].mxu0
    %v5064 = vadd.f32 %v4974, %v5063
    %v5065 = vpop.f32.mrb[0].mxu0
    %5066 = vdwg.mxu0
    %v5068 = vsel %vm1661, %v4002, 0
    %5070 = vmatprep.subr.mxu0 0.0
    %v5071 = vand.u32 %v5068, 4294901760
    %5072 = vmatpush1.msra.mxu0 %v5071
    %5073 = vmatprep.subr.mxu0 0.0
    %5074 = vmatpush1.msra.mxu0 0.0
    %5075 = vmatprep.subr.mxu0 0.0
    %5076 = vmatpush1.msra.mxu0 0.0
    %5077 = vmatprep.subr.mxu0 0.0
    %5078 = vmatpush1.msra.mxu0 0.0
    %5079 = vmatprep.subr.mxu0 0.0
    %5080 = vmatpush1.msra.mxu0 0.0
    %5081 = vmatprep.subr.mxu0 0.0
    %5082 = vmatpush1.msra.mxu0 0.0
    %5083 = vmatprep.subr.mxu0 0.0
    %5084 = vmatpush1.msra.mxu0 0.0
    %5085 = vmatprep.subr.mxu0 0.0
    %5086 = vmatpush1.msra.mxu0 0.0
    %5087 = vmatprep.subr.mxu0 0.0
    %5088 = vmatpush1.msra.mxu0 0.0
    %5089 = vmatprep.subr.mxu0 0.0
    %5090 = vmatpush1.msra.mxu0 0.0
    %5091 = vmatprep.subr.mxu0 0.0
    %5092 = vmatpush1.msra.mxu0 0.0
    %5093 = vmatprep.subr.mxu0 0.0
    %5094 = vmatpush1.msra.mxu0 0.0
    %5095 = vmatprep.subr.mxu0 0.0
    %5096 = vmatpush1.msra.mxu0 0.0
    %5097 = vmatprep.subr.mxu0 0.0
    %5098 = vmatpush1.msra.mxu0 0.0
    %5099 = vmatprep.subr.mxu0 0.0
    %5100 = vmatpush1.msra.mxu0 0.0
    %5101 = vmatprep.subr.mxu0 0.0
    %5102 = vmatpush1.msra.mxu0 0.0
    %5103 = vmatprep.subr.mxu0 0.0
    %5104 = vmatpush1.msra.mxu0 0.0
    %5105 = vmatprep.subr.mxu0 0.0
    %5106 = vmatpush1.msra.mxu0 0.0
    %5107 = vmatprep.subr.mxu0 0.0
    %5108 = vmatpush1.msra.mxu0 0.0
    %5109 = vmatprep.subr.mxu0 0.0
    %5110 = vmatpush1.msra.mxu0 0.0
    %5111 = vmatprep.subr.mxu0 0.0
    %5112 = vmatpush1.msra.mxu0 0.0
    %5113 = vmatprep.subr.mxu0 0.0
    %5114 = vmatpush1.msra.mxu0 0.0
    %5115 = vmatprep.subr.mxu0 0.0
    %5116 = vmatpush1.msra.mxu0 0.0
    %5117 = vmatprep.subr.mxu0 0.0
    %5118 = vmatpush1.msra.mxu0 0.0
    %5119 = vmatprep.subr.mxu0 0.0
    %5120 = vmatpush1.msra.mxu0 0.0
    %5121 = vmatprep.subr.mxu0 0.0
    %5122 = vmatpush1.msra.mxu0 0.0
    %5123 = vmatprep.subr.mxu0 0.0
    %5124 = vmatpush1.msra.mxu0 0.0
    %5125 = vmatprep.subr.mxu0 0.0
    %5126 = vmatpush1.msra.mxu0 0.0
    %5127 = vmatprep.subr.mxu0 0.0
    %5128 = vmatpush1.msra.mxu0 0.0
    %5129 = vmatprep.subr.mxu0 0.0
    %5130 = vmatpush1.msra.mxu0 0.0
    %5131 = vmatprep.subr.mxu0 0.0
    %5132 = vmatpush1.msra.mxu0 0.0
    %5133 = vmatprep.subr.mxu0 0.0
    %5134 = vmatpush1.msra.mxu0 0.0
    %5135 = vmatprep.mubr.f32.mxu0 0.0
    %v5136 = vand.u32 %v1650, 4294901760
    %v5137 = vsub.f32 %v1650, %v5136
    %v5138 = vand.u32 %v5137, 4294901760
    %v5139 = vsub.f32 %v5137, %v5138
    %v5140 = vand.u32 %v5139, 4294901760
    %5141 = vmatmul.mubr.f32.gmra.mrb[0].mxu0 %v5140
    %v5142 = vpop.f32.mrb[0].mxu0
    %v5143 = vadd.f32 %v5046, %v5142
    %v5144 = vpop.f32.mrb[0].mxu0
    %5145 = vmatprep.mubr.f32.mxu0 0.0
    %v5146 = vand.u32 %v1653, 4294901760
    %v5147 = vsub.f32 %v1653, %v5146
    %v5148 = vand.u32 %v5147, 4294901760
    %v5149 = vsub.f32 %v5147, %v5148
    %v5150 = vand.u32 %v5149, 4294901760
    %5151 = vmatmul.mubr.f32.gmra.mrb[0].mxu0 %v5150
    %v5152 = vpop.f32.mrb[0].mxu0
    %v5153 = vadd.f32 %v5052, %v5152
    %v5154 = vpop.f32.mrb[0].mxu0
    %5155 = vmatprep.mubr.f32.mxu0 0.0
    %v5156 = vand.u32 %v1656, 4294901760
    %v5157 = vsub.f32 %v1656, %v5156
    %v5158 = vand.u32 %v5157, 4294901760
    %v5159 = vsub.f32 %v5157, %v5158
    %v5160 = vand.u32 %v5159, 4294901760
    %5161 = vmatmul.mubr.f32.gmra.mrb[0].mxu0 %v5160
    %v5162 = vpop.f32.mrb[0].mxu0
    %v5163 = vadd.f32 %v5058, %v5162
    %v5164 = vpop.f32.mrb[0].mxu0
    %5165 = vmatprep.mubr.f32.mxu0 0.0
    %v5166 = vand.u32 %v1659, 4294901760
    %v5167 = vsub.f32 %v1659, %v5166
    %v5168 = vand.u32 %v5167, 4294901760
    %v5169 = vsub.f32 %v5167, %v5168
    %v5170 = vand.u32 %v5169, 4294901760
    %5171 = vmatmul.mubr.f32.gmra.mrb[0].mxu0 %v5170
    %v5172 = vpop.f32.mrb[0].mxu0
    %v5173 = vadd.f32 %v5064, %v5172
    %v5174 = vpop.f32.mrb[0].mxu0
    %5175 = vdwg.mxu0
    %5176 = vmatprep.subr.mxu0 0.0
    %v5177 = vand.u32 %v5068, 4294901760
    %v5178 = vsub.f32 %v5068, %v5177
    %v5179 = vand.u32 %v5178, 4294901760
    %v5180 = vsub.f32 %v5178, %v5179
    %v5181 = vand.u32 %v5180, 4294901760
    %5182 = vmatpush1.msra.mxu0 %v5181
    %5183 = vmatprep.subr.mxu0 0.0
    %5184 = vmatpush1.msra.mxu0 0.0
    %5185 = vmatprep.subr.mxu0 0.0
    %5186 = vmatpush1.msra.mxu0 0.0
    %5187 = vmatprep.subr.mxu0 0.0
    %5188 = vmatpush1.msra.mxu0 0.0
    %5189 = vmatprep.subr.mxu0 0.0
    %5190 = vmatpush1.msra.mxu0 0.0
    %5191 = vmatprep.subr.mxu0 0.0
    %5192 = vmatpush1.msra.mxu0 0.0
    %5193 = vmatprep.subr.mxu0 0.0
    %5194 = vmatpush1.msra.mxu0 0.0
    %5195 = vmatprep.subr.mxu0 0.0
    %5196 = vmatpush1.msra.mxu0 0.0
    %5197 = vmatprep.subr.mxu0 0.0
    %5198 = vmatpush1.msra.mxu0 0.0
    %5199 = vmatprep.subr.mxu0 0.0
    %5200 = vmatpush1.msra.mxu0 0.0
    %5201 = vmatprep.subr.mxu0 0.0
    %5202 = vmatpush1.msra.mxu0 0.0
    %5203 = vmatprep.subr.mxu0 0.0
    %5204 = vmatpush1.msra.mxu0 0.0
    %5205 = vmatprep.subr.mxu0 0.0
    %5206 = vmatpush1.msra.mxu0 0.0
    %5207 = vmatprep.subr.mxu0 0.0
    %5208 = vmatpush1.msra.mxu0 0.0
    %5209 = vmatprep.subr.mxu0 0.0
    %5210 = vmatpush1.msra.mxu0 0.0
    %5211 = vmatprep.subr.mxu0 0.0
    %5212 = vmatpush1.msra.mxu0 0.0
    %5213 = vmatprep.subr.mxu0 0.0
    %5214 = vmatpush1.msra.mxu0 0.0
    %5215 = vmatprep.subr.mxu0 0.0
    %5216 = vmatpush1.msra.mxu0 0.0
    %5217 = vmatprep.subr.mxu0 0.0
    %5218 = vmatpush1.msra.mxu0 0.0
    %5219 = vmatprep.subr.mxu0 0.0
    %5220 = vmatpush1.msra.mxu0 0.0
    %5221 = vmatprep.subr.mxu0 0.0
    %5222 = vmatpush1.msra.mxu0 0.0
    %5223 = vmatprep.subr.mxu0 0.0
    %5224 = vmatpush1.msra.mxu0 0.0
    %5225 = vmatprep.subr.mxu0 0.0
    %5226 = vmatpush1.msra.mxu0 0.0
    %5227 = vmatprep.subr.mxu0 0.0
    %5228 = vmatpush1.msra.mxu0 0.0
    %5229 = vmatprep.subr.mxu0 0.0
    %5230 = vmatpush1.msra.mxu0 0.0
    %5231 = vmatprep.subr.mxu0 0.0
    %5232 = vmatpush1.msra.mxu0 0.0
    %5233 = vmatprep.subr.mxu0 0.0
    %5234 = vmatpush1.msra.mxu0 0.0
    %5235 = vmatprep.subr.mxu0 0.0
    %5236 = vmatpush1.msra.mxu0 0.0
    %5237 = vmatprep.subr.mxu0 0.0
    %5238 = vmatpush1.msra.mxu0 0.0
    %5239 = vmatprep.subr.mxu0 0.0
    %5240 = vmatpush1.msra.mxu0 0.0
    %5241 = vmatprep.subr.mxu0 0.0
    %5242 = vmatpush1.msra.mxu0 0.0
    %5243 = vmatprep.subr.mxu0 0.0
    %5244 = vmatpush1.msra.mxu0 0.0
    %5245 = vmatprep.mubr.f32.mxu0 0.0
    %v5246 = vand.u32 %v1650, 4294901760
    %5247 = vmatmul.mubr.f32.gmra.mrb[0].mxu0 %v5246
    %v5248 = vpop.f32.mrb[0].mxu0
    %v5249 = vadd.f32 %v5143, %v5248
    %v5250 = vpop.f32.mrb[0].mxu0
    %5251 = vmatprep.mubr.f32.mxu0 0.0
    %v5252 = vand.u32 %v1653, 4294901760
    %5253 = vmatmul.mubr.f32.gmra.mrb[0].mxu0 %v5252
    %v5254 = vpop.f32.mrb[0].mxu0
    %v5255 = vadd.f32 %v5153, %v5254
    %v5256 = vpop.f32.mrb[0].mxu0
    %5257 = vmatprep.mubr.f32.mxu0 0.0
    %v5258 = vand.u32 %v1656, 4294901760
    %5259 = vmatmul.mubr.f32.gmra.mrb[0].mxu0 %v5258
    %v5260 = vpop.f32.mrb[0].mxu0
    %v5261 = vadd.f32 %v5163, %v5260
    %v5262 = vpop.f32.mrb[0].mxu0
    %5263 = vmatprep.mubr.f32.mxu0 0.0
    %v5264 = vand.u32 %v1659, 4294901760
    %5265 = vmatmul.mubr.f32.gmra.mrb[0].mxu0 %v5264
    %v5266 = vpop.f32.mrb[0].mxu0
    %v5267 = vadd.f32 %v5173, %v5266
    %v5268 = vpop.f32.mrb[0].mxu0
    %5269 = vdwg.mxu0
    %5270 = vmatprep.subr.mxu0 0.0
    %v5271 = vand.u32 %v5068, 4294901760
    %v5272 = vsub.f32 %v5068, %v5271
    %5273 = vmatpush1.msra.mxu0 %v5272
    %5274 = vmatprep.subr.mxu0 0.0
    %5275 = vmatpush1.msra.mxu0 0.0
    %5276 = vmatprep.subr.mxu0 0.0
    %5277 = vmatpush1.msra.mxu0 0.0
    %5278 = vmatprep.subr.mxu0 0.0
    %5279 = vmatpush1.msra.mxu0 0.0
    %5280 = vmatprep.subr.mxu0 0.0
    %5281 = vmatpush1.msra.mxu0 0.0
    %5282 = vmatprep.subr.mxu0 0.0
    %5283 = vmatpush1.msra.mxu0 0.0
    %5284 = vmatprep.subr.mxu0 0.0
    %5285 = vmatpush1.msra.mxu0 0.0
    %5286 = vmatprep.subr.mxu0 0.0
    %5287 = vmatpush1.msra.mxu0 0.0
    %5288 = vmatprep.subr.mxu0 0.0
    %5289 = vmatpush1.msra.mxu0 0.0
    %5290 = vmatprep.subr.mxu0 0.0
    %5291 = vmatpush1.msra.mxu0 0.0
    %5292 = vmatprep.subr.mxu0 0.0
    %5293 = vmatpush1.msra.mxu0 0.0
    %5294 = vmatprep.subr.mxu0 0.0
    %5295 = vmatpush1.msra.mxu0 0.0
    %5296 = vmatprep.subr.mxu0 0.0
    %5297 = vmatpush1.msra.mxu0 0.0
    %5298 = vmatprep.subr.mxu0 0.0
    %5299 = vmatpush1.msra.mxu0 0.0
    %5300 = vmatprep.subr.mxu0 0.0
    %5301 = vmatpush1.msra.mxu0 0.0
    %5302 = vmatprep.subr.mxu0 0.0
    %5303 = vmatpush1.msra.mxu0 0.0
    %5304 = vmatprep.subr.mxu0 0.0
    %5305 = vmatpush1.msra.mxu0 0.0
    %5306 = vmatprep.subr.mxu0 0.0
    %5307 = vmatpush1.msra.mxu0 0.0
    %5308 = vmatprep.subr.mxu0 0.0
    %5309 = vmatpush1.msra.mxu0 0.0
    %5310 = vmatprep.subr.mxu0 0.0
    %5311 = vmatpush1.msra.mxu0 0.0
    %5312 = vmatprep.subr.mxu0 0.0
    %5313 = vmatpush1.msra.mxu0 0.0
    %5314 = vmatprep.subr.mxu0 0.0
    %5315 = vmatpush1.msra.mxu0 0.0
    %5316 = vmatprep.subr.mxu0 0.0
    %5317 = vmatpush1.msra.mxu0 0.0
    %5318 = vmatprep.subr.mxu0 0.0
    %5319 = vmatpush1.msra.mxu0 0.0
    %5320 = vmatprep.subr.mxu0 0.0
    %5321 = vmatpush1.msra.mxu0 0.0
    %5322 = vmatprep.subr.mxu0 0.0
    %5323 = vmatpush1.msra.mxu0 0.0
    %5324 = vmatprep.subr.mxu0 0.0
    %5325 = vmatpush1.msra.mxu0 0.0
    %5326 = vmatprep.subr.mxu0 0.0
    %5327 = vmatpush1.msra.mxu0 0.0
    %5328 = vmatprep.subr.mxu0 0.0
    %5329 = vmatpush1.msra.mxu0 0.0
    %5330 = vmatprep.subr.mxu0 0.0
    %5331 = vmatpush1.msra.mxu0 0.0
    %5332 = vmatprep.subr.mxu0 0.0
    %5333 = vmatpush1.msra.mxu0 0.0
    %5334 = vmatprep.subr.mxu0 0.0
    %5335 = vmatpush1.msra.mxu0 0.0
    %5336 = vmatprep.mubr.f32.mxu0 0.0
    %v5337 = vand.u32 %v1650, 4294901760
    %v5338 = vsub.f32 %v1650, %v5337
    %5339 = vmatmul.mubr.f32.gmra.mrb[0].mxu0 %v5338
    %v5340 = vpop.f32.mrb[0].mxu0
    %v5341 = vadd.f32 %v5249, %v5340
    %v5342 = vpop.f32.mrb[0].mxu0
    %5343 = vmatprep.mubr.f32.mxu0 0.0
    %v5344 = vand.u32 %v1653, 4294901760
    %v5345 = vsub.f32 %v1653, %v5344
    %5346 = vmatmul.mubr.f32.gmra.mrb[0].mxu0 %v5345
    %v5347 = vpop.f32.mrb[0].mxu0
    %v5348 = vadd.f32 %v5255, %v5347
    %v5349 = vpop.f32.mrb[0].mxu0
    %5350 = vmatprep.mubr.f32.mxu0 0.0
    %v5351 = vand.u32 %v1656, 4294901760
    %v5352 = vsub.f32 %v1656, %v5351
    %5353 = vmatmul.mubr.f32.gmra.mrb[0].mxu0 %v5352
    %v5354 = vpop.f32.mrb[0].mxu0
    %v5355 = vadd.f32 %v5261, %v5354
    %v5356 = vpop.f32.mrb[0].mxu0
    %5357 = vmatprep.mubr.f32.mxu0 0.0
    %v5358 = vand.u32 %v1659, 4294901760
    %v5359 = vsub.f32 %v1659, %v5358
    %5360 = vmatmul.mubr.f32.gmra.mrb[0].mxu0 %v5359
    %v5361 = vpop.f32.mrb[0].mxu0
    %v5362 = vadd.f32 %v5267, %v5361
    %v5363 = vpop.f32.mrb[0].mxu0
    %5364 = vdwg.mxu0
    %5365 = vmatprep.subr.mxu0 0.0
    %v5366 = vand.u32 %v5068, 4294901760
    %5367 = vmatpush1.msra.mxu0 %v5366
    %5368 = vmatprep.subr.mxu0 0.0
    %5369 = vmatpush1.msra.mxu0 0.0
    %5370 = vmatprep.subr.mxu0 0.0
    %5371 = vmatpush1.msra.mxu0 0.0
    %5372 = vmatprep.subr.mxu0 0.0
    %5373 = vmatpush1.msra.mxu0 0.0
    %5374 = vmatprep.subr.mxu0 0.0
    %5375 = vmatpush1.msra.mxu0 0.0
    %5376 = vmatprep.subr.mxu0 0.0
    %5377 = vmatpush1.msra.mxu0 0.0
    %5378 = vmatprep.subr.mxu0 0.0
    %5379 = vmatpush1.msra.mxu0 0.0
    %5380 = vmatprep.subr.mxu0 0.0
    %5381 = vmatpush1.msra.mxu0 0.0
    %5382 = vmatprep.subr.mxu0 0.0
    %5383 = vmatpush1.msra.mxu0 0.0
    %5384 = vmatprep.subr.mxu0 0.0
    %5385 = vmatpush1.msra.mxu0 0.0
    %5386 = vmatprep.subr.mxu0 0.0
    %5387 = vmatpush1.msra.mxu0 0.0
    %5388 = vmatprep.subr.mxu0 0.0
    %5389 = vmatpush1.msra.mxu0 0.0
    %5390 = vmatprep.subr.mxu0 0.0
    %5391 = vmatpush1.msra.mxu0 0.0
    %5392 = vmatprep.subr.mxu0 0.0
    %5393 = vmatpush1.msra.mxu0 0.0
    %5394 = vmatprep.subr.mxu0 0.0
    %5395 = vmatpush1.msra.mxu0 0.0
    %5396 = vmatprep.subr.mxu0 0.0
    %5397 = vmatpush1.msra.mxu0 0.0
    %5398 = vmatprep.subr.mxu0 0.0
    %5399 = vmatpush1.msra.mxu0 0.0
    %5400 = vmatprep.subr.mxu0 0.0
    %5401 = vmatpush1.msra.mxu0 0.0
    %5402 = vmatprep.subr.mxu0 0.0
    %5403 = vmatpush1.msra.mxu0 0.0
    %5404 = vmatprep.subr.mxu0 0.0
    %5405 = vmatpush1.msra.mxu0 0.0
    %5406 = vmatprep.subr.mxu0 0.0
    %5407 = vmatpush1.msra.mxu0 0.0
    %5408 = vmatprep.subr.mxu0 0.0
    %5409 = vmatpush1.msra.mxu0 0.0
    %5410 = vmatprep.subr.mxu0 0.0
    %5411 = vmatpush1.msra.mxu0 0.0
    %5412 = vmatprep.subr.mxu0 0.0
    %5413 = vmatpush1.msra.mxu0 0.0
    %5414 = vmatprep.subr.mxu0 0.0
    %5415 = vmatpush1.msra.mxu0 0.0
    %5416 = vmatprep.subr.mxu0 0.0
    %5417 = vmatpush1.msra.mxu0 0.0
    %5418 = vmatprep.subr.mxu0 0.0
    %5419 = vmatpush1.msra.mxu0 0.0
    %5420 = vmatprep.subr.mxu0 0.0
    %5421 = vmatpush1.msra.mxu0 0.0
    %5422 = vmatprep.subr.mxu0 0.0
    %5423 = vmatpush1.msra.mxu0 0.0
    %5424 = vmatprep.subr.mxu0 0.0
    %5425 = vmatpush1.msra.mxu0 0.0
    %5426 = vmatprep.subr.mxu0 0.0
    %5427 = vmatpush1.msra.mxu0 0.0
    %5428 = vmatprep.subr.mxu0 0.0
    %5429 = vmatpush1.msra.mxu0 0.0
    %5430 = vmatprep.mubr.f32.mxu0 0.0
    %v5431 = vand.u32 %v1650, 4294901760
    %v5432 = vsub.f32 %v1650, %v5431
    %v5433 = vand.u32 %v5432, 4294901760
    %5434 = vmatmul.mubr.f32.gmra.mrb[0].mxu0 %v5433
    %v5435 = vpop.f32.mrb[0].mxu0
    %v5436 = vadd.f32 %v5341, %v5435
    %v5437 = vpop.f32.mrb[0].mxu0
    %5438 = vmatprep.mubr.f32.mxu0 0.0
    %v5439 = vand.u32 %v1653, 4294901760
    %v5440 = vsub.f32 %v1653, %v5439
    %v5441 = vand.u32 %v5440, 4294901760
    %5442 = vmatmul.mubr.f32.gmra.mrb[0].mxu0 %v5441
    %v5443 = vpop.f32.mrb[0].mxu0
    %v5444 = vadd.f32 %v5348, %v5443
    %v5445 = vpop.f32.mrb[0].mxu0
    %5446 = vmatprep.mubr.f32.mxu0 0.0
    %v5447 = vand.u32 %v1656, 4294901760
    %v5448 = vsub.f32 %v1656, %v5447
    %v5449 = vand.u32 %v5448, 4294901760
    %5450 = vmatmul.mubr.f32.gmra.mrb[0].mxu0 %v5449
    %v5451 = vpop.f32.mrb[0].mxu0
    %v5452 = vadd.f32 %v5355, %v5451
    %v5453 = vpop.f32.mrb[0].mxu0
    %5454 = vmatprep.mubr.f32.mxu0 0.0
    %v5455 = vand.u32 %v1659, 4294901760
    %v5456 = vsub.f32 %v1659, %v5455
    %v5457 = vand.u32 %v5456, 4294901760
    %5458 = vmatmul.mubr.f32.gmra.mrb[0].mxu0 %v5457
    %v5459 = vpop.f32.mrb[0].mxu0
    %v5460 = vadd.f32 %v5362, %v5459
    %v5461 = vpop.f32.mrb[0].mxu0
    %5462 = vdwg.mxu0
    %5463 = vmatprep.subr.mxu0 0.0
    %v5464 = vand.u32 %v5068, 4294901760
    %v5465 = vsub.f32 %v5068, %v5464
    %v5466 = vand.u32 %v5465, 4294901760
    %5467 = vmatpush1.msra.mxu0 %v5466
    %5468 = vmatprep.subr.mxu0 0.0
    %5469 = vmatpush1.msra.mxu0 0.0
    %5470 = vmatprep.subr.mxu0 0.0
    %5471 = vmatpush1.msra.mxu0 0.0
    %5472 = vmatprep.subr.mxu0 0.0
    %5473 = vmatpush1.msra.mxu0 0.0
    %5474 = vmatprep.subr.mxu0 0.0
    %5475 = vmatpush1.msra.mxu0 0.0
    %5476 = vmatprep.subr.mxu0 0.0
    %5477 = vmatpush1.msra.mxu0 0.0
    %5478 = vmatprep.subr.mxu0 0.0
    %5479 = vmatpush1.msra.mxu0 0.0
    %5480 = vmatprep.subr.mxu0 0.0
    %5481 = vmatpush1.msra.mxu0 0.0
    %5482 = vmatprep.subr.mxu0 0.0
    %5483 = vmatpush1.msra.mxu0 0.0
    %5484 = vmatprep.subr.mxu0 0.0
    %5485 = vmatpush1.msra.mxu0 0.0
    %5486 = vmatprep.subr.mxu0 0.0
    %5487 = vmatpush1.msra.mxu0 0.0
    %5488 = vmatprep.subr.mxu0 0.0
    %5489 = vmatpush1.msra.mxu0 0.0
    %5490 = vmatprep.subr.mxu0 0.0
    %5491 = vmatpush1.msra.mxu0 0.0
    %5492 = vmatprep.subr.mxu0 0.0
    %5493 = vmatpush1.msra.mxu0 0.0
    %5494 = vmatprep.subr.mxu0 0.0
    %5495 = vmatpush1.msra.mxu0 0.0
    %5496 = vmatprep.subr.mxu0 0.0
    %5497 = vmatpush1.msra.mxu0 0.0
    %5498 = vmatprep.subr.mxu0 0.0
    %5499 = vmatpush1.msra.mxu0 0.0
    %5500 = vmatprep.subr.mxu0 0.0
    %5501 = vmatpush1.msra.mxu0 0.0
    %5502 = vmatprep.subr.mxu0 0.0
    %5503 = vmatpush1.msra.mxu0 0.0
    %5504 = vmatprep.subr.mxu0 0.0
    %5505 = vmatpush1.msra.mxu0 0.0
    %5506 = vmatprep.subr.mxu0 0.0
    %5507 = vmatpush1.msra.mxu0 0.0
    %5508 = vmatprep.subr.mxu0 0.0
    %5509 = vmatpush1.msra.mxu0 0.0
    %5510 = vmatprep.subr.mxu0 0.0
    %5511 = vmatpush1.msra.mxu0 0.0
    %5512 = vmatprep.subr.mxu0 0.0
    %5513 = vmatpush1.msra.mxu0 0.0
    %5514 = vmatprep.subr.mxu0 0.0
    %5515 = vmatpush1.msra.mxu0 0.0
    %5516 = vmatprep.subr.mxu0 0.0
    %5517 = vmatpush1.msra.mxu0 0.0
    %5518 = vmatprep.subr.mxu0 0.0
    %5519 = vmatpush1.msra.mxu0 0.0
    %5520 = vmatprep.subr.mxu0 0.0
    %5521 = vmatpush1.msra.mxu0 0.0
    %5522 = vmatprep.subr.mxu0 0.0
    %5523 = vmatpush1.msra.mxu0 0.0
    %5524 = vmatprep.subr.mxu0 0.0
    %5525 = vmatpush1.msra.mxu0 0.0
    %5526 = vmatprep.subr.mxu0 0.0
    %5527 = vmatpush1.msra.mxu0 0.0
    %5528 = vmatprep.subr.mxu0 0.0
    %5529 = vmatpush1.msra.mxu0 0.0
    %5530 = vmatprep.mubr.f32.mxu0 0.0
    %v5531 = vand.u32 %v1650, 4294901760
    %5532 = vmatmul.mubr.f32.gmra.mrb[0].mxu0 %v5531
    %v5533 = vpop.f32.mrb[0].mxu0
    %v5534 = vadd.f32 %v5436, %v5533
    %v5535 = vpop.f32.mrb[0].mxu0
    %5536 = vmatprep.mubr.f32.mxu0 0.0
    %v5537 = vand.u32 %v1653, 4294901760
    %5538 = vmatmul.mubr.f32.gmra.mrb[0].mxu0 %v5537
    %v5539 = vpop.f32.mrb[0].mxu0
    %v5540 = vadd.f32 %v5444, %v5539
    %v5541 = vpop.f32.mrb[0].mxu0
    %5542 = vmatprep.mubr.f32.mxu0 0.0
    %v5543 = vand.u32 %v1656, 4294901760
    %5544 = vmatmul.mubr.f32.gmra.mrb[0].mxu0 %v5543
    %v5545 = vpop.f32.mrb[0].mxu0
    %v5546 = vadd.f32 %v5452, %v5545
    %v5547 = vpop.f32.mrb[0].mxu0
    %5548 = vmatprep.mubr.f32.mxu0 0.0
    %v5549 = vand.u32 %v1659, 4294901760
    %5550 = vmatmul.mubr.f32.gmra.mrb[0].mxu0 %v5549
    %v5551 = vpop.f32.mrb[0].mxu0
    %v5552 = vadd.f32 %v5460, %v5551
    %v5553 = vpop.f32.mrb[0].mxu0
    %5554 = vdwg.mxu0
    %5555 = vmatprep.subr.mxu0 0.0
    %v5556 = vand.u32 %v5068, 4294901760
    %5557 = vmatpush1.msra.mxu0 %v5556
    %5558 = vmatprep.subr.mxu0 0.0
    %5559 = vmatpush1.msra.mxu0 0.0
    %5560 = vmatprep.subr.mxu0 0.0
    %5561 = vmatpush1.msra.mxu0 0.0
    %5562 = vmatprep.subr.mxu0 0.0
    %5563 = vmatpush1.msra.mxu0 0.0
    %5564 = vmatprep.subr.mxu0 0.0
    %5565 = vmatpush1.msra.mxu0 0.0
    %5566 = vmatprep.subr.mxu0 0.0
    %5567 = vmatpush1.msra.mxu0 0.0
    %5568 = vmatprep.subr.mxu0 0.0
    %5569 = vmatpush1.msra.mxu0 0.0
    %5570 = vmatprep.subr.mxu0 0.0
    %5571 = vmatpush1.msra.mxu0 0.0
    %5572 = vmatprep.subr.mxu0 0.0
    %5573 = vmatpush1.msra.mxu0 0.0
    %5574 = vmatprep.subr.mxu0 0.0
    %5575 = vmatpush1.msra.mxu0 0.0
    %5576 = vmatprep.subr.mxu0 0.0
    %5577 = vmatpush1.msra.mxu0 0.0
    %5578 = vmatprep.subr.mxu0 0.0
    %5579 = vmatpush1.msra.mxu0 0.0
    %5580 = vmatprep.subr.mxu0 0.0
    %5581 = vmatpush1.msra.mxu0 0.0
    %5582 = vmatprep.subr.mxu0 0.0
    %5583 = vmatpush1.msra.mxu0 0.0
    %5584 = vmatprep.subr.mxu0 0.0
    %5585 = vmatpush1.msra.mxu0 0.0
    %5586 = vmatprep.subr.mxu0 0.0
    %5587 = vmatpush1.msra.mxu0 0.0
    %5588 = vmatprep.subr.mxu0 0.0
    %5589 = vmatpush1.msra.mxu0 0.0
    %5590 = vmatprep.subr.mxu0 0.0
    %5591 = vmatpush1.msra.mxu0 0.0
    %5592 = vmatprep.subr.mxu0 0.0
    %5593 = vmatpush1.msra.mxu0 0.0
    %5594 = vmatprep.subr.mxu0 0.0
    %5595 = vmatpush1.msra.mxu0 0.0
    %5596 = vmatprep.subr.mxu0 0.0
    %5597 = vmatpush1.msra.mxu0 0.0
    %5598 = vmatprep.subr.mxu0 0.0
    %5599 = vmatpush1.msra.mxu0 0.0
    %5600 = vmatprep.subr.mxu0 0.0
    %5601 = vmatpush1.msra.mxu0 0.0
    %5602 = vmatprep.subr.mxu0 0.0
    %5603 = vmatpush1.msra.mxu0 0.0
    %5604 = vmatprep.subr.mxu0 0.0
    %5605 = vmatpush1.msra.mxu0 0.0
    %5606 = vmatprep.subr.mxu0 0.0
    %5607 = vmatpush1.msra.mxu0 0.0
    %5608 = vmatprep.subr.mxu0 0.0
    %5609 = vmatpush1.msra.mxu0 0.0
    %5610 = vmatprep.subr.mxu0 0.0
    %5611 = vmatpush1.msra.mxu0 0.0
    %5612 = vmatprep.subr.mxu0 0.0
    %5613 = vmatpush1.msra.mxu0 0.0
    %5614 = vmatprep.subr.mxu0 0.0
    %5615 = vmatpush1.msra.mxu0 0.0
    %5616 = vmatprep.subr.mxu0 0.0
    %5617 = vmatpush1.msra.mxu0 0.0
    %5618 = vmatprep.subr.mxu0 0.0
    %5619 = vmatpush1.msra.mxu0 0.0
    %5620 = vmatprep.mubr.f32.mxu0 0.0
    %v5621 = vand.u32 %v1650, 4294901760
    %5622 = vmatmul.mubr.f32.gmra.mrb[0].mxu0 %v5621
    %v5623 = vpop.f32.mrb[0].mxu0
    %v5624 = vadd.f32 %v5534, %v5623
    %v5625 = vpop.f32.mrb[0].mxu0
    %5626 = vmatprep.mubr.f32.mxu0 0.0
    %v5627 = vand.u32 %v1653, 4294901760
    %5628 = vmatmul.mubr.f32.gmra.mrb[0].mxu0 %v5627
    %v5629 = vpop.f32.mrb[0].mxu0
    %v5630 = vadd.f32 %v5540, %v5629
    %v5631 = vpop.f32.mrb[0].mxu0
    %5632 = vmatprep.mubr.f32.mxu0 0.0
    %v5633 = vand.u32 %v1656, 4294901760
    %5634 = vmatmul.mubr.f32.gmra.mrb[0].mxu0 %v5633
    %v5635 = vpop.f32.mrb[0].mxu0
    %v5636 = vadd.f32 %v5546, %v5635
    %v5637 = vpop.f32.mrb[0].mxu0
    %5638 = vmatprep.mubr.f32.mxu0 0.0
    %v5639 = vand.u32 %v1659, 4294901760
    %5640 = vmatmul.mubr.f32.gmra.mrb[0].mxu0 %v5639
    %v5641 = vpop.f32.mrb[0].mxu0
    %v5642 = vadd.f32 %v5552, %v5641
    %v5643 = vpop.f32.mrb[0].mxu0
    %5644 = vdwg.mxu0
    %v5645 = vxor.u32 %v5624, 2147483648
    %v5646 = vxor.u32 %v5630, 2147483648
    %v5647 = vxor.u32 %v5636, 2147483648
    %v5648 = vxor.u32 %v5642, 2147483648
    %v5649 = vmul.f32 %v5645, 1.442695
    %v5650 = vpow.pop %v5649
    %v5651 = vmul.f32 %v5646, 1.442695
    %v5652 = vpow.pop %v5651
    %v5653 = vmul.f32 %v5647, 1.442695
    %v5654 = vpow.pop %v5653
    %v5655 = vmul.f32 %v5648, 1.442695
    %v5656 = vpow.pop %v5655
    %v5657 = vadd.f32 %v5650, 1.0
    %v5658 = vadd.f32 %v5652, 1.0
    %v5659 = vadd.f32 %v5654, 1.0
    %v5660 = vadd.f32 %v5656, 1.0
    %v5661 = vrcp.pop %v5657
    %v5662 = vmul.f32 1.0, %v5661
    %v5663 = vrcp.pop %v5658
    %v5664 = vmul.f32 1.0, %v5663
    %v5665 = vrcp.pop %v5659
    %v5666 = vmul.f32 1.0, %v5665
    %v5667 = vrcp.pop %v5660
    %v5668 = vmul.f32 1.0, %v5667
    %5670 = vset.pattern.permute.xlu0 0
    %5671 = vperm.xlu0 %5670, %v5662
    %v5672 = vpop.permute.xlu0 %5671
    %5675 = vset.pattern.permute.xlu0 0
    %5676 = vperm.xlu0 %5675, %v5664
    %v5677 = vpop.permute.xlu0 %5676
    %5680 = vset.pattern.permute.xlu0 0
    %5681 = vperm.xlu0 %5680, %v5666
    %v5682 = vpop.permute.xlu0 %5681
    %5685 = vset.pattern.permute.xlu0 0
    %5686 = vperm.xlu0 %5685, %v5668
    %v5687 = vpop.permute.xlu0 %5686
    %v5689 = vmul.f32 %v2879, %v5672
    %v5690 = vmul.f32 %v2880, %v5672
    %v5691 = vmul.f32 %v2881, %v5677
    %v5692 = vmul.f32 %v2882, %v5677
    %v5693 = vmul.f32 %v2883, %v5682
    %v5694 = vmul.f32 %v2884, %v5682
    %v5695 = vmul.f32 %v2885, %v5687
    %v5696 = vmul.f32 %v2886, %v5687
    %s5697 = scalar_lea.vmem [#allocation5], 64
    %5698 = vst [vmem:[%s5697] sm:$0xff] %v5689
    %5699 = vst [vmem:[%s5697 + $0x8] sm:$0xff] %v5690
    %5700 = vst [vmem:[%s5697 + $0x10] sm:$0xff] %v5691
    %5701 = vst [vmem:[%s5697 + $0x18] sm:$0xff] %v5692
    %5702 = vst [vmem:[%s5697 + $0x20] sm:$0xff] %v5693
    %5703 = vst [vmem:[%s5697 + $0x28] sm:$0xff] %v5694
    %5704 = vst [vmem:[%s5697 + $0x30] sm:$0xff] %v5695
    %5705 = vst [vmem:[%s5697 + $0x38] sm:$0xff] %v5696
    // Predicated region
    $region18: #{tpu_custom_call.1} parent=1 // pred_check
      _
    $region19: #{tpu_custom_call.1} parent=1 // pred_check_branch
      %5707 = sbr.rel (0) target = $region21
    $region20: #{tpu_custom_call.1} parent=1 // pred_region
      %s5709 = ssub.s32 2048, 2048
      %5710 = vsyncadd [#allocation4], %s5709
      %s5711 = sshll.u32 [#allocation5], 4
      %s5712 = int_to_ptr.vmem [resolvable:$true] %s5711
      %5717 = dma.vmem_to_hbm [thread:$0]  %s5712, 2048, %s3, [#allocation4], 256, 256, 16
    $region21: #{tpu_custom_call.1} parent=1 // pred_fallthru
      _
    // Predicated region
    $region22: #{tpu_custom_call.1} parent=1 // pred_check
      _
    $region23: #{tpu_custom_call.1} parent=1 // pred_check_branch
      %5719 = sbr.rel (0) target = $region25
    $region24: #{tpu_custom_call.1} parent=1 // pred_region
      %5720 = dma.done [#allocation4], 2048
    $region25: #{tpu_custom_call.1} parent=1 // pred_fallthru
      _
    %5721 = vsyncpa [#allocation3], 1
    %5722 = vsyncpa [#allocation4], 1

</llo_original>
